<compile_context>
chip_gen: v7x
topology: tpu7x:2x2x1
jax: 0.10.0
libtpu: 0.0.40
codegen_flags: <defaults>
</compile_context>

<pallas_src>
import jax
import jax.numpy as jnp
from jax.experimental import pallas as pl
from jax.experimental.pallas import tpu as pltpu

# ----------------------- small ViT configuration --------------------------
IMG = 16           # image size (H = W)
PATCH = 4          # patch size
IN_C = 3           # input channels
EMBED = 32         # embedding dim
DEPTH = 2          # number of transformer blocks
HEADS = 4          # attention heads
MLP_RATIO = 4.0
NUM_CLASSES = 10
BATCH = 2

GRID = IMG // PATCH
NUM_PATCHES = GRID * GRID              # 16
N_TOK = NUM_PATCHES + 1                # 17 (cls token + patches)
N_PAD = 24                             # tokens padded to a sublane multiple of 8
HEAD_DIM = EMBED // HEADS              # 8
SCALE = HEAD_DIM ** -0.5
MLP_HIDDEN = int(EMBED * MLP_RATIO)    # 128
PATCH_K = IN_C * PATCH * PATCH         # 48
EPS = 1e-6                             # LayerNorm eps (partial(nn.LayerNorm, eps=1e-6))
NEG_INF = -1e30

_SQRT_2_OVER_PI = 0.7978845608028654


# ----------------------------- kernel helpers ------------------------------
def _layernorm(x, w, b):
    # PyTorch LayerNorm: biased variance, (x - mean) / sqrt(var + eps) * w + b
    mean = jnp.mean(x, axis=-1, keepdims=True)
    xc = x - mean
    var = jnp.mean(xc * xc, axis=-1, keepdims=True)
    return xc * jax.lax.rsqrt(var + EPS) * w + b


def _gelu(x):
    # TODO(synk): PyTorch nn.GELU uses the exact erf formulation; the tanh
    # approximation is used here (EUP-friendly, avoids erf lowering), |delta| ~ 1e-3.
    return 0.5 * x * (1.0 + jnp.tanh(_SQRT_2_OVER_PI * (x + 0.044715 * x * x * x)))


# ------------------------------ fused kernel -------------------------------
def vit_kernel(patches_ref, pw_ref, base_ref,
               ln1w_ref, ln1b_ref, wqkv_ref, bqkv_ref, wproj_ref, bproj_ref,
               ln2w_ref, ln2b_ref, wfc1_ref, bfc1_ref, wfc2_ref, bfc2_ref,
               lnw_ref, lnb_ref, wh_ref, bh_ref,
               o_ref):
    # Patch embedding + cls token + conv bias + positional embedding, fused.
    # patch rows for the cls / pad positions are zero; `base` carries
    # cls_token + pos_embed (+ conv bias) for the real token rows.
    patches = patches_ref[0]                                            # (N_PAD, PATCH_K) bf16
    x = (jnp.dot(patches, pw_ref[...], preferred_element_type=jnp.float32)
         + base_ref[...])                                               # (N_PAD, E) f32

    # Key-padding mask built once in-kernel (no HBM operand), hoisted out of
    # the depth loop.
    col = jax.lax.broadcasted_iota(jnp.int32, (N_PAD, N_PAD), 1)
    key_bias = jnp.where(col < N_TOK, 0.0, NEG_INF).astype(jnp.float32)  # (N_PAD, N_PAD)

    for d in range(DEPTH):
        # ------------------------- attention -------------------------
        xn = _layernorm(x, ln1w_ref[d], ln1b_ref[d])                     # (N_PAD, E)
        qkv = (jnp.dot(xn.astype(jnp.bfloat16), wqkv_ref[d],
                       preferred_element_type=jnp.float32)
               + bqkv_ref[d])                                            # (N_PAD, 3E)

        # Split heads by lane slicing; stack to (HEADS, N_PAD, HEAD_DIM).
        q3 = jnp.stack([qkv[:, h * HEAD_DIM:(h + 1) * HEAD_DIM]
                        for h in range(HEADS)], axis=0)
        k3 = jnp.stack([qkv[:, EMBED + h * HEAD_DIM:EMBED + (h + 1) * HEAD_DIM]
                        for h in range(HEADS)], axis=0)
        v3 = jnp.stack([qkv[:, 2 * EMBED + h * HEAD_DIM:2 * EMBED + (h + 1) * HEAD_DIM]
                        for h in range(HEADS)], axis=0)

        # One batched (over heads) score matmul + one context matmul.
        s = jnp.einsum('hnd,hmd->hnm',
                       q3.astype(jnp.bfloat16), k3.astype(jnp.bfloat16),
                       preferred_element_type=jnp.float32) * SCALE       # (H, N, N)
        s = s + key_bias                          # mask padded key columns
        s = s - jnp.max(s, axis=-1, keepdims=True)
        p = jnp.exp(s)
        p = p * pl.reciprocal(jnp.sum(p, axis=-1, keepdims=True), approx=True)
        ctx = jnp.einsum('hnm,hmd->hnd',
                         p.astype(jnp.bfloat16), v3.astype(jnp.bfloat16),
                         preferred_element_type=jnp.float32)             # (H, N, HD)

        # Concatenate head outputs along features -> single proj GEMM.
        ctx_cat = jnp.concatenate([ctx[h] for h in range(HEADS)], axis=-1)  # (N_PAD, E)
        x = x + (jnp.dot(ctx_cat.astype(jnp.bfloat16), wproj_ref[d],
                         preferred_element_type=jnp.float32)
                 + bproj_ref[d])

        # --------------------------- MLP -----------------------------
        xn2 = _layernorm(x, ln2w_ref[d], ln2b_ref[d])
        h1 = (jnp.dot(xn2.astype(jnp.bfloat16), wfc1_ref[d],
                      preferred_element_type=jnp.float32)
              + bfc1_ref[d])
        h1 = _gelu(h1)
        x = x + (jnp.dot(h1.astype(jnp.bfloat16), wfc2_ref[d],
                         preferred_element_type=jnp.float32)
                 + bfc2_ref[d])

    # --------------- final LayerNorm + head on the cls row only ---------------
    cls = _layernorm(x[0:1, :], lnw_ref[...], lnb_ref[...])             # (1, E)
    logits = (jnp.dot(cls.astype(jnp.bfloat16), wh_ref[...],
                      preferred_element_type=jnp.float32)
              + bh_ref[...])                                            # (1, NUM_CLASSES)
    o_ref[...] = logits.reshape(1, 1, NUM_CLASSES)


# ------------------------- deterministic parameter init ---------------------
def init_params(key):
    keys = iter(jax.random.split(key, 64))

    def lin(in_f, out_f, std=0.01):
        # Linear weights: trunc_normal(std=0.01) ~ normal*std; bias = 0.
        w = jax.random.normal(next(keys), (in_f, out_f), jnp.float32) * std
        b = jnp.zeros((1, out_f), jnp.float32)
        return w, b

    params = {}

    # PatchEmbed conv -> matmul weight, kaiming_normal fan_out
    fan_out = EMBED * PATCH * PATCH
    conv_std = (2.0 / fan_out) ** 0.5
    params['patch_w_t'] = (jax.random.normal(next(keys), (PATCH_K, EMBED), jnp.float32)
                           * conv_std)
    params['patch_b'] = jnp.zeros((1, EMBED), jnp.float32)

    # cls token (trunc_normal std=0.02) and pos_embed (zeros, untouched by init)
    params['cls_token'] = (jax.random.normal(next(keys), (1, 1, EMBED), jnp.float32)
                           * 0.02)
    params['pos_embed'] = jnp.zeros((1, N_TOK, EMBED), jnp.float32)

    blocks = []
    for _ in range(DEPTH):
        ln1_w = jnp.ones((1, EMBED), jnp.float32)
        ln1_b = jnp.zeros((1, EMBED), jnp.float32)
        wqkv, bqkv = lin(EMBED, 3 * EMBED)          # qkv_bias=True
        wproj, bproj = lin(EMBED, EMBED)
        ln2_w = jnp.ones((1, EMBED), jnp.float32)
        ln2_b = jnp.zeros((1, EMBED), jnp.float32)
        wfc1, bfc1 = lin(EMBED, MLP_HIDDEN)
        wfc2, bfc2 = lin(MLP_HIDDEN, EMBED)
        blocks.append(dict(ln1_w=ln1_w, ln1_b=ln1_b, wqkv=wqkv, bqkv=bqkv,
                           wproj=wproj, bproj=bproj, ln2_w=ln2_w, ln2_b=ln2_b,
                           wfc1=wfc1, bfc1=bfc1, wfc2=wfc2, bfc2=bfc2))
    params['blocks'] = blocks

    # final norm + head (representation_size=None -> pre_logits is Identity)
    params['ln_w'] = jnp.ones((1, EMBED), jnp.float32)
    params['ln_b'] = jnp.zeros((1, EMBED), jnp.float32)
    params['head_w_t'], params['head_b'] = lin(EMBED, NUM_CLASSES)
    return params


# --------------------- parameter packing for the fused kernel ---------------
def _pack_params(blocks):
    def stack(name, dtype=None):
        a = jnp.stack([blk[name] for blk in blocks], axis=0)
        return a.astype(dtype) if dtype is not None else a

    return {
        'ln1_w': stack('ln1_w'), 'ln1_b': stack('ln1_b'),          # (D, 1, E)
        'wqkv': stack('wqkv', jnp.bfloat16),                       # (D, E, 3E)
        'bqkv': stack('bqkv'),                                     # (D, 1, 3E)
        'wproj': stack('wproj', jnp.bfloat16),                     # (D, E, E)
        'bproj': stack('bproj'),                                   # (D, 1, E)
        'ln2_w': stack('ln2_w'), 'ln2_b': stack('ln2_b'),
        'wfc1': stack('wfc1', jnp.bfloat16), 'bfc1': stack('bfc1'),  # (D, E, H), (D, 1, H)
        'wfc2': stack('wfc2', jnp.bfloat16), 'bfc2': stack('bfc2'),  # (D, H, E), (D, 1, E)
    }


# --------------------------------- forward ----------------------------------
def vit_forward(x_img, params):
    Bn = x_img.shape[0]

    # NCHW -> (B, num_patches, in_c*patch*patch) with (c, ph, pw) pixel order,
    # matching the Conv2d weight flattening of the patch projection.
    p = x_img.reshape(Bn, IN_C, GRID, PATCH, GRID, PATCH)
    p = p.transpose(0, 2, 4, 1, 3, 5).reshape(Bn, NUM_PATCHES, PATCH_K)
    # Row 0 (cls) and rows N_TOK..N_PAD-1 are zero patches.
    patches = jnp.pad(p, ((0, 0), (1, N_PAD - NUM_PATCHES - 1), (0, 0)))
    patches = patches.astype(jnp.bfloat16)

    # Base rows added after the patch matmul: cls_token + pos[0] for the cls
    # row, pos[n] + conv bias for patch rows, zeros for padding rows.
    pos = params['pos_embed'][0]                                  # (N_TOK, E)
    base = jnp.concatenate([
        (params['cls_token'][0, 0] + pos[0])[None, :],
        pos[1:] + params['patch_b'],
        jnp.zeros((N_PAD - N_TOK, EMBED), jnp.float32),
    ], axis=0)                                                    # (N_PAD, E)

    packed = _pack_params(params['blocks'])

    args = (
        patches,
        params['patch_w_t'].astype(jnp.bfloat16),
        base,
        packed['ln1_w'], packed['ln1_b'],
        packed['wqkv'], packed['bqkv'],
        packed['wproj'], packed['bproj'],
        packed['ln2_w'], packed['ln2_b'],
        packed['wfc1'], packed['bfc1'],
        packed['wfc2'], packed['bfc2'],
        params['ln_w'], params['ln_b'],
        params['head_w_t'].astype(jnp.bfloat16), params['head_b'],
    )

    def const_spec(shape):
        n = len(shape)
        return pl.BlockSpec(shape, lambda b, _n=n: (0,) * _n)

    in_specs = [pl.BlockSpec((1, N_PAD, PATCH_K), lambda b: (b, 0, 0))]
    in_specs += [const_spec(a.shape) for a in args[1:]]

    out = pl.pallas_call(
        vit_kernel,
        out_shape=jax.ShapeDtypeStruct((Bn, 1, NUM_CLASSES), jnp.float32),
        grid=(Bn,),
        in_specs=in_specs,
        out_specs=pl.BlockSpec((1, 1, NUM_CLASSES), lambda b: (b, 0, 0)),
        compiler_params=pltpu.CompilerParams(
            dimension_semantics=("parallel",)),   # v7x: batch split across both TCs
    )(*args)
    return out.reshape(Bn, NUM_CLASSES)


if __name__ == "__main__":
    key = jax.random.PRNGKey(0)
    k_params, k_input = jax.random.split(key)

    params = init_params(k_params)
    x = jax.random.normal(k_input, (BATCH, IN_C, IMG, IMG), jnp.float32)

    fwd = jax.jit(vit_forward)
    logits = fwd(x, params)
    jax.block_until_ready(logits)

    assert logits.shape == (BATCH, NUM_CLASSES)
    assert bool(jnp.all(jnp.isfinite(logits)))
    print("KERNEL_OK")
</pallas_src>

<mosaic_0001>
module attributes {stable_mosaic.version = 11 : i64} {
  func.func @vit_kernel(%arg0: i32, %arg1: memref<1x24x48xbf16, #tpu.memory_space<vmem>>, %arg2: memref<48x32xbf16, #tpu.memory_space<vmem>>, %arg3: memref<24x32xf32, #tpu.memory_space<vmem>>, %arg4: memref<2x1x32xf32, #tpu.memory_space<vmem>>, %arg5: memref<2x1x32xf32, #tpu.memory_space<vmem>>, %arg6: memref<2x32x96xbf16, #tpu.memory_space<vmem>>, %arg7: memref<2x1x96xf32, #tpu.memory_space<vmem>>, %arg8: memref<2x32x32xbf16, #tpu.memory_space<vmem>>, %arg9: memref<2x1x32xf32, #tpu.memory_space<vmem>>, %arg10: memref<2x1x32xf32, #tpu.memory_space<vmem>>, %arg11: memref<2x1x32xf32, #tpu.memory_space<vmem>>, %arg12: memref<2x32x128xbf16, #tpu.memory_space<vmem>>, %arg13: memref<2x1x128xf32, #tpu.memory_space<vmem>>, %arg14: memref<2x128x32xbf16, #tpu.memory_space<vmem>>, %arg15: memref<2x1x32xf32, #tpu.memory_space<vmem>>, %arg16: memref<1x32xf32, #tpu.memory_space<vmem>>, %arg17: memref<1x32xf32, #tpu.memory_space<vmem>>, %arg18: memref<32x10xbf16, #tpu.memory_space<vmem>>, %arg19: memref<1x10xf32, #tpu.memory_space<vmem>>, %arg20: memref<1x1x10xf32, #tpu.memory_space<vmem>>) attributes {dimension_semantics = [#tpu.dimension_semantics<parallel>], iteration_bounds = array<i64: 2>, scalar_prefetch = 0 : i64, scratch_operands = 0 : i64, tpu.core_type = #tpu.core_type<tc>, window_params = [{transform_indices = @transform_0, window_bounds = array<i64: 1, 24, 48>}, {pipeline_mode = #tpu.pipeline_mode<synchronous>, transform_indices = @transform_1, window_bounds = array<i64: 48, 32>}, {pipeline_mode = #tpu.pipeline_mode<synchronous>, transform_indices = @transform_2, window_bounds = array<i64: 24, 32>}, {pipeline_mode = #tpu.pipeline_mode<synchronous>, transform_indices = @transform_3, window_bounds = array<i64: 2, 1, 32>}, {pipeline_mode = #tpu.pipeline_mode<synchronous>, transform_indices = @transform_4, window_bounds = array<i64: 2, 1, 32>}, {pipeline_mode = #tpu.pipeline_mode<synchronous>, transform_indices = @transform_5, window_bounds = array<i64: 2, 32, 96>}, {pipeline_mode = #tpu.pipeline_mode<synchronous>, transform_indices = @transform_6, window_bounds = array<i64: 2, 1, 96>}, {pipeline_mode = #tpu.pipeline_mode<synchronous>, transform_indices = @transform_7, window_bounds = array<i64: 2, 32, 32>}, {pipeline_mode = #tpu.pipeline_mode<synchronous>, transform_indices = @transform_8, window_bounds = array<i64: 2, 1, 32>}, {pipeline_mode = #tpu.pipeline_mode<synchronous>, transform_indices = @transform_9, window_bounds = array<i64: 2, 1, 32>}, {pipeline_mode = #tpu.pipeline_mode<synchronous>, transform_indices = @transform_10, window_bounds = array<i64: 2, 1, 32>}, {pipeline_mode = #tpu.pipeline_mode<synchronous>, transform_indices = @transform_11, window_bounds = array<i64: 2, 32, 128>}, {pipeline_mode = #tpu.pipeline_mode<synchronous>, transform_indices = @transform_12, window_bounds = array<i64: 2, 1, 128>}, {pipeline_mode = #tpu.pipeline_mode<synchronous>, transform_indices = @transform_13, window_bounds = array<i64: 2, 128, 32>}, {pipeline_mode = #tpu.pipeline_mode<synchronous>, transform_indices = @transform_14, window_bounds = array<i64: 2, 1, 32>}, {pipeline_mode = #tpu.pipeline_mode<synchronous>, transform_indices = @transform_15, window_bounds = array<i64: 1, 32>}, {pipeline_mode = #tpu.pipeline_mode<synchronous>, transform_indices = @transform_16, window_bounds = array<i64: 1, 32>}, {pipeline_mode = #tpu.pipeline_mode<synchronous>, transform_indices = @transform_17, window_bounds = array<i64: 32, 10>}, {pipeline_mode = #tpu.pipeline_mode<synchronous>, transform_indices = @transform_18, window_bounds = array<i64: 1, 10>}, {transform_indices = @transform_19, window_bounds = array<i64: 1, 1, 10>}]} {
    %c0 = arith.constant 0 : index
    %c0_0 = arith.constant 0 : index
    %c0_1 = arith.constant 0 : index
    %0 = vector.load %arg1[%c0, %c0_0, %c0_1] : memref<1x24x48xbf16, #tpu.memory_space<vmem>>, vector<1x24x48xbf16>
    %1 = vector.shape_cast %0 : vector<1x24x48xbf16> to vector<24x48xbf16>
    %c0_2 = arith.constant 0 : index
    %c0_3 = arith.constant 0 : index
    %2 = vector.load %arg2[%c0_2, %c0_3] : memref<48x32xbf16, #tpu.memory_space<vmem>>, vector<48x32xbf16>
    %cst = arith.constant dense<0.000000e+00> : vector<24x32xf32>
    %3 = tpu.matmul %1, %2, %cst {dimension_numbers = #tpu.dot_dimension_numbers<[1], [0], [0], [1], [0, 0, 1, 1], [], []>} : vector<24x48xbf16>, vector<48x32xbf16>, vector<24x32xf32> -> vector<24x32xf32>
    %c0_4 = arith.constant 0 : index
    %c0_5 = arith.constant 0 : index
    %4 = vector.load %arg3[%c0_4, %c0_5] : memref<24x32xf32, #tpu.memory_space<vmem>>, vector<24x32xf32>
    %5 = arith.addf %3, %4 : vector<24x32xf32>
    %6 = tpu.iota {dimensions = array<i32: 1>} : vector<24x24xi32>
    %c17_i32 = arith.constant 17 : i32
    %7 = vector.broadcast %c17_i32 : i32 to vector<24x24xi32>
    %8 = arith.cmpi slt, %6, %7 : vector<24x24xi32>
    %cst_6 = arith.constant 0.000000e+00 : f32
    %cst_7 = arith.constant -1.000000e+30 : f32
    %9 = vector.broadcast %cst_6 : f32 to vector<24x24xf32>
    %10 = vector.broadcast %cst_7 : f32 to vector<24x24xf32>
    %11 = arith.select %8, %9, %10 : vector<24x24xi1>, vector<24x24xf32>
    %c0_8 = arith.constant 0 : index
    %c0_9 = arith.constant 0 : index
    %c0_10 = arith.constant 0 : index
    %12 = vector.load %arg4[%c0_8, %c0_9, %c0_10] : memref<2x1x32xf32, #tpu.memory_space<vmem>>, vector<1x1x32xf32>
    %13 = vector.shape_cast %12 : vector<1x1x32xf32> to vector<1x32xf32>
    %c0_11 = arith.constant 0 : index
    %c0_12 = arith.constant 0 : index
    %c0_13 = arith.constant 0 : index
    %14 = vector.load %arg5[%c0_11, %c0_12, %c0_13] : memref<2x1x32xf32, #tpu.memory_space<vmem>>, vector<1x1x32xf32>
    %15 = vector.shape_cast %14 : vector<1x1x32xf32> to vector<1x32xf32>
    %cst_14 = arith.constant dense<0.000000e+00> : vector<24xf32>
    %16 = vector.multi_reduction <add>, %5, %cst_14 [1] : vector<24x32xf32> to vector<24xf32>
    %17 = vector.shape_cast %16 : vector<24xf32> to vector<24x1xf32>
    %cst_15 = arith.constant 3.200000e+01 : f32
    %18 = vector.broadcast %cst_15 : f32 to vector<24x1xf32>
    %19 = arith.divf %17, %18 : vector<24x1xf32>
    %20 = vector.broadcast %19 : vector<24x1xf32> to vector<24x32xf32>
    %21 = arith.subf %5, %20 : vector<24x32xf32>
    %22 = arith.mulf %21, %21 : vector<24x32xf32>
    %cst_16 = arith.constant dense<0.000000e+00> : vector<24xf32>
    %23 = vector.multi_reduction <add>, %22, %cst_16 [1] : vector<24x32xf32> to vector<24xf32>
    %24 = vector.shape_cast %23 : vector<24xf32> to vector<24x1xf32>
    %cst_17 = arith.constant 3.200000e+01 : f32
    %25 = vector.broadcast %cst_17 : f32 to vector<24x1xf32>
    %26 = arith.divf %24, %25 : vector<24x1xf32>
    %cst_18 = arith.constant 9.99999997E-7 : f32
    %27 = vector.broadcast %cst_18 : f32 to vector<24x1xf32>
    %28 = arith.addf %26, %27 : vector<24x1xf32>
    %29 = math.rsqrt %28 : vector<24x1xf32>
    %30 = vector.broadcast %29 : vector<24x1xf32> to vector<24x32xf32>
    %31 = arith.mulf %21, %30 : vector<24x32xf32>
    %32 = vector.broadcast %13 : vector<1x32xf32> to vector<24x32xf32>
    %33 = arith.mulf %31, %32 : vector<24x32xf32>
    %34 = vector.broadcast %15 : vector<1x32xf32> to vector<24x32xf32>
    %35 = arith.addf %33, %34 : vector<24x32xf32>
    %36 = arith.truncf %35 : vector<24x32xf32> to vector<24x32xbf16>
    %c0_19 = arith.constant 0 : index
    %c0_20 = arith.constant 0 : index
    %c0_21 = arith.constant 0 : index
    %37 = vector.load %arg6[%c0_19, %c0_20, %c0_21] : memref<2x32x96xbf16, #tpu.memory_space<vmem>>, vector<1x32x96xbf16>
    %38 = vector.shape_cast %37 : vector<1x32x96xbf16> to vector<32x96xbf16>
    %cst_22 = arith.constant dense<0.000000e+00> : vector<24x96xf32>
    %39 = tpu.matmul %36, %38, %cst_22 {dimension_numbers = #tpu.dot_dimension_numbers<[1], [0], [0], [1], [0, 0, 1, 1], [], []>} : vector<24x32xbf16>, vector<32x96xbf16>, vector<24x96xf32> -> vector<24x96xf32>
    %c0_23 = arith.constant 0 : index
    %c0_24 = arith.constant 0 : index
    %c0_25 = arith.constant 0 : index
    %40 = vector.load %arg7[%c0_23, %c0_24, %c0_25] : memref<2x1x96xf32, #tpu.memory_space<vmem>>, vector<1x1x96xf32>
    %41 = vector.shape_cast %40 : vector<1x1x96xf32> to vector<1x96xf32>
    %42 = vector.broadcast %41 : vector<1x96xf32> to vector<24x96xf32>
    %43 = arith.addf %39, %42 : vector<24x96xf32>
    %44 = vector.extract_strided_slice %43 {offsets = [0, 0], sizes = [24, 8], strides = [1, 1]} : vector<24x96xf32> to vector<24x8xf32>
    %45 = vector.extract_strided_slice %43 {offsets = [0, 8], sizes = [24, 8], strides = [1, 1]} : vector<24x96xf32> to vector<24x8xf32>
    %46 = vector.extract_strided_slice %43 {offsets = [0, 16], sizes = [24, 8], strides = [1, 1]} : vector<24x96xf32> to vector<24x8xf32>
    %47 = vector.extract_strided_slice %43 {offsets = [0, 24], sizes = [24, 8], strides = [1, 1]} : vector<24x96xf32> to vector<24x8xf32>
    %48 = vector.shape_cast %44 : vector<24x8xf32> to vector<1x24x8xf32>
    %49 = vector.shape_cast %45 : vector<24x8xf32> to vector<1x24x8xf32>
    %50 = vector.shape_cast %46 : vector<24x8xf32> to vector<1x24x8xf32>
    %51 = vector.shape_cast %47 : vector<24x8xf32> to vector<1x24x8xf32>
    %52 = tpu.concatenate %48, %49, %50, %51 in 0 : vector<1x24x8xf32>, vector<1x24x8xf32>, vector<1x24x8xf32>, vector<1x24x8xf32> -> vector<4x24x8xf32>
    %53 = vector.extract_strided_slice %43 {offsets = [0, 32], sizes = [24, 8], strides = [1, 1]} : vector<24x96xf32> to vector<24x8xf32>
    %54 = vector.extract_strided_slice %43 {offsets = [0, 40], sizes = [24, 8], strides = [1, 1]} : vector<24x96xf32> to vector<24x8xf32>
    %55 = vector.extract_strided_slice %43 {offsets = [0, 48], sizes = [24, 8], strides = [1, 1]} : vector<24x96xf32> to vector<24x8xf32>
    %56 = vector.extract_strided_slice %43 {offsets = [0, 56], sizes = [24, 8], strides = [1, 1]} : vector<24x96xf32> to vector<24x8xf32>
    %57 = vector.shape_cast %53 : vector<24x8xf32> to vector<1x24x8xf32>
    %58 = vector.shape_cast %54 : vector<24x8xf32> to vector<1x24x8xf32>
    %59 = vector.shape_cast %55 : vector<24x8xf32> to vector<1x24x8xf32>
    %60 = vector.shape_cast %56 : vector<24x8xf32> to vector<1x24x8xf32>
    %61 = tpu.concatenate %57, %58, %59, %60 in 0 : vector<1x24x8xf32>, vector<1x24x8xf32>, vector<1x24x8xf32>, vector<1x24x8xf32> -> vector<4x24x8xf32>
    %62 = vector.extract_strided_slice %43 {offsets = [0, 64], sizes = [24, 8], strides = [1, 1]} : vector<24x96xf32> to vector<24x8xf32>
    %63 = vector.extract_strided_slice %43 {offsets = [0, 72], sizes = [24, 8], strides = [1, 1]} : vector<24x96xf32> to vector<24x8xf32>
    %64 = vector.extract_strided_slice %43 {offsets = [0, 80], sizes = [24, 8], strides = [1, 1]} : vector<24x96xf32> to vector<24x8xf32>
    %65 = vector.extract_strided_slice %43 {offsets = [0, 88], sizes = [24, 8], strides = [1, 1]} : vector<24x96xf32> to vector<24x8xf32>
    %66 = vector.shape_cast %62 : vector<24x8xf32> to vector<1x24x8xf32>
    %67 = vector.shape_cast %63 : vector<24x8xf32> to vector<1x24x8xf32>
    %68 = vector.shape_cast %64 : vector<24x8xf32> to vector<1x24x8xf32>
    %69 = vector.shape_cast %65 : vector<24x8xf32> to vector<1x24x8xf32>
    %70 = tpu.concatenate %66, %67, %68, %69 in 0 : vector<1x24x8xf32>, vector<1x24x8xf32>, vector<1x24x8xf32>, vector<1x24x8xf32> -> vector<4x24x8xf32>
    %71 = arith.truncf %52 : vector<4x24x8xf32> to vector<4x24x8xbf16>
    %72 = arith.truncf %61 : vector<4x24x8xf32> to vector<4x24x8xbf16>
    "tpu.trace_start"() <{level = 10 : i32, message = "hnd,hmd->hnm"}> : () -> ()
    %cst_26 = arith.constant dense<0.000000e+00> : vector<4x24x24xf32>
    %73 = tpu.matmul %71, %72, %cst_26 {dimension_numbers = #tpu.dot_dimension_numbers<[2], [2], [1], [1], [0, 0, 0, 1, 1, 1], [0], [0]>} : vector<4x24x8xbf16>, vector<4x24x8xbf16>, vector<4x24x24xf32> -> vector<4x24x24xf32>
    "tpu.trace_stop"() : () -> ()
    %cst_27 = arith.constant 0.353553385 : f32
    %74 = vector.broadcast %cst_27 : f32 to vector<4x24x24xf32>
    %75 = arith.mulf %73, %74 : vector<4x24x24xf32>
    %76 = vector.shape_cast %11 : vector<24x24xf32> to vector<1x24x24xf32>
    %77 = vector.broadcast %76 : vector<1x24x24xf32> to vector<4x24x24xf32>
    %78 = arith.addf %75, %77 : vector<4x24x24xf32>
    %cst_28 = arith.constant dense<0xFF800000> : vector<4x24xf32>
    %79 = vector.multi_reduction <maximumf>, %78, %cst_28 [2] : vector<4x24x24xf32> to vector<4x24xf32>
    %80 = vector.shape_cast %79 : vector<4x24xf32> to vector<4x24x1xf32>
    %81 = vector.broadcast %80 : vector<4x24x1xf32> to vector<4x24x24xf32>
    %82 = arith.subf %78, %81 : vector<4x24x24xf32>
    %83 = math.exp %82 : vector<4x24x24xf32>
    %cst_29 = arith.constant dense<0.000000e+00> : vector<4x24xf32>
    %84 = vector.multi_reduction <add>, %83, %cst_29 [2] : vector<4x24x24xf32> to vector<4x24xf32>
    %85 = vector.shape_cast %84 : vector<4x24xf32> to vector<4x24x1xf32>
    %86 = tpu.reciprocal %85 {approx = true} : vector<4x24x1xf32> -> vector<4x24x1xf32>
    %87 = vector.broadcast %86 : vector<4x24x1xf32> to vector<4x24x24xf32>
    %88 = arith.mulf %83, %87 : vector<4x24x24xf32>
    %89 = arith.truncf %88 : vector<4x24x24xf32> to vector<4x24x24xbf16>
    %90 = arith.truncf %70 : vector<4x24x8xf32> to vector<4x24x8xbf16>
    "tpu.trace_start"() <{level = 10 : i32, message = "hnm,hmd->hnd"}> : () -> ()
    %cst_30 = arith.constant dense<0.000000e+00> : vector<4x24x8xf32>
    %91 = tpu.matmul %89, %90, %cst_30 {dimension_numbers = #tpu.dot_dimension_numbers<[2], [1], [1], [2], [0, 0, 0, 1, 1, 2], [0], [0]>} : vector<4x24x24xbf16>, vector<4x24x8xbf16>, vector<4x24x8xf32> -> vector<4x24x8xf32>
    "tpu.trace_stop"() : () -> ()
    %92 = vector.extract_strided_slice %91 {offsets = [0, 0, 0], sizes = [1, 24, 8], strides = [1, 1, 1]} : vector<4x24x8xf32> to vector<1x24x8xf32>
    %93 = vector.shape_cast %92 : vector<1x24x8xf32> to vector<24x8xf32>
    %94 = vector.extract_strided_slice %91 {offsets = [1, 0, 0], sizes = [1, 24, 8], strides = [1, 1, 1]} : vector<4x24x8xf32> to vector<1x24x8xf32>
    %95 = vector.shape_cast %94 : vector<1x24x8xf32> to vector<24x8xf32>
    %96 = vector.extract_strided_slice %91 {offsets = [2, 0, 0], sizes = [1, 24, 8], strides = [1, 1, 1]} : vector<4x24x8xf32> to vector<1x24x8xf32>
    %97 = vector.shape_cast %96 : vector<1x24x8xf32> to vector<24x8xf32>
    %98 = vector.extract_strided_slice %91 {offsets = [3, 0, 0], sizes = [1, 24, 8], strides = [1, 1, 1]} : vector<4x24x8xf32> to vector<1x24x8xf32>
    %99 = vector.shape_cast %98 : vector<1x24x8xf32> to vector<24x8xf32>
    %100 = tpu.concatenate %93, %95, %97, %99 in 1 : vector<24x8xf32>, vector<24x8xf32>, vector<24x8xf32>, vector<24x8xf32> -> vector<24x32xf32>
    %101 = arith.truncf %100 : vector<24x32xf32> to vector<24x32xbf16>
    %c0_31 = arith.constant 0 : index
    %c0_32 = arith.constant 0 : index
    %c0_33 = arith.constant 0 : index
    %102 = vector.load %arg8[%c0_31, %c0_32, %c0_33] : memref<2x32x32xbf16, #tpu.memory_space<vmem>>, vector<1x32x32xbf16>
    %103 = vector.shape_cast %102 : vector<1x32x32xbf16> to vector<32x32xbf16>
    %cst_34 = arith.constant dense<0.000000e+00> : vector<24x32xf32>
    %104 = tpu.matmul %101, %103, %cst_34 {dimension_numbers = #tpu.dot_dimension_numbers<[1], [0], [0], [1], [0, 0, 1, 1], [], []>} : vector<24x32xbf16>, vector<32x32xbf16>, vector<24x32xf32> -> vector<24x32xf32>
    %c0_35 = arith.constant 0 : index
    %c0_36 = arith.constant 0 : index
    %c0_37 = arith.constant 0 : index
    %105 = vector.load %arg9[%c0_35, %c0_36, %c0_37] : memref<2x1x32xf32, #tpu.memory_space<vmem>>, vector<1x1x32xf32>
    %106 = vector.shape_cast %105 : vector<1x1x32xf32> to vector<1x32xf32>
    %107 = vector.broadcast %106 : vector<1x32xf32> to vector<24x32xf32>
    %108 = arith.addf %104, %107 : vector<24x32xf32>
    %109 = arith.addf %5, %108 : vector<24x32xf32>
    %c0_38 = arith.constant 0 : index
    %c0_39 = arith.constant 0 : index
    %c0_40 = arith.constant 0 : index
    %110 = vector.load %arg10[%c0_38, %c0_39, %c0_40] : memref<2x1x32xf32, #tpu.memory_space<vmem>>, vector<1x1x32xf32>
    %111 = vector.shape_cast %110 : vector<1x1x32xf32> to vector<1x32xf32>
    %c0_41 = arith.constant 0 : index
    %c0_42 = arith.constant 0 : index
    %c0_43 = arith.constant 0 : index
    %112 = vector.load %arg11[%c0_41, %c0_42, %c0_43] : memref<2x1x32xf32, #tpu.memory_space<vmem>>, vector<1x1x32xf32>
    %113 = vector.shape_cast %112 : vector<1x1x32xf32> to vector<1x32xf32>
    %cst_44 = arith.constant dense<0.000000e+00> : vector<24xf32>
    %114 = vector.multi_reduction <add>, %109, %cst_44 [1] : vector<24x32xf32> to vector<24xf32>
    %115 = vector.shape_cast %114 : vector<24xf32> to vector<24x1xf32>
    %cst_45 = arith.constant 3.200000e+01 : f32
    %116 = vector.broadcast %cst_45 : f32 to vector<24x1xf32>
    %117 = arith.divf %115, %116 : vector<24x1xf32>
    %118 = vector.broadcast %117 : vector<24x1xf32> to vector<24x32xf32>
    %119 = arith.subf %109, %118 : vector<24x32xf32>
    %120 = arith.mulf %119, %119 : vector<24x32xf32>
    %cst_46 = arith.constant dense<0.000000e+00> : vector<24xf32>
    %121 = vector.multi_reduction <add>, %120, %cst_46 [1] : vector<24x32xf32> to vector<24xf32>
    %122 = vector.shape_cast %121 : vector<24xf32> to vector<24x1xf32>
    %cst_47 = arith.constant 3.200000e+01 : f32
    %123 = vector.broadcast %cst_47 : f32 to vector<24x1xf32>
    %124 = arith.divf %122, %123 : vector<24x1xf32>
    %cst_48 = arith.constant 9.99999997E-7 : f32
    %125 = vector.broadcast %cst_48 : f32 to vector<24x1xf32>
    %126 = arith.addf %124, %125 : vector<24x1xf32>
    %127 = math.rsqrt %126 : vector<24x1xf32>
    %128 = vector.broadcast %127 : vector<24x1xf32> to vector<24x32xf32>
    %129 = arith.mulf %119, %128 : vector<24x32xf32>
    %130 = vector.broadcast %111 : vector<1x32xf32> to vector<24x32xf32>
    %131 = arith.mulf %129, %130 : vector<24x32xf32>
    %132 = vector.broadcast %113 : vector<1x32xf32> to vector<24x32xf32>
    %133 = arith.addf %131, %132 : vector<24x32xf32>
    %134 = arith.truncf %133 : vector<24x32xf32> to vector<24x32xbf16>
    %c0_49 = arith.constant 0 : index
    %c0_50 = arith.constant 0 : index
    %c0_51 = arith.constant 0 : index
    %135 = vector.load %arg12[%c0_49, %c0_50, %c0_51] : memref<2x32x128xbf16, #tpu.memory_space<vmem>>, vector<1x32x128xbf16>
    %136 = vector.shape_cast %135 : vector<1x32x128xbf16> to vector<32x128xbf16>
    %cst_52 = arith.constant dense<0.000000e+00> : vector<24x128xf32>
    %137 = tpu.matmul %134, %136, %cst_52 {dimension_numbers = #tpu.dot_dimension_numbers<[1], [0], [0], [1], [0, 0, 1, 1], [], []>} : vector<24x32xbf16>, vector<32x128xbf16>, vector<24x128xf32> -> vector<24x128xf32>
    %c0_53 = arith.constant 0 : index
    %c0_54 = arith.constant 0 : index
    %c0_55 = arith.constant 0 : index
    %138 = vector.load %arg13[%c0_53, %c0_54, %c0_55] : memref<2x1x128xf32, #tpu.memory_space<vmem>>, vector<1x1x128xf32>
    %139 = vector.shape_cast %138 : vector<1x1x128xf32> to vector<1x128xf32>
    %140 = vector.broadcast %139 : vector<1x128xf32> to vector<24x128xf32>
    %141 = arith.addf %137, %140 : vector<24x128xf32>
    %cst_56 = arith.constant 5.000000e-01 : f32
    %142 = vector.broadcast %cst_56 : f32 to vector<24x128xf32>
    %143 = arith.mulf %142, %141 : vector<24x128xf32>
    %cst_57 = arith.constant 4.471500e-02 : f32
    %144 = vector.broadcast %cst_57 : f32 to vector<24x128xf32>
    %145 = arith.mulf %144, %141 : vector<24x128xf32>
    %146 = arith.mulf %145, %141 : vector<24x128xf32>
    %147 = arith.mulf %146, %141 : vector<24x128xf32>
    %148 = arith.addf %141, %147 : vector<24x128xf32>
    %cst_58 = arith.constant 0.797884583 : f32
    %149 = vector.broadcast %cst_58 : f32 to vector<24x128xf32>
    %150 = arith.mulf %149, %148 : vector<24x128xf32>
    %151 = math.tanh %150 : vector<24x128xf32>
    %cst_59 = arith.constant 1.000000e+00 : f32
    %152 = vector.broadcast %cst_59 : f32 to vector<24x128xf32>
    %153 = arith.addf %152, %151 : vector<24x128xf32>
    %154 = arith.mulf %143, %153 : vector<24x128xf32>
    %155 = arith.truncf %154 : vector<24x128xf32> to vector<24x128xbf16>
    %c0_60 = arith.constant 0 : index
    %c0_61 = arith.constant 0 : index
    %c0_62 = arith.constant 0 : index
    %156 = vector.load %arg14[%c0_60, %c0_61, %c0_62] : memref<2x128x32xbf16, #tpu.memory_space<vmem>>, vector<1x128x32xbf16>
    %157 = vector.shape_cast %156 : vector<1x128x32xbf16> to vector<128x32xbf16>
    %cst_63 = arith.constant dense<0.000000e+00> : vector<24x32xf32>
    %158 = tpu.matmul %155, %157, %cst_63 {dimension_numbers = #tpu.dot_dimension_numbers<[1], [0], [0], [1], [0, 0, 1, 1], [], []>} : vector<24x128xbf16>, vector<128x32xbf16>, vector<24x32xf32> -> vector<24x32xf32>
    %c0_64 = arith.constant 0 : index
    %c0_65 = arith.constant 0 : index
    %c0_66 = arith.constant 0 : index
    %159 = vector.load %arg15[%c0_64, %c0_65, %c0_66] : memref<2x1x32xf32, #tpu.memory_space<vmem>>, vector<1x1x32xf32>
    %160 = vector.shape_cast %159 : vector<1x1x32xf32> to vector<1x32xf32>
    %161 = vector.broadcast %160 : vector<1x32xf32> to vector<24x32xf32>
    %162 = arith.addf %158, %161 : vector<24x32xf32>
    %163 = arith.addf %109, %162 : vector<24x32xf32>
    %c1 = arith.constant 1 : index
    %c0_67 = arith.constant 0 : index
    %c0_68 = arith.constant 0 : index
    %164 = vector.load %arg4[%c1, %c0_67, %c0_68] : memref<2x1x32xf32, #tpu.memory_space<vmem>>, vector<1x1x32xf32>
    %165 = vector.shape_cast %164 : vector<1x1x32xf32> to vector<1x32xf32>
    %c1_69 = arith.constant 1 : index
    %c0_70 = arith.constant 0 : index
    %c0_71 = arith.constant 0 : index
    %166 = vector.load %arg5[%c1_69, %c0_70, %c0_71] : memref<2x1x32xf32, #tpu.memory_space<vmem>>, vector<1x1x32xf32>
    %167 = vector.shape_cast %166 : vector<1x1x32xf32> to vector<1x32xf32>
    %cst_72 = arith.constant dense<0.000000e+00> : vector<24xf32>
    %168 = vector.multi_reduction <add>, %163, %cst_72 [1] : vector<24x32xf32> to vector<24xf32>
    %169 = vector.shape_cast %168 : vector<24xf32> to vector<24x1xf32>
    %cst_73 = arith.constant 3.200000e+01 : f32
    %170 = vector.broadcast %cst_73 : f32 to vector<24x1xf32>
    %171 = arith.divf %169, %170 : vector<24x1xf32>
    %172 = vector.broadcast %171 : vector<24x1xf32> to vector<24x32xf32>
    %173 = arith.subf %163, %172 : vector<24x32xf32>
    %174 = arith.mulf %173, %173 : vector<24x32xf32>
    %cst_74 = arith.constant dense<0.000000e+00> : vector<24xf32>
    %175 = vector.multi_reduction <add>, %174, %cst_74 [1] : vector<24x32xf32> to vector<24xf32>
    %176 = vector.shape_cast %175 : vector<24xf32> to vector<24x1xf32>
    %cst_75 = arith.constant 3.200000e+01 : f32
    %177 = vector.broadcast %cst_75 : f32 to vector<24x1xf32>
    %178 = arith.divf %176, %177 : vector<24x1xf32>
    %cst_76 = arith.constant 9.99999997E-7 : f32
    %179 = vector.broadcast %cst_76 : f32 to vector<24x1xf32>
    %180 = arith.addf %178, %179 : vector<24x1xf32>
    %181 = math.rsqrt %180 : vector<24x1xf32>
    %182 = vector.broadcast %181 : vector<24x1xf32> to vector<24x32xf32>
    %183 = arith.mulf %173, %182 : vector<24x32xf32>
    %184 = vector.broadcast %165 : vector<1x32xf32> to vector<24x32xf32>
    %185 = arith.mulf %183, %184 : vector<24x32xf32>
    %186 = vector.broadcast %167 : vector<1x32xf32> to vector<24x32xf32>
    %187 = arith.addf %185, %186 : vector<24x32xf32>
    %188 = arith.truncf %187 : vector<24x32xf32> to vector<24x32xbf16>
    %c1_77 = arith.constant 1 : index
    %c0_78 = arith.constant 0 : index
    %c0_79 = arith.constant 0 : index
    %189 = vector.load %arg6[%c1_77, %c0_78, %c0_79] : memref<2x32x96xbf16, #tpu.memory_space<vmem>>, vector<1x32x96xbf16>
    %190 = vector.shape_cast %189 : vector<1x32x96xbf16> to vector<32x96xbf16>
    %cst_80 = arith.constant dense<0.000000e+00> : vector<24x96xf32>
    %191 = tpu.matmul %188, %190, %cst_80 {dimension_numbers = #tpu.dot_dimension_numbers<[1], [0], [0], [1], [0, 0, 1, 1], [], []>} : vector<24x32xbf16>, vector<32x96xbf16>, vector<24x96xf32> -> vector<24x96xf32>
    %c1_81 = arith.constant 1 : index
    %c0_82 = arith.constant 0 : index
    %c0_83 = arith.constant 0 : index
    %192 = vector.load %arg7[%c1_81, %c0_82, %c0_83] : memref<2x1x96xf32, #tpu.memory_space<vmem>>, vector<1x1x96xf32>
    %193 = vector.shape_cast %192 : vector<1x1x96xf32> to vector<1x96xf32>
    %194 = vector.broadcast %193 : vector<1x96xf32> to vector<24x96xf32>
    %195 = arith.addf %191, %194 : vector<24x96xf32>
    %196 = vector.extract_strided_slice %195 {offsets = [0, 0], sizes = [24, 8], strides = [1, 1]} : vector<24x96xf32> to vector<24x8xf32>
    %197 = vector.extract_strided_slice %195 {offsets = [0, 8], sizes = [24, 8], strides = [1, 1]} : vector<24x96xf32> to vector<24x8xf32>
    %198 = vector.extract_strided_slice %195 {offsets = [0, 16], sizes = [24, 8], strides = [1, 1]} : vector<24x96xf32> to vector<24x8xf32>
    %199 = vector.extract_strided_slice %195 {offsets = [0, 24], sizes = [24, 8], strides = [1, 1]} : vector<24x96xf32> to vector<24x8xf32>
    %200 = vector.shape_cast %196 : vector<24x8xf32> to vector<1x24x8xf32>
    %201 = vector.shape_cast %197 : vector<24x8xf32> to vector<1x24x8xf32>
    %202 = vector.shape_cast %198 : vector<24x8xf32> to vector<1x24x8xf32>
    %203 = vector.shape_cast %199 : vector<24x8xf32> to vector<1x24x8xf32>
    %204 = tpu.concatenate %200, %201, %202, %203 in 0 : vector<1x24x8xf32>, vector<1x24x8xf32>, vector<1x24x8xf32>, vector<1x24x8xf32> -> vector<4x24x8xf32>
    %205 = vector.extract_strided_slice %195 {offsets = [0, 32], sizes = [24, 8], strides = [1, 1]} : vector<24x96xf32> to vector<24x8xf32>
    %206 = vector.extract_strided_slice %195 {offsets = [0, 40], sizes = [24, 8], strides = [1, 1]} : vector<24x96xf32> to vector<24x8xf32>
    %207 = vector.extract_strided_slice %195 {offsets = [0, 48], sizes = [24, 8], strides = [1, 1]} : vector<24x96xf32> to vector<24x8xf32>
    %208 = vector.extract_strided_slice %195 {offsets = [0, 56], sizes = [24, 8], strides = [1, 1]} : vector<24x96xf32> to vector<24x8xf32>
    %209 = vector.shape_cast %205 : vector<24x8xf32> to vector<1x24x8xf32>
    %210 = vector.shape_cast %206 : vector<24x8xf32> to vector<1x24x8xf32>
    %211 = vector.shape_cast %207 : vector<24x8xf32> to vector<1x24x8xf32>
    %212 = vector.shape_cast %208 : vector<24x8xf32> to vector<1x24x8xf32>
    %213 = tpu.concatenate %209, %210, %211, %212 in 0 : vector<1x24x8xf32>, vector<1x24x8xf32>, vector<1x24x8xf32>, vector<1x24x8xf32> -> vector<4x24x8xf32>
    %214 = vector.extract_strided_slice %195 {offsets = [0, 64], sizes = [24, 8], strides = [1, 1]} : vector<24x96xf32> to vector<24x8xf32>
    %215 = vector.extract_strided_slice %195 {offsets = [0, 72], sizes = [24, 8], strides = [1, 1]} : vector<24x96xf32> to vector<24x8xf32>
    %216 = vector.extract_strided_slice %195 {offsets = [0, 80], sizes = [24, 8], strides = [1, 1]} : vector<24x96xf32> to vector<24x8xf32>
    %217 = vector.extract_strided_slice %195 {offsets = [0, 88], sizes = [24, 8], strides = [1, 1]} : vector<24x96xf32> to vector<24x8xf32>
    %218 = vector.shape_cast %214 : vector<24x8xf32> to vector<1x24x8xf32>
    %219 = vector.shape_cast %215 : vector<24x8xf32> to vector<1x24x8xf32>
    %220 = vector.shape_cast %216 : vector<24x8xf32> to vector<1x24x8xf32>
    %221 = vector.shape_cast %217 : vector<24x8xf32> to vector<1x24x8xf32>
    %222 = tpu.concatenate %218, %219, %220, %221 in 0 : vector<1x24x8xf32>, vector<1x24x8xf32>, vector<1x24x8xf32>, vector<1x24x8xf32> -> vector<4x24x8xf32>
    %223 = arith.truncf %204 : vector<4x24x8xf32> to vector<4x24x8xbf16>
    %224 = arith.truncf %213 : vector<4x24x8xf32> to vector<4x24x8xbf16>
    "tpu.trace_start"() <{level = 10 : i32, message = "hnd,hmd->hnm"}> : () -> ()
    %cst_84 = arith.constant dense<0.000000e+00> : vector<4x24x24xf32>
    %225 = tpu.matmul %223, %224, %cst_84 {dimension_numbers = #tpu.dot_dimension_numbers<[2], [2], [1], [1], [0, 0, 0, 1, 1, 1], [0], [0]>} : vector<4x24x8xbf16>, vector<4x24x8xbf16>, vector<4x24x24xf32> -> vector<4x24x24xf32>
    "tpu.trace_stop"() : () -> ()
    %cst_85 = arith.constant 0.353553385 : f32
    %226 = vector.broadcast %cst_85 : f32 to vector<4x24x24xf32>
    %227 = arith.mulf %225, %226 : vector<4x24x24xf32>
    %228 = vector.shape_cast %11 : vector<24x24xf32> to vector<1x24x24xf32>
    %229 = vector.broadcast %228 : vector<1x24x24xf32> to vector<4x24x24xf32>
    %230 = arith.addf %227, %229 : vector<4x24x24xf32>
    %cst_86 = arith.constant dense<0xFF800000> : vector<4x24xf32>
    %231 = vector.multi_reduction <maximumf>, %230, %cst_86 [2] : vector<4x24x24xf32> to vector<4x24xf32>
    %232 = vector.shape_cast %231 : vector<4x24xf32> to vector<4x24x1xf32>
    %233 = vector.broadcast %232 : vector<4x24x1xf32> to vector<4x24x24xf32>
    %234 = arith.subf %230, %233 : vector<4x24x24xf32>
    %235 = math.exp %234 : vector<4x24x24xf32>
    %cst_87 = arith.constant dense<0.000000e+00> : vector<4x24xf32>
    %236 = vector.multi_reduction <add>, %235, %cst_87 [2] : vector<4x24x24xf32> to vector<4x24xf32>
    %237 = vector.shape_cast %236 : vector<4x24xf32> to vector<4x24x1xf32>
    %238 = tpu.reciprocal %237 {approx = true} : vector<4x24x1xf32> -> vector<4x24x1xf32>
    %239 = vector.broadcast %238 : vector<4x24x1xf32> to vector<4x24x24xf32>
    %240 = arith.mulf %235, %239 : vector<4x24x24xf32>
    %241 = arith.truncf %240 : vector<4x24x24xf32> to vector<4x24x24xbf16>
    %242 = arith.truncf %222 : vector<4x24x8xf32> to vector<4x24x8xbf16>
    "tpu.trace_start"() <{level = 10 : i32, message = "hnm,hmd->hnd"}> : () -> ()
    %cst_88 = arith.constant dense<0.000000e+00> : vector<4x24x8xf32>
    %243 = tpu.matmul %241, %242, %cst_88 {dimension_numbers = #tpu.dot_dimension_numbers<[2], [1], [1], [2], [0, 0, 0, 1, 1, 2], [0], [0]>} : vector<4x24x24xbf16>, vector<4x24x8xbf16>, vector<4x24x8xf32> -> vector<4x24x8xf32>
    "tpu.trace_stop"() : () -> ()
    %244 = vector.extract_strided_slice %243 {offsets = [0, 0, 0], sizes = [1, 24, 8], strides = [1, 1, 1]} : vector<4x24x8xf32> to vector<1x24x8xf32>
    %245 = vector.shape_cast %244 : vector<1x24x8xf32> to vector<24x8xf32>
    %246 = vector.extract_strided_slice %243 {offsets = [1, 0, 0], sizes = [1, 24, 8], strides = [1, 1, 1]} : vector<4x24x8xf32> to vector<1x24x8xf32>
    %247 = vector.shape_cast %246 : vector<1x24x8xf32> to vector<24x8xf32>
    %248 = vector.extract_strided_slice %243 {offsets = [2, 0, 0], sizes = [1, 24, 8], strides = [1, 1, 1]} : vector<4x24x8xf32> to vector<1x24x8xf32>
    %249 = vector.shape_cast %248 : vector<1x24x8xf32> to vector<24x8xf32>
    %250 = vector.extract_strided_slice %243 {offsets = [3, 0, 0], sizes = [1, 24, 8], strides = [1, 1, 1]} : vector<4x24x8xf32> to vector<1x24x8xf32>
    %251 = vector.shape_cast %250 : vector<1x24x8xf32> to vector<24x8xf32>
    %252 = tpu.concatenate %245, %247, %249, %251 in 1 : vector<24x8xf32>, vector<24x8xf32>, vector<24x8xf32>, vector<24x8xf32> -> vector<24x32xf32>
    %253 = arith.truncf %252 : vector<24x32xf32> to vector<24x32xbf16>
    %c1_89 = arith.constant 1 : index
    %c0_90 = arith.constant 0 : index
    %c0_91 = arith.constant 0 : index
    %254 = vector.load %arg8[%c1_89, %c0_90, %c0_91] : memref<2x32x32xbf16, #tpu.memory_space<vmem>>, vector<1x32x32xbf16>
    %255 = vector.shape_cast %254 : vector<1x32x32xbf16> to vector<32x32xbf16>
    %cst_92 = arith.constant dense<0.000000e+00> : vector<24x32xf32>
    %256 = tpu.matmul %253, %255, %cst_92 {dimension_numbers = #tpu.dot_dimension_numbers<[1], [0], [0], [1], [0, 0, 1, 1], [], []>} : vector<24x32xbf16>, vector<32x32xbf16>, vector<24x32xf32> -> vector<24x32xf32>
    %c1_93 = arith.constant 1 : index
    %c0_94 = arith.constant 0 : index
    %c0_95 = arith.constant 0 : index
    %257 = vector.load %arg9[%c1_93, %c0_94, %c0_95] : memref<2x1x32xf32, #tpu.memory_space<vmem>>, vector<1x1x32xf32>
    %258 = vector.shape_cast %257 : vector<1x1x32xf32> to vector<1x32xf32>
    %259 = vector.broadcast %258 : vector<1x32xf32> to vector<24x32xf32>
    %260 = arith.addf %256, %259 : vector<24x32xf32>
    %261 = arith.addf %163, %260 : vector<24x32xf32>
    %c1_96 = arith.constant 1 : index
    %c0_97 = arith.constant 0 : index
    %c0_98 = arith.constant 0 : index
    %262 = vector.load %arg10[%c1_96, %c0_97, %c0_98] : memref<2x1x32xf32, #tpu.memory_space<vmem>>, vector<1x1x32xf32>
    %263 = vector.shape_cast %262 : vector<1x1x32xf32> to vector<1x32xf32>
    %c1_99 = arith.constant 1 : index
    %c0_100 = arith.constant 0 : index
    %c0_101 = arith.constant 0 : index
    %264 = vector.load %arg11[%c1_99, %c0_100, %c0_101] : memref<2x1x32xf32, #tpu.memory_space<vmem>>, vector<1x1x32xf32>
    %265 = vector.shape_cast %264 : vector<1x1x32xf32> to vector<1x32xf32>
    %cst_102 = arith.constant dense<0.000000e+00> : vector<24xf32>
    %266 = vector.multi_reduction <add>, %261, %cst_102 [1] : vector<24x32xf32> to vector<24xf32>
    %267 = vector.shape_cast %266 : vector<24xf32> to vector<24x1xf32>
    %cst_103 = arith.constant 3.200000e+01 : f32
    %268 = vector.broadcast %cst_103 : f32 to vector<24x1xf32>
    %269 = arith.divf %267, %268 : vector<24x1xf32>
    %270 = vector.broadcast %269 : vector<24x1xf32> to vector<24x32xf32>
    %271 = arith.subf %261, %270 : vector<24x32xf32>
    %272 = arith.mulf %271, %271 : vector<24x32xf32>
    %cst_104 = arith.constant dense<0.000000e+00> : vector<24xf32>
    %273 = vector.multi_reduction <add>, %272, %cst_104 [1] : vector<24x32xf32> to vector<24xf32>
    %274 = vector.shape_cast %273 : vector<24xf32> to vector<24x1xf32>
    %cst_105 = arith.constant 3.200000e+01 : f32
    %275 = vector.broadcast %cst_105 : f32 to vector<24x1xf32>
    %276 = arith.divf %274, %275 : vector<24x1xf32>
    %cst_106 = arith.constant 9.99999997E-7 : f32
    %277 = vector.broadcast %cst_106 : f32 to vector<24x1xf32>
    %278 = arith.addf %276, %277 : vector<24x1xf32>
    %279 = math.rsqrt %278 : vector<24x1xf32>
    %280 = vector.broadcast %279 : vector<24x1xf32> to vector<24x32xf32>
    %281 = arith.mulf %271, %280 : vector<24x32xf32>
    %282 = vector.broadcast %263 : vector<1x32xf32> to vector<24x32xf32>
    %283 = arith.mulf %281, %282 : vector<24x32xf32>
    %284 = vector.broadcast %265 : vector<1x32xf32> to vector<24x32xf32>
    %285 = arith.addf %283, %284 : vector<24x32xf32>
    %286 = arith.truncf %285 : vector<24x32xf32> to vector<24x32xbf16>
    %c1_107 = arith.constant 1 : index
    %c0_108 = arith.constant 0 : index
    %c0_109 = arith.constant 0 : index
    %287 = vector.load %arg12[%c1_107, %c0_108, %c0_109] : memref<2x32x128xbf16, #tpu.memory_space<vmem>>, vector<1x32x128xbf16>
    %288 = vector.shape_cast %287 : vector<1x32x128xbf16> to vector<32x128xbf16>
    %cst_110 = arith.constant dense<0.000000e+00> : vector<24x128xf32>
    %289 = tpu.matmul %286, %288, %cst_110 {dimension_numbers = #tpu.dot_dimension_numbers<[1], [0], [0], [1], [0, 0, 1, 1], [], []>} : vector<24x32xbf16>, vector<32x128xbf16>, vector<24x128xf32> -> vector<24x128xf32>
    %c1_111 = arith.constant 1 : index
    %c0_112 = arith.constant 0 : index
    %c0_113 = arith.constant 0 : index
    %290 = vector.load %arg13[%c1_111, %c0_112, %c0_113] : memref<2x1x128xf32, #tpu.memory_space<vmem>>, vector<1x1x128xf32>
    %291 = vector.shape_cast %290 : vector<1x1x128xf32> to vector<1x128xf32>
    %292 = vector.broadcast %291 : vector<1x128xf32> to vector<24x128xf32>
    %293 = arith.addf %289, %292 : vector<24x128xf32>
    %cst_114 = arith.constant 5.000000e-01 : f32
    %294 = vector.broadcast %cst_114 : f32 to vector<24x128xf32>
    %295 = arith.mulf %294, %293 : vector<24x128xf32>
    %cst_115 = arith.constant 4.471500e-02 : f32
    %296 = vector.broadcast %cst_115 : f32 to vector<24x128xf32>
    %297 = arith.mulf %296, %293 : vector<24x128xf32>
    %298 = arith.mulf %297, %293 : vector<24x128xf32>
    %299 = arith.mulf %298, %293 : vector<24x128xf32>
    %300 = arith.addf %293, %299 : vector<24x128xf32>
    %cst_116 = arith.constant 0.797884583 : f32
    %301 = vector.broadcast %cst_116 : f32 to vector<24x128xf32>
    %302 = arith.mulf %301, %300 : vector<24x128xf32>
    %303 = math.tanh %302 : vector<24x128xf32>
    %cst_117 = arith.constant 1.000000e+00 : f32
    %304 = vector.broadcast %cst_117 : f32 to vector<24x128xf32>
    %305 = arith.addf %304, %303 : vector<24x128xf32>
    %306 = arith.mulf %295, %305 : vector<24x128xf32>
    %307 = arith.truncf %306 : vector<24x128xf32> to vector<24x128xbf16>
    %c1_118 = arith.constant 1 : index
    %c0_119 = arith.constant 0 : index
    %c0_120 = arith.constant 0 : index
    %308 = vector.load %arg14[%c1_118, %c0_119, %c0_120] : memref<2x128x32xbf16, #tpu.memory_space<vmem>>, vector<1x128x32xbf16>
    %309 = vector.shape_cast %308 : vector<1x128x32xbf16> to vector<128x32xbf16>
    %cst_121 = arith.constant dense<0.000000e+00> : vector<24x32xf32>
    %310 = tpu.matmul %307, %309, %cst_121 {dimension_numbers = #tpu.dot_dimension_numbers<[1], [0], [0], [1], [0, 0, 1, 1], [], []>} : vector<24x128xbf16>, vector<128x32xbf16>, vector<24x32xf32> -> vector<24x32xf32>
    %c1_122 = arith.constant 1 : index
    %c0_123 = arith.constant 0 : index
    %c0_124 = arith.constant 0 : index
    %311 = vector.load %arg15[%c1_122, %c0_123, %c0_124] : memref<2x1x32xf32, #tpu.memory_space<vmem>>, vector<1x1x32xf32>
    %312 = vector.shape_cast %311 : vector<1x1x32xf32> to vector<1x32xf32>
    %313 = vector.broadcast %312 : vector<1x32xf32> to vector<24x32xf32>
    %314 = arith.addf %310, %313 : vector<24x32xf32>
    %315 = arith.addf %261, %314 : vector<24x32xf32>
    %316 = vector.extract_strided_slice %315 {offsets = [0, 0], sizes = [1, 32], strides = [1, 1]} : vector<24x32xf32> to vector<1x32xf32>
    %c0_125 = arith.constant 0 : index
    %c0_126 = arith.constant 0 : index
    %317 = vector.load %arg16[%c0_125, %c0_126] : memref<1x32xf32, #tpu.memory_space<vmem>>, vector<1x32xf32>
    %c0_127 = arith.constant 0 : index
    %c0_128 = arith.constant 0 : index
    %318 = vector.load %arg17[%c0_127, %c0_128] : memref<1x32xf32, #tpu.memory_space<vmem>>, vector<1x32xf32>
    %cst_129 = arith.constant dense<0.000000e+00> : vector<1xf32>
    %319 = vector.multi_reduction <add>, %316, %cst_129 [1] : vector<1x32xf32> to vector<1xf32>
    %320 = vector.shape_cast %319 : vector<1xf32> to vector<1x1xf32>
    %cst_130 = arith.constant 3.200000e+01 : f32
    %321 = vector.broadcast %cst_130 : f32 to vector<1x1xf32>
    %322 = arith.divf %320, %321 : vector<1x1xf32>
    %323 = vector.broadcast %322 : vector<1x1xf32> to vector<1x32xf32>
    %324 = arith.subf %316, %323 : vector<1x32xf32>
    %325 = arith.mulf %324, %324 : vector<1x32xf32>
    %cst_131 = arith.constant dense<0.000000e+00> : vector<1xf32>
    %326 = vector.multi_reduction <add>, %325, %cst_131 [1] : vector<1x32xf32> to vector<1xf32>
    %327 = vector.shape_cast %326 : vector<1xf32> to vector<1x1xf32>
    %cst_132 = arith.constant 3.200000e+01 : f32
    %328 = vector.broadcast %cst_132 : f32 to vector<1x1xf32>
    %329 = arith.divf %327, %328 : vector<1x1xf32>
    %cst_133 = arith.constant 9.99999997E-7 : f32
    %330 = vector.broadcast %cst_133 : f32 to vector<1x1xf32>
    %331 = arith.addf %329, %330 : vector<1x1xf32>
    %332 = math.rsqrt %331 : vector<1x1xf32>
    %333 = vector.broadcast %332 : vector<1x1xf32> to vector<1x32xf32>
    %334 = arith.mulf %324, %333 : vector<1x32xf32>
    %335 = arith.mulf %334, %317 : vector<1x32xf32>
    %336 = arith.addf %335, %318 : vector<1x32xf32>
    %337 = arith.truncf %336 : vector<1x32xf32> to vector<1x32xbf16>
    %c0_134 = arith.constant 0 : index
    %c0_135 = arith.constant 0 : index
    %338 = vector.load %arg18[%c0_134, %c0_135] : memref<32x10xbf16, #tpu.memory_space<vmem>>, vector<32x10xbf16>
    %cst_136 = arith.constant dense<0.000000e+00> : vector<1x10xf32>
    %339 = tpu.matmul %337, %338, %cst_136 {dimension_numbers = #tpu.dot_dimension_numbers<[1], [0], [0], [1], [0, 0, 1, 1], [], []>} : vector<1x32xbf16>, vector<32x10xbf16>, vector<1x10xf32> -> vector<1x10xf32>
    %c0_137 = arith.constant 0 : index
    %c0_138 = arith.constant 0 : index
    %340 = vector.load %arg19[%c0_137, %c0_138] : memref<1x10xf32, #tpu.memory_space<vmem>>, vector<1x10xf32>
    %341 = arith.addf %339, %340 : vector<1x10xf32>
    %342 = vector.shape_cast %341 : vector<1x10xf32> to vector<1x1x10xf32>
    %c0_139 = arith.constant 0 : index
    %c0_140 = arith.constant 0 : index
    %c0_141 = arith.constant 0 : index
    %343 = vector.load %arg20[%c0_139, %c0_140, %c0_141] : memref<1x1x10xf32, #tpu.memory_space<vmem>>, vector<1x1x10xf32>
    tpu.vector_store %arg20[%c0_139, %c0_140, %c0_141], %342 {strides = array<i32>} : memref<1x1x10xf32, #tpu.memory_space<vmem>>, vector<1x1x10xf32>,
    return
  }
  func.func @transform_0(%arg0: i32) -> (i32, i32, i32) {
    %c0_i32 = arith.constant 0 : i32
    %c0_i32_0 = arith.constant 0 : i32
    %c0_i32_1 = arith.constant 0 : i32
    return %arg0, %c0_i32, %c0_i32_0 : i32, i32, i32
  }
  func.func @transform_1(%arg0: i32) -> (i32, i32) {
    %c0_i32 = arith.constant 0 : i32
    %c0_i32_0 = arith.constant 0 : i32
    %c0_i32_1 = arith.constant 0 : i32
    return %c0_i32, %c0_i32_0 : i32, i32
  }
  func.func @transform_2(%arg0: i32) -> (i32, i32) {
    %c0_i32 = arith.constant 0 : i32
    %c0_i32_0 = arith.constant 0 : i32
    %c0_i32_1 = arith.constant 0 : i32
    return %c0_i32, %c0_i32_0 : i32, i32
  }
  func.func @transform_3(%arg0: i32) -> (i32, i32, i32) {
    %c0_i32 = arith.constant 0 : i32
    %c0_i32_0 = arith.constant 0 : i32
    %c0_i32_1 = arith.constant 0 : i32
    %c0_i32_2 = arith.constant 0 : i32
    return %c0_i32, %c0_i32_0, %c0_i32_1 : i32, i32, i32
  }
  func.func @transform_4(%arg0: i32) -> (i32, i32, i32) {
    %c0_i32 = arith.constant 0 : i32
    %c0_i32_0 = arith.constant 0 : i32
    %c0_i32_1 = arith.constant 0 : i32
    %c0_i32_2 = arith.constant 0 : i32
    return %c0_i32, %c0_i32_0, %c0_i32_1 : i32, i32, i32
  }
  func.func @transform_5(%arg0: i32) -> (i32, i32, i32) {
    %c0_i32 = arith.constant 0 : i32
    %c0_i32_0 = arith.constant 0 : i32
    %c0_i32_1 = arith.constant 0 : i32
    %c0_i32_2 = arith.constant 0 : i32
    return %c0_i32, %c0_i32_0, %c0_i32_1 : i32, i32, i32
  }
  func.func @transform_6(%arg0: i32) -> (i32, i32, i32) {
    %c0_i32 = arith.constant 0 : i32
    %c0_i32_0 = arith.constant 0 : i32
    %c0_i32_1 = arith.constant 0 : i32
    %c0_i32_2 = arith.constant 0 : i32
    return %c0_i32, %c0_i32_0, %c0_i32_1 : i32, i32, i32
  }
  func.func @transform_7(%arg0: i32) -> (i32, i32, i32) {
    %c0_i32 = arith.constant 0 : i32
    %c0_i32_0 = arith.constant 0 : i32
    %c0_i32_1 = arith.constant 0 : i32
    %c0_i32_2 = arith.constant 0 : i32
    return %c0_i32, %c0_i32_0, %c0_i32_1 : i32, i32, i32
  }
  func.func @transform_8(%arg0: i32) -> (i32, i32, i32) {
    %c0_i32 = arith.constant 0 : i32
    %c0_i32_0 = arith.constant 0 : i32
    %c0_i32_1 = arith.constant 0 : i32
    %c0_i32_2 = arith.constant 0 : i32
    return %c0_i32, %c0_i32_0, %c0_i32_1 : i32, i32, i32
  }
  func.func @transform_9(%arg0: i32) -> (i32, i32, i32) {
    %c0_i32 = arith.constant 0 : i32
    %c0_i32_0 = arith.constant 0 : i32
    %c0_i32_1 = arith.constant 0 : i32
    %c0_i32_2 = arith.constant 0 : i32
    return %c0_i32, %c0_i32_0, %c0_i32_1 : i32, i32, i32
  }
  func.func @transform_10(%arg0: i32) -> (i32, i32, i32) {
    %c0_i32 = arith.constant 0 : i32
    %c0_i32_0 = arith.constant 0 : i32
    %c0_i32_1 = arith.constant 0 : i32
    %c0_i32_2 = arith.constant 0 : i32
    return %c0_i32, %c0_i32_0, %c0_i32_1 : i32, i32, i32
  }
  func.func @transform_11(%arg0: i32) -> (i32, i32, i32) {
    %c0_i32 = arith.constant 0 : i32
    %c0_i32_0 = arith.constant 0 : i32
    %c0_i32_1 = arith.constant 0 : i32
    %c0_i32_2 = arith.constant 0 : i32
    return %c0_i32, %c0_i32_0, %c0_i32_1 : i32, i32, i32
  }
  func.func @transform_12(%arg0: i32) -> (i32, i32, i32) {
    %c0_i32 = arith.constant 0 : i32
    %c0_i32_0 = arith.constant 0 : i32
    %c0_i32_1 = arith.constant 0 : i32
    %c0_i32_2 = arith.constant 0 : i32
    return %c0_i32, %c0_i32_0, %c0_i32_1 : i32, i32, i32
  }
  func.func @transform_13(%arg0: i32) -> (i32, i32, i32) {
    %c0_i32 = arith.constant 0 : i32
    %c0_i32_0 = arith.constant 0 : i32
    %c0_i32_1 = arith.constant 0 : i32
    %c0_i32_2 = arith.constant 0 : i32
    return %c0_i32, %c0_i32_0, %c0_i32_1 : i32, i32, i32
  }
  func.func @transform_14(%arg0: i32) -> (i32, i32, i32) {
    %c0_i32 = arith.constant 0 : i32
    %c0_i32_0 = arith.constant 0 : i32
    %c0_i32_1 = arith.constant 0 : i32
    %c0_i32_2 = arith.constant 0 : i32
    return %c0_i32, %c0_i32_0, %c0_i32_1 : i32, i32, i32
  }
  func.func @transform_15(%arg0: i32) -> (i32, i32) {
    %c0_i32 = arith.constant 0 : i32
    %c0_i32_0 = arith.constant 0 : i32
    %c0_i32_1 = arith.constant 0 : i32
    return %c0_i32, %c0_i32_0 : i32, i32
  }
  func.func @transform_16(%arg0: i32) -> (i32, i32) {
    %c0_i32 = arith.constant 0 : i32
    %c0_i32_0 = arith.constant 0 : i32
    %c0_i32_1 = arith.constant 0 : i32
    return %c0_i32, %c0_i32_0 : i32, i32
  }
  func.func @transform_17(%arg0: i32) -> (i32, i32) {
    %c0_i32 = arith.constant 0 : i32
    %c0_i32_0 = arith.constant 0 : i32
    %c0_i32_1 = arith.constant 0 : i32
    return %c0_i32, %c0_i32_0 : i32, i32
  }
  func.func @transform_18(%arg0: i32) -> (i32, i32) {
    %c0_i32 = arith.constant 0 : i32
    %c0_i32_0 = arith.constant 0 : i32
    %c0_i32_1 = arith.constant 0 : i32
    return %c0_i32, %c0_i32_0 : i32, i32
  }
  func.func @transform_19(%arg0: i32) -> (i32, i32, i32) {
    %c0_i32 = arith.constant 0 : i32
    %c0_i32_0 = arith.constant 0 : i32
    %c0_i32_1 = arith.constant 0 : i32
    return %arg0, %c0_i32, %c0_i32_0 : i32, i32, i32
  }
}

</mosaic_0001>

<llo_original>
// kernel: vit_forward.1
$region0: #{vit_forward.1}
  #allocation0 [shape = 'u32[]', space=smem, size = 0x4, offset = 0x4, fixed_abs, tag = 'smem constant byte address 0x4 - core index']
  #allocation1 [shape = 'u32[144,128]{1,0:T(1,128)}', space=vmem, size = 0x12000, scoped, tag = 'internal scratch']
  %s0 = inlined_call_operand.vmem [shape: bf16[2,24,48], index: 0, kind: input, shape index: {}]
  %s1 = inlined_call_operand.vmem [shape: bf16[48,32], index: 1, kind: input, shape index: {}]
  %s2 = inlined_call_operand.vmem [shape: f32[24,32], index: 2, kind: input, shape index: {}]
  %s3 = inlined_call_operand.vmem [shape: f32[2,1,32], index: 3, kind: input, shape index: {}]
  %s4 = inlined_call_operand.vmem [shape: f32[2,1,32], index: 4, kind: input, shape index: {}]
  %s5 = inlined_call_operand.vmem [shape: bf16[2,32,96], index: 5, kind: input, shape index: {}]
  %s6 = inlined_call_operand.vmem [shape: f32[2,1,96], index: 6, kind: input, shape index: {}]
  %s7 = inlined_call_operand.vmem [shape: bf16[2,32,32], index: 7, kind: input, shape index: {}]
  %s8 = inlined_call_operand.vmem [shape: f32[2,1,32], index: 8, kind: input, shape index: {}]
  %s9 = inlined_call_operand.vmem [shape: f32[2,1,32], index: 9, kind: input, shape index: {}]
  %s10 = inlined_call_operand.vmem [shape: f32[2,1,32], index: 10, kind: input, shape index: {}]
  %s11 = inlined_call_operand.vmem [shape: bf16[2,32,128], index: 11, kind: input, shape index: {}]
  %s12 = inlined_call_operand.vmem [shape: f32[2,1,128], index: 12, kind: input, shape index: {}]
  %s13 = inlined_call_operand.vmem [shape: bf16[2,128,32], index: 13, kind: input, shape index: {}]
  %s14 = inlined_call_operand.vmem [shape: f32[2,1,32], index: 14, kind: input, shape index: {}]
  %s15 = inlined_call_operand.vmem [shape: f32[1,32], index: 15, kind: input, shape index: {}]
  %s16 = inlined_call_operand.vmem [shape: f32[1,32], index: 16, kind: input, shape index: {}]
  %s17 = inlined_call_operand.vmem [shape: bf16[32,10], index: 17, kind: input, shape index: {}]
  %s18 = inlined_call_operand.vmem [shape: f32[1,10], index: 18, kind: input, shape index: {}]
  %s19 = inlined_call_operand.hbm [shape: f32[2,1,10], index: 19, kind: output, shape index: {}]
  %s20 = sld [smem:[#allocation0]]
  $region109: #{vit_forward.1} parent=0
    _
  %s22 = ssub.s32 1, %s20
  %s23 = scalar_select 0, %s22, %s20
  $region1: #{vit_forward.1} parent=0
    #allocation2 [shape = 'u8[1024]{0}', space=vmem, size = 0x400, scoped, tag = 'output window, operand 0']
    #allocation3 [shape = 's32[2]{0}', space=sflag, size = 0x8, scoped, tag = 'scoped memory for vit_forward.1']
    %24 = vsyncpa [#allocation3], 0
    %s25 = scalar_lea.sflag [#allocation3], 1
    %26 = vsyncpa %s25, 0
    loop: start=0, step=1, limit=4
    $region2: #{vit_forward.1} parent=1 // loop_pre_header
      _
    $region3: #{vit_forward.1} parent=1 // loop_header
      %s28 = sphi 0, %s32
      %p29 = scmp.ge.s32.totalorder %s28, 4
      %s38 = sphi 0, %s40
      %s41 = sphi 0, %s38
      %s42 = sphi 0, %s41
      %s58 = sphi 0, %s42
      %s62 = sphi 0, %s62
      %s64 = sphi 0, %s62
      %s65 = sphi 0, %s64
      %s79 = sphi 0, %s65
      %s83 = sphi 0, %s83
      %s85 = sphi 0, %s83
      %s86 = sphi 0, %s85
      %s100 = sphi 0, %s86
      %s104 = sphi 0, %s104
      %s106 = sphi 0, %s104
      %s107 = sphi 0, %s106
      %s121 = sphi 0, %s107
      %s125 = sphi 0, %s125
      %s127 = sphi 0, %s125
      %s128 = sphi 0, %s127
      %s142 = sphi 0, %s128
      %s146 = sphi 0, %s146
      %s148 = sphi 0, %s146
      %s149 = sphi 0, %s148
      %s163 = sphi 0, %s149
      %s167 = sphi 0, %s167
      %s169 = sphi 0, %s167
      %s170 = sphi 0, %s169
      %s184 = sphi 0, %s170
      %s188 = sphi 0, %s188
      %s190 = sphi 0, %s188
      %s191 = sphi 0, %s190
      %s205 = sphi 0, %s191
      %s209 = sphi 0, %s209
      %s211 = sphi 0, %s209
      %s212 = sphi 0, %s211
      %s226 = sphi 0, %s212
      %s230 = sphi 0, %s230
      %s232 = sphi 0, %s230
      %s233 = sphi 0, %s232
      %s247 = sphi 0, %s233
      %s251 = sphi 0, %s251
      %s253 = sphi 0, %s251
      %s254 = sphi 0, %s253
      %s268 = sphi 0, %s254
      %s272 = sphi 0, %s272
      %s274 = sphi 0, %s272
      %s275 = sphi 0, %s274
      %s289 = sphi 0, %s275
      %s293 = sphi 0, %s293
      %s295 = sphi 0, %s293
      %s296 = sphi 0, %s295
      %s310 = sphi 0, %s296
      %s314 = sphi 0, %s314
      %s316 = sphi 0, %s314
      %s317 = sphi 0, %s316
      %s331 = sphi 0, %s317
      %s335 = sphi 0, %s335
      %s337 = sphi 0, %s335
      %s338 = sphi 0, %s337
      %s352 = sphi 0, %s338
      %s356 = sphi 0, %s356
      %s358 = sphi 0, %s356
      %s359 = sphi 0, %s358
      %s373 = sphi 0, %s359
      %s377 = sphi 0, %s377
      %s379 = sphi 0, %s377
      %s380 = sphi 0, %s379
      %s394 = sphi 0, %s380
      %s398 = sphi 0, %s398
      %s400 = sphi 0, %s398
      %s401 = sphi 0, %s400
      %s415 = sphi 0, %s401
      %s419 = sphi 0, %s419
      %s421 = sphi 0, %s419
      %s422 = sphi 0, %s421
      %s436 = sphi 0, %s422
      %s442 = sphi 0, %s444
      %s445 = sphi 0, %s442
      %s446 = sphi 0, %s445
      %s462 = sphi 0, %s446
    $region4: #{vit_forward.1} parent=1 // loop_header_branch
      %31 = sbr.rel (%p29) target = $region8
    $region5: #{vit_forward.1} parent=1 // loop_body
      %s33 = ssub.s32 %s28, 1
      %s34 = ssub.s32 %s28, 2
      %s35 = sadd.s32 %s28, 1
      %s36 = ssub.s32 %s28, %s35
      %p37 = scmp.eq.s32.totalorder %s36, 0
      %s39 = sadd.s32 %s38, 1
      %s40 = scalar_select %p37, %s38, %s39
      %p43 = pneg %p37
      %p44 = scmp.eq.s32.totalorder %s28, 1
      %p45 = por %p43, %p44
      %p46 = scmp.ne.s32.totalorder %s38, %s41
      %p47 = scmp.eq.s32.totalorder %s28, 0
      %p48 = por %p46, %p47
      %p49 = scmp.ne.s32.totalorder %s38, %s41
      %p50 = scmp.eq.s32.totalorder %s33, 1
      %p51 = por %p49, %p50
      %p52 = scmp.ne.s32.totalorder %s41, %s42
      %p53 = scmp.eq.s32.totalorder %s33, 0
      %p54 = por %p52, %p53
      %p55 = scmp.ne.s32.totalorder %s41, %s42
      %p56 = scmp.eq.s32.totalorder %s34, 1
      %p57 = por %p55, %p56
      %p59 = scmp.ne.s32.totalorder %s42, %s58
      %p60 = scmp.eq.s32.totalorder %s34, 0
      %p61 = por %p59, %p60
      %s63 = sadd.s32 %s62, 1
      %p66 = scmp.eq.s32.totalorder %s28, 1
      %p67 = scmp.ne.s32.totalorder %s62, %s64
      %p68 = scmp.eq.s32.totalorder %s28, 0
      %p69 = por %p67, %p68
      %p70 = scmp.ne.s32.totalorder %s62, %s64
      %p71 = scmp.eq.s32.totalorder %s33, 1
      %p72 = por %p70, %p71
      %p73 = scmp.ne.s32.totalorder %s64, %s65
      %p74 = scmp.eq.s32.totalorder %s33, 0
      %p75 = por %p73, %p74
      %p76 = scmp.ne.s32.totalorder %s64, %s65
      %p77 = scmp.eq.s32.totalorder %s34, 1
      %p78 = por %p76, %p77
      %p80 = scmp.ne.s32.totalorder %s65, %s79
      %p81 = scmp.eq.s32.totalorder %s34, 0
      %p82 = por %p80, %p81
      %s84 = sadd.s32 %s83, 1
      %p87 = scmp.eq.s32.totalorder %s28, 1
      %p88 = scmp.ne.s32.totalorder %s83, %s85
      %p89 = scmp.eq.s32.totalorder %s28, 0
      %p90 = por %p88, %p89
      %p91 = scmp.ne.s32.totalorder %s83, %s85
      %p92 = scmp.eq.s32.totalorder %s33, 1
      %p93 = por %p91, %p92
      %p94 = scmp.ne.s32.totalorder %s85, %s86
      %p95 = scmp.eq.s32.totalorder %s33, 0
      %p96 = por %p94, %p95
      %p97 = scmp.ne.s32.totalorder %s85, %s86
      %p98 = scmp.eq.s32.totalorder %s34, 1
      %p99 = por %p97, %p98
      %p101 = scmp.ne.s32.totalorder %s86, %s100
      %p102 = scmp.eq.s32.totalorder %s34, 0
      %p103 = por %p101, %p102
      %s105 = sadd.s32 %s104, 1
      %p108 = scmp.eq.s32.totalorder %s28, 1
      %p109 = scmp.ne.s32.totalorder %s104, %s106
      %p110 = scmp.eq.s32.totalorder %s28, 0
      %p111 = por %p109, %p110
      %p112 = scmp.ne.s32.totalorder %s104, %s106
      %p113 = scmp.eq.s32.totalorder %s33, 1
      %p114 = por %p112, %p113
      %p115 = scmp.ne.s32.totalorder %s106, %s107
      %p116 = scmp.eq.s32.totalorder %s33, 0
      %p117 = por %p115, %p116
      %p118 = scmp.ne.s32.totalorder %s106, %s107
      %p119 = scmp.eq.s32.totalorder %s34, 1
      %p120 = por %p118, %p119
      %p122 = scmp.ne.s32.totalorder %s107, %s121
      %p123 = scmp.eq.s32.totalorder %s34, 0
      %p124 = por %p122, %p123
      %s126 = sadd.s32 %s125, 1
      %p129 = scmp.eq.s32.totalorder %s28, 1
      %p130 = scmp.ne.s32.totalorder %s125, %s127
      %p131 = scmp.eq.s32.totalorder %s28, 0
      %p132 = por %p130, %p131
      %p133 = scmp.ne.s32.totalorder %s125, %s127
      %p134 = scmp.eq.s32.totalorder %s33, 1
      %p135 = por %p133, %p134
      %p136 = scmp.ne.s32.totalorder %s127, %s128
      %p137 = scmp.eq.s32.totalorder %s33, 0
      %p138 = por %p136, %p137
      %p139 = scmp.ne.s32.totalorder %s127, %s128
      %p140 = scmp.eq.s32.totalorder %s34, 1
      %p141 = por %p139, %p140
      %p143 = scmp.ne.s32.totalorder %s128, %s142
      %p144 = scmp.eq.s32.totalorder %s34, 0
      %p145 = por %p143, %p144
      %s147 = sadd.s32 %s146, 1
      %p150 = scmp.eq.s32.totalorder %s28, 1
      %p151 = scmp.ne.s32.totalorder %s146, %s148
      %p152 = scmp.eq.s32.totalorder %s28, 0
      %p153 = por %p151, %p152
      %p154 = scmp.ne.s32.totalorder %s146, %s148
      %p155 = scmp.eq.s32.totalorder %s33, 1
      %p156 = por %p154, %p155
      %p157 = scmp.ne.s32.totalorder %s148, %s149
      %p158 = scmp.eq.s32.totalorder %s33, 0
      %p159 = por %p157, %p158
      %p160 = scmp.ne.s32.totalorder %s148, %s149
      %p161 = scmp.eq.s32.totalorder %s34, 1
      %p162 = por %p160, %p161
      %p164 = scmp.ne.s32.totalorder %s149, %s163
      %p165 = scmp.eq.s32.totalorder %s34, 0
      %p166 = por %p164, %p165
      %s168 = sadd.s32 %s167, 1
      %p171 = scmp.eq.s32.totalorder %s28, 1
      %p172 = scmp.ne.s32.totalorder %s167, %s169
      %p173 = scmp.eq.s32.totalorder %s28, 0
      %p174 = por %p172, %p173
      %p175 = scmp.ne.s32.totalorder %s167, %s169
      %p176 = scmp.eq.s32.totalorder %s33, 1
      %p177 = por %p175, %p176
      %p178 = scmp.ne.s32.totalorder %s169, %s170
      %p179 = scmp.eq.s32.totalorder %s33, 0
      %p180 = por %p178, %p179
      %p181 = scmp.ne.s32.totalorder %s169, %s170
      %p182 = scmp.eq.s32.totalorder %s34, 1
      %p183 = por %p181, %p182
      %p185 = scmp.ne.s32.totalorder %s170, %s184
      %p186 = scmp.eq.s32.totalorder %s34, 0
      %p187 = por %p185, %p186
      %s189 = sadd.s32 %s188, 1
      %p192 = scmp.eq.s32.totalorder %s28, 1
      %p193 = scmp.ne.s32.totalorder %s188, %s190
      %p194 = scmp.eq.s32.totalorder %s28, 0
      %p195 = por %p193, %p194
      %p196 = scmp.ne.s32.totalorder %s188, %s190
      %p197 = scmp.eq.s32.totalorder %s33, 1
      %p198 = por %p196, %p197
      %p199 = scmp.ne.s32.totalorder %s190, %s191
      %p200 = scmp.eq.s32.totalorder %s33, 0
      %p201 = por %p199, %p200
      %p202 = scmp.ne.s32.totalorder %s190, %s191
      %p203 = scmp.eq.s32.totalorder %s34, 1
      %p204 = por %p202, %p203
      %p206 = scmp.ne.s32.totalorder %s191, %s205
      %p207 = scmp.eq.s32.totalorder %s34, 0
      %p208 = por %p206, %p207
      %s210 = sadd.s32 %s209, 1
      %p213 = scmp.eq.s32.totalorder %s28, 1
      %p214 = scmp.ne.s32.totalorder %s209, %s211
      %p215 = scmp.eq.s32.totalorder %s28, 0
      %p216 = por %p214, %p215
      %p217 = scmp.ne.s32.totalorder %s209, %s211
      %p218 = scmp.eq.s32.totalorder %s33, 1
      %p219 = por %p217, %p218
      %p220 = scmp.ne.s32.totalorder %s211, %s212
      %p221 = scmp.eq.s32.totalorder %s33, 0
      %p222 = por %p220, %p221
      %p223 = scmp.ne.s32.totalorder %s211, %s212
      %p224 = scmp.eq.s32.totalorder %s34, 1
      %p225 = por %p223, %p224
      %p227 = scmp.ne.s32.totalorder %s212, %s226
      %p228 = scmp.eq.s32.totalorder %s34, 0
      %p229 = por %p227, %p228
      %s231 = sadd.s32 %s230, 1
      %p234 = scmp.eq.s32.totalorder %s28, 1
      %p235 = scmp.ne.s32.totalorder %s230, %s232
      %p236 = scmp.eq.s32.totalorder %s28, 0
      %p237 = por %p235, %p236
      %p238 = scmp.ne.s32.totalorder %s230, %s232
      %p239 = scmp.eq.s32.totalorder %s33, 1
      %p240 = por %p238, %p239
      %p241 = scmp.ne.s32.totalorder %s232, %s233
      %p242 = scmp.eq.s32.totalorder %s33, 0
      %p243 = por %p241, %p242
      %p244 = scmp.ne.s32.totalorder %s232, %s233
      %p245 = scmp.eq.s32.totalorder %s34, 1
      %p246 = por %p244, %p245
      %p248 = scmp.ne.s32.totalorder %s233, %s247
      %p249 = scmp.eq.s32.totalorder %s34, 0
      %p250 = por %p248, %p249
      %s252 = sadd.s32 %s251, 1
      %p255 = scmp.eq.s32.totalorder %s28, 1
      %p256 = scmp.ne.s32.totalorder %s251, %s253
      %p257 = scmp.eq.s32.totalorder %s28, 0
      %p258 = por %p256, %p257
      %p259 = scmp.ne.s32.totalorder %s251, %s253
      %p260 = scmp.eq.s32.totalorder %s33, 1
      %p261 = por %p259, %p260
      %p262 = scmp.ne.s32.totalorder %s253, %s254
      %p263 = scmp.eq.s32.totalorder %s33, 0
      %p264 = por %p262, %p263
      %p265 = scmp.ne.s32.totalorder %s253, %s254
      %p266 = scmp.eq.s32.totalorder %s34, 1
      %p267 = por %p265, %p266
      %p269 = scmp.ne.s32.totalorder %s254, %s268
      %p270 = scmp.eq.s32.totalorder %s34, 0
      %p271 = por %p269, %p270
      %s273 = sadd.s32 %s272, 1
      %p276 = scmp.eq.s32.totalorder %s28, 1
      %p277 = scmp.ne.s32.totalorder %s272, %s274
      %p278 = scmp.eq.s32.totalorder %s28, 0
      %p279 = por %p277, %p278
      %p280 = scmp.ne.s32.totalorder %s272, %s274
      %p281 = scmp.eq.s32.totalorder %s33, 1
      %p282 = por %p280, %p281
      %p283 = scmp.ne.s32.totalorder %s274, %s275
      %p284 = scmp.eq.s32.totalorder %s33, 0
      %p285 = por %p283, %p284
      %p286 = scmp.ne.s32.totalorder %s274, %s275
      %p287 = scmp.eq.s32.totalorder %s34, 1
      %p288 = por %p286, %p287
      %p290 = scmp.ne.s32.totalorder %s275, %s289
      %p291 = scmp.eq.s32.totalorder %s34, 0
      %p292 = por %p290, %p291
      %s294 = sadd.s32 %s293, 1
      %p297 = scmp.eq.s32.totalorder %s28, 1
      %p298 = scmp.ne.s32.totalorder %s293, %s295
      %p299 = scmp.eq.s32.totalorder %s28, 0
      %p300 = por %p298, %p299
      %p301 = scmp.ne.s32.totalorder %s293, %s295
      %p302 = scmp.eq.s32.totalorder %s33, 1
      %p303 = por %p301, %p302
      %p304 = scmp.ne.s32.totalorder %s295, %s296
      %p305 = scmp.eq.s32.totalorder %s33, 0
      %p306 = por %p304, %p305
      %p307 = scmp.ne.s32.totalorder %s295, %s296
      %p308 = scmp.eq.s32.totalorder %s34, 1
      %p309 = por %p307, %p308
      %p311 = scmp.ne.s32.totalorder %s296, %s310
      %p312 = scmp.eq.s32.totalorder %s34, 0
      %p313 = por %p311, %p312
      %s315 = sadd.s32 %s314, 1
      %p318 = scmp.eq.s32.totalorder %s28, 1
      %p319 = scmp.ne.s32.totalorder %s314, %s316
      %p320 = scmp.eq.s32.totalorder %s28, 0
      %p321 = por %p319, %p320
      %p322 = scmp.ne.s32.totalorder %s314, %s316
      %p323 = scmp.eq.s32.totalorder %s33, 1
      %p324 = por %p322, %p323
      %p325 = scmp.ne.s32.totalorder %s316, %s317
      %p326 = scmp.eq.s32.totalorder %s33, 0
      %p327 = por %p325, %p326
      %p328 = scmp.ne.s32.totalorder %s316, %s317
      %p329 = scmp.eq.s32.totalorder %s34, 1
      %p330 = por %p328, %p329
      %p332 = scmp.ne.s32.totalorder %s317, %s331
      %p333 = scmp.eq.s32.totalorder %s34, 0
      %p334 = por %p332, %p333
      %s336 = sadd.s32 %s335, 1
      %p339 = scmp.eq.s32.totalorder %s28, 1
      %p340 = scmp.ne.s32.totalorder %s335, %s337
      %p341 = scmp.eq.s32.totalorder %s28, 0
      %p342 = por %p340, %p341
      %p343 = scmp.ne.s32.totalorder %s335, %s337
      %p344 = scmp.eq.s32.totalorder %s33, 1
      %p345 = por %p343, %p344
      %p346 = scmp.ne.s32.totalorder %s337, %s338
      %p347 = scmp.eq.s32.totalorder %s33, 0
      %p348 = por %p346, %p347
      %p349 = scmp.ne.s32.totalorder %s337, %s338
      %p350 = scmp.eq.s32.totalorder %s34, 1
      %p351 = por %p349, %p350
      %p353 = scmp.ne.s32.totalorder %s338, %s352
      %p354 = scmp.eq.s32.totalorder %s34, 0
      %p355 = por %p353, %p354
      %s357 = sadd.s32 %s356, 1
      %p360 = scmp.eq.s32.totalorder %s28, 1
      %p361 = scmp.ne.s32.totalorder %s356, %s358
      %p362 = scmp.eq.s32.totalorder %s28, 0
      %p363 = por %p361, %p362
      %p364 = scmp.ne.s32.totalorder %s356, %s358
      %p365 = scmp.eq.s32.totalorder %s33, 1
      %p366 = por %p364, %p365
      %p367 = scmp.ne.s32.totalorder %s358, %s359
      %p368 = scmp.eq.s32.totalorder %s33, 0
      %p369 = por %p367, %p368
      %p370 = scmp.ne.s32.totalorder %s358, %s359
      %p371 = scmp.eq.s32.totalorder %s34, 1
      %p372 = por %p370, %p371
      %p374 = scmp.ne.s32.totalorder %s359, %s373
      %p375 = scmp.eq.s32.totalorder %s34, 0
      %p376 = por %p374, %p375
      %s378 = sadd.s32 %s377, 1
      %p381 = scmp.eq.s32.totalorder %s28, 1
      %p382 = scmp.ne.s32.totalorder %s377, %s379
      %p383 = scmp.eq.s32.totalorder %s28, 0
      %p384 = por %p382, %p383
      %p385 = scmp.ne.s32.totalorder %s377, %s379
      %p386 = scmp.eq.s32.totalorder %s33, 1
      %p387 = por %p385, %p386
      %p388 = scmp.ne.s32.totalorder %s379, %s380
      %p389 = scmp.eq.s32.totalorder %s33, 0
      %p390 = por %p388, %p389
      %p391 = scmp.ne.s32.totalorder %s379, %s380
      %p392 = scmp.eq.s32.totalorder %s34, 1
      %p393 = por %p391, %p392
      %p395 = scmp.ne.s32.totalorder %s380, %s394
      %p396 = scmp.eq.s32.totalorder %s34, 0
      %p397 = por %p395, %p396
      %s399 = sadd.s32 %s398, 1
      %p402 = scmp.eq.s32.totalorder %s28, 1
      %p403 = scmp.ne.s32.totalorder %s398, %s400
      %p404 = scmp.eq.s32.totalorder %s28, 0
      %p405 = por %p403, %p404
      %p406 = scmp.ne.s32.totalorder %s398, %s400
      %p407 = scmp.eq.s32.totalorder %s33, 1
      %p408 = por %p406, %p407
      %p409 = scmp.ne.s32.totalorder %s400, %s401
      %p410 = scmp.eq.s32.totalorder %s33, 0
      %p411 = por %p409, %p410
      %p412 = scmp.ne.s32.totalorder %s400, %s401
      %p413 = scmp.eq.s32.totalorder %s34, 1
      %p414 = por %p412, %p413
      %p416 = scmp.ne.s32.totalorder %s401, %s415
      %p417 = scmp.eq.s32.totalorder %s34, 0
      %p418 = por %p416, %p417
      %s420 = sadd.s32 %s419, 1
      %p423 = scmp.eq.s32.totalorder %s28, 1
      %p424 = scmp.ne.s32.totalorder %s419, %s421
      %p425 = scmp.eq.s32.totalorder %s28, 0
      %p426 = por %p424, %p425
      %p427 = scmp.ne.s32.totalorder %s419, %s421
      %p428 = scmp.eq.s32.totalorder %s33, 1
      %p429 = por %p427, %p428
      %p430 = scmp.ne.s32.totalorder %s421, %s422
      %p431 = scmp.eq.s32.totalorder %s33, 0
      %p432 = por %p430, %p431
      %p433 = scmp.ne.s32.totalorder %s421, %s422
      %p434 = scmp.eq.s32.totalorder %s34, 1
      %p435 = por %p433, %p434
      %p437 = scmp.ne.s32.totalorder %s422, %s436
      %p438 = scmp.eq.s32.totalorder %s34, 0
      %p439 = por %p437, %p438
      %s440 = ssub.s32 %s28, %s35
      %p441 = scmp.eq.s32.totalorder %s440, 0
      %s443 = sadd.s32 %s442, 1
      %s444 = scalar_select %p441, %s442, %s443
      %p447 = pneg %p441
      %p448 = scmp.eq.s32.totalorder %s28, 1
      %p449 = por %p447, %p448
      %p450 = scmp.ne.s32.totalorder %s442, %s445
      %p451 = scmp.eq.s32.totalorder %s28, 0
      %p452 = por %p450, %p451
      %p453 = scmp.ne.s32.totalorder %s442, %s445
      %p454 = scmp.eq.s32.totalorder %s33, 1
      %p455 = por %p453, %p454
      %p456 = scmp.ne.s32.totalorder %s445, %s446
      %p457 = scmp.eq.s32.totalorder %s33, 0
      %p458 = por %p456, %p457
      %p459 = scmp.ne.s32.totalorder %s445, %s446
      %p460 = scmp.eq.s32.totalorder %s34, 1
      %p461 = por %p459, %p460
      %p463 = scmp.ne.s32.totalorder %s446, %s462
      %p464 = scmp.eq.s32.totalorder %s34, 0
      %p465 = por %p463, %p464
      %p466 = scmp.le.s32.totalorder 1, %s28
      %p467 = scmp.lt.s32.totalorder %s28, 3
      %p468 = pnand %p466, %p467
      %p469 = pneg %p468
      // Predicated region
      $region9: #{vit_forward.1} parent=5 // pred_check
        _
      $region10: #{vit_forward.1} parent=5 // pred_check_branch
        %471 = sbr.rel (%p468) target = $region12
      $region11: #{vit_forward.1} parent=5 // pred_region
        %s472 = ssub.s32 %s28, 1
        // Predicated region
        $region13: #{vit_forward.1} parent=11 // pred_check
          %p473 = pneg %p75
        $region14: #{vit_forward.1} parent=11 // pred_check_branch
          %475 = sbr.rel (%p473) target = $region16
        $region15: #{vit_forward.1} parent=11 // pred_region
          _
        $region16: #{vit_forward.1} parent=11 // pred_fallthru
          _
        // Predicated region
        $region17: #{vit_forward.1} parent=11 // pred_check
          %p476 = pneg %p96
        $region18: #{vit_forward.1} parent=11 // pred_check_branch
          %478 = sbr.rel (%p476) target = $region20
        $region19: #{vit_forward.1} parent=11 // pred_region
          _
        $region20: #{vit_forward.1} parent=11 // pred_fallthru
          _
        // Predicated region
        $region21: #{vit_forward.1} parent=11 // pred_check
          %p479 = pneg %p117
        $region22: #{vit_forward.1} parent=11 // pred_check_branch
          %481 = sbr.rel (%p479) target = $region24
        $region23: #{vit_forward.1} parent=11 // pred_region
          _
        $region24: #{vit_forward.1} parent=11 // pred_fallthru
          _
        // Predicated region
        $region25: #{vit_forward.1} parent=11 // pred_check
          %p482 = pneg %p138
        $region26: #{vit_forward.1} parent=11 // pred_check_branch
          %484 = sbr.rel (%p482) target = $region28
        $region27: #{vit_forward.1} parent=11 // pred_region
          _
        $region28: #{vit_forward.1} parent=11 // pred_fallthru
          _
        // Predicated region
        $region29: #{vit_forward.1} parent=11 // pred_check
          %p485 = pneg %p159
        $region30: #{vit_forward.1} parent=11 // pred_check_branch
          %487 = sbr.rel (%p485) target = $region32
        $region31: #{vit_forward.1} parent=11 // pred_region
          _
        $region32: #{vit_forward.1} parent=11 // pred_fallthru
          _
        // Predicated region
        $region33: #{vit_forward.1} parent=11 // pred_check
          %p488 = pneg %p180
        $region34: #{vit_forward.1} parent=11 // pred_check_branch
          %490 = sbr.rel (%p488) target = $region36
        $region35: #{vit_forward.1} parent=11 // pred_region
          _
        $region36: #{vit_forward.1} parent=11 // pred_fallthru
          _
        // Predicated region
        $region37: #{vit_forward.1} parent=11 // pred_check
          %p491 = pneg %p201
        $region38: #{vit_forward.1} parent=11 // pred_check_branch
          %493 = sbr.rel (%p491) target = $region40
        $region39: #{vit_forward.1} parent=11 // pred_region
          _
        $region40: #{vit_forward.1} parent=11 // pred_fallthru
          _
        // Predicated region
        $region41: #{vit_forward.1} parent=11 // pred_check
          %p494 = pneg %p222
        $region42: #{vit_forward.1} parent=11 // pred_check_branch
          %496 = sbr.rel (%p494) target = $region44
        $region43: #{vit_forward.1} parent=11 // pred_region
          _
        $region44: #{vit_forward.1} parent=11 // pred_fallthru
          _
        // Predicated region
        $region45: #{vit_forward.1} parent=11 // pred_check
          %p497 = pneg %p243
        $region46: #{vit_forward.1} parent=11 // pred_check_branch
          %499 = sbr.rel (%p497) target = $region48
        $region47: #{vit_forward.1} parent=11 // pred_region
          _
        $region48: #{vit_forward.1} parent=11 // pred_fallthru
          _
        // Predicated region
        $region49: #{vit_forward.1} parent=11 // pred_check
          %p500 = pneg %p264
        $region50: #{vit_forward.1} parent=11 // pred_check_branch
          %502 = sbr.rel (%p500) target = $region52
        $region51: #{vit_forward.1} parent=11 // pred_region
          _
        $region52: #{vit_forward.1} parent=11 // pred_fallthru
          _
        // Predicated region
        $region53: #{vit_forward.1} parent=11 // pred_check
          %p503 = pneg %p285
        $region54: #{vit_forward.1} parent=11 // pred_check_branch
          %505 = sbr.rel (%p503) target = $region56
        $region55: #{vit_forward.1} parent=11 // pred_region
          _
        $region56: #{vit_forward.1} parent=11 // pred_fallthru
          _
        // Predicated region
        $region57: #{vit_forward.1} parent=11 // pred_check
          %p506 = pneg %p306
        $region58: #{vit_forward.1} parent=11 // pred_check_branch
          %508 = sbr.rel (%p506) target = $region60
        $region59: #{vit_forward.1} parent=11 // pred_region
          _
        $region60: #{vit_forward.1} parent=11 // pred_fallthru
          _
        // Predicated region
        $region61: #{vit_forward.1} parent=11 // pred_check
          %p509 = pneg %p327
        $region62: #{vit_forward.1} parent=11 // pred_check_branch
          %511 = sbr.rel (%p509) target = $region64
        $region63: #{vit_forward.1} parent=11 // pred_region
          _
        $region64: #{vit_forward.1} parent=11 // pred_fallthru
          _
        // Predicated region
        $region65: #{vit_forward.1} parent=11 // pred_check
          %p512 = pneg %p348
        $region66: #{vit_forward.1} parent=11 // pred_check_branch
          %514 = sbr.rel (%p512) target = $region68
        $region67: #{vit_forward.1} parent=11 // pred_region
          _
        $region68: #{vit_forward.1} parent=11 // pred_fallthru
          _
        // Predicated region
        $region69: #{vit_forward.1} parent=11 // pred_check
          %p515 = pneg %p369
        $region70: #{vit_forward.1} parent=11 // pred_check_branch
          %517 = sbr.rel (%p515) target = $region72
        $region71: #{vit_forward.1} parent=11 // pred_region
          _
        $region72: #{vit_forward.1} parent=11 // pred_fallthru
          _
        // Predicated region
        $region73: #{vit_forward.1} parent=11 // pred_check
          %p518 = pneg %p390
        $region74: #{vit_forward.1} parent=11 // pred_check_branch
          %520 = sbr.rel (%p518) target = $region76
        $region75: #{vit_forward.1} parent=11 // pred_region
          _
        $region76: #{vit_forward.1} parent=11 // pred_fallthru
          _
        // Predicated region
        $region77: #{vit_forward.1} parent=11 // pred_check
          %p521 = pneg %p411
        $region78: #{vit_forward.1} parent=11 // pred_check_branch
          %523 = sbr.rel (%p521) target = $region80
        $region79: #{vit_forward.1} parent=11 // pred_region
          _
        $region80: #{vit_forward.1} parent=11 // pred_fallthru
          _
        // Predicated region
        $region81: #{vit_forward.1} parent=11 // pred_check
          %p524 = pneg %p432
        $region82: #{vit_forward.1} parent=11 // pred_check_branch
          %526 = sbr.rel (%p524) target = $region84
        $region83: #{vit_forward.1} parent=11 // pred_region
          _
        $region84: #{vit_forward.1} parent=11 // pred_fallthru
          _
      $region12: #{vit_forward.1} parent=5 // pred_fallthru
        _
      %p527 = scmp.lt.s32.totalorder %s28, 2
      // Predicated region
      $region85: #{vit_forward.1} parent=5 // pred_check
        %p528 = pneg %p527
      $region86: #{vit_forward.1} parent=5 // pred_check_branch
        %530 = sbr.rel (%p528) target = $region88
      $region87: #{vit_forward.1} parent=5 // pred_region
        // Predicated region
        $region89: #{vit_forward.1} parent=87 // pred_check
          %p531 = pneg %p48
        $region90: #{vit_forward.1} parent=87 // pred_check_branch
          %533 = sbr.rel (%p531) target = $region92
        $region91: #{vit_forward.1} parent=87 // pred_region
          %p534 = scmp.lt.s32.totalorder %s28, 1
          %s535 = scalar_select %p534, %s28, 1
          %s536 = smul.addr %s535, 3
          %s537 = smul.addr %s536, 4
          %s538 = scalar_lea.vmem %s0, %s537
        $region92: #{vit_forward.1} parent=87 // pred_fallthru
          _
      $region88: #{vit_forward.1} parent=5 // pred_fallthru
        _
      %p539 = scmp.le.s32.totalorder 1, %s28
      %p540 = scmp.lt.s32.totalorder %s28, 3
      %p541 = pnand %p539, %p540
      %p542 = pneg %p541
      // Predicated region
      $region93: #{vit_forward.1} parent=5 // pred_check
        _
      $region94: #{vit_forward.1} parent=5 // pred_check_branch
        %544 = sbr.rel (%p541) target = $region96
      $region95: #{vit_forward.1} parent=5 // pred_region
        %s545 = ssub.s32 %s28, 1
        %p546 = scmp.lt.s32.totalorder %s33, 1
        %s547 = scalar_select %p546, %s33, 1
        %s548 = smul.addr %s547, 3
        %s549 = smul.addr %s548, 4
        %s550 = scalar_lea.vmem %s0, %s549
        %p551 = pneg %p54
        %p552 = pneg %p51
        %p553 = pneg %p75
        %p554 = pneg %p72
        %p555 = pneg %p96
        %p556 = pneg %p93
        %p557 = pneg %p117
        %p558 = pneg %p114
        %p559 = pneg %p138
        %p560 = pneg %p135
        %p561 = pneg %p159
        %p562 = pneg %p156
        %p563 = pneg %p180
        %p564 = pneg %p177
        %p565 = pneg %p201
        %p566 = pneg %p198
        %p567 = pneg %p222
        %p568 = pneg %p219
        %p569 = pneg %p243
        %p570 = pneg %p240
        %p571 = pneg %p264
        %p572 = pneg %p261
        %p573 = pneg %p285
        %p574 = pneg %p282
        %p575 = pneg %p306
        %p576 = pneg %p303
        %p577 = pneg %p327
        %p578 = pneg %p324
        %p579 = pneg %p348
        %p580 = pneg %p345
        %p581 = pneg %p369
        %p582 = pneg %p366
        %p583 = pneg %p390
        %p584 = pneg %p387
        %p585 = pneg %p411
        %p586 = pneg %p408
        %p587 = pneg %p432
        %p588 = pneg %p429
        %p589 = pneg %p458
        %p590 = pneg %p455
        %s591 = sand.u32 %s445, 1
        %s592 = scalar_lea.sflag [#allocation3], %s591
        %s593 = sand.u32 %s445, 1
        %s594 = scalar_lea.vmem [#allocation2], %s593
        %p595 = scmp.lt.s32.totalorder %s33, 1
        %s596 = scalar_select %p595, %s33, 1
        %s597 = smul.addr %s596, 3
        %s598 = smul.addr %s597, 4
        %s599 = scalar_lea.vmem %s0, %s598
        %v601 = vld [vmem:[%s599] sm:$0xf]
        %v602 = vld [vmem:[%s599 + $0x4] sm:$0xf]
        %v603 = vld [vmem:[%s599 + $0x8] sm:$0xf]
        %v604 = vld [vmem:[%s1] sm:$0xf]
        %v605 = vld [vmem:[%s1 + $0x4] sm:$0xf]
        %v606 = vld [vmem:[%s1 + $0x8] sm:$0xf]
        %v607 = vld [vmem:[%s1 + $0xc] sm:$0xf]
        %v608 = vld [vmem:[%s1 + $0x10] sm:$0xf]
        %v609 = vld [vmem:[%s1 + $0x14] sm:$0xf]
        %v610 = vld [vmem:[%s2] sm:$0xff]
        %v611 = vld [vmem:[%s2 + $0x8] sm:$0xff]
        %v612 = vld [vmem:[%s2 + $0x10] sm:$0xff]
        %v616 = vunpack.c.l.b16 %v601
        %v617 = vunpack.c.l.b16 %v602
        %v618 = vunpack.c.l.b16 %v603
        %v619 = vpack.c.b16 %v617, %v616
        %v620 = vpack.c.b16 %v618, %v618
        %v627 = vunpack.c.l.b16 %v604
        %v628 = vunpack.c.l.b16 %v605
        %v629 = vunpack.c.l.b16 %v606
        %v630 = vunpack.c.l.b16 %v607
        %v631 = vunpack.c.l.b16 %v608
        %v632 = vunpack.c.l.b16 %v609
        %v633 = vpack.c.b16 %v628, %v627
        %v634 = vpack.c.b16 %v630, %v629
        %v635 = vpack.c.b16 %v632, %v631
        %vm639 = vcmask 392192
        %v641 = vsel %vm639, %v619, 0
        %v644 = vsel %vm639, %v620, 0
        %646 = vmatprep.subr.bf16.mxu0 0
        %647 = vmatpush1.bf16.msra.mxu0 %v633
        %648 = vmatprep.subr.bf16.mxu0 0
        %649 = vmatpush1.bf16.msra.mxu0 %v634
        %650 = vmatprep.subr.bf16.mxu0 0
        %651 = vmatpush1.bf16.msra.mxu0 %v635
        %652 = vmatprep.subr.bf16.mxu0 0
        %653 = vmatpush1.bf16.msra.mxu0 0
        %654 = vmatprep.subr.bf16.mxu0 0
        %655 = vmatpush1.bf16.msra.mxu0 0
        %656 = vmatprep.subr.bf16.mxu0 0
        %657 = vmatpush1.bf16.msra.mxu0 0
        %658 = vmatprep.subr.bf16.mxu0 0
        %659 = vmatpush1.bf16.msra.mxu0 0
        %660 = vmatprep.subr.bf16.mxu0 0
        %661 = vmatpush1.bf16.msra.mxu0 0
        %662 = vmatprep.subr.bf16.mxu0 0
        %663 = vmatpush1.bf16.msra.mxu0 0
        %664 = vmatprep.subr.bf16.mxu0 0
        %665 = vmatpush1.bf16.msra.mxu0 0
        %666 = vmatprep.subr.bf16.mxu0 0
        %667 = vmatpush1.bf16.msra.mxu0 0
        %668 = vmatprep.subr.bf16.mxu0 0
        %669 = vmatpush1.bf16.msra.mxu0 0
        %670 = vmatprep.subr.bf16.mxu0 0
        %671 = vmatpush1.bf16.msra.mxu0 0
        %672 = vmatprep.subr.bf16.mxu0 0
        %673 = vmatpush1.bf16.msra.mxu0 0
        %674 = vmatprep.subr.bf16.mxu0 0
        %675 = vmatpush1.bf16.msra.mxu0 0
        %676 = vmatprep.subr.bf16.mxu0 0
        %677 = vmatpush1.bf16.msra.mxu0 0
        %678 = vmatprep.mubr.bf16.mxu0 0
        %679 = vmatmul.mubr.bf16.gmra.mrb[0].mxu0 %v641
        %v680 = vpop.f32.mrb[0].mxu0
        %v681 = vadd.f32 %v610, %v680
        %v682 = vpop.f32.mrb[0].mxu0
        %v683 = vpop.f32.mrb[0].mxu0
        %v684 = vadd.f32 %v611, %v683
        %v685 = vpop.f32.mrb[0].mxu0
        %686 = vmatprep.mubr.bf16.mxu0 0
        %687 = vmatmul.mubr.bf16.gmra.mrb[0].mxu0 %v644
        %v688 = vpop.f32.mrb[0].mxu0
        %v689 = vadd.f32 %v612, %v688
        %v690 = vpop.f32.mrb[0].mxu0
        %v691 = vpop.f32.mrb[0].mxu0
        %v692 = vpop.f32.mrb[0].mxu0
        %693 = vdwg.mxu0
        %v694 = vlaneseq
        %v695 = vand.u32 %v694, 127
        %vm696 = vcmp.lt.s32.totalorder %v695, 17
        %v697 = vsel %vm696, 0.0, -1e+30
        %v698 = vld [vmem:[%s3] sm:$0x1]
        %v699 = vld [vmem:[%s4] sm:$0x1]
        %vm700 = vcmask 261120
        %v701 = vsel %vm700, %v681, 0.0
        %702 = vadd.xlane.f32.xlu0 %v701
        %v703 = vpop.xlane.xlu0 %702
        %v704 = vsel %vm700, %v684, 0.0
        %705 = vadd.xlane.f32.xlu0 %v704
        %v706 = vpop.xlane.xlu0 %705
        %v707 = vsel %vm700, %v689, 0.0
        %708 = vadd.xlane.f32.xlu0 %v707
        %v709 = vpop.xlane.xlu0 %708
        %v710 = vrcp.pop 32.0
        %v711 = vmul.f32 %v703, %v710
        %v712 = vmul.f32 %v706, %v710
        %v713 = vmul.f32 %v709, %v710
        %v714 = vsub.f32 %v681, %v711
        %v715 = vsub.f32 %v684, %v712
        %v716 = vsub.f32 %v689, %v713
        %v717 = vmul.f32 %v714, %v714
        %v718 = vmul.f32 %v715, %v715
        %v719 = vmul.f32 %v716, %v716
        %v720 = vsel %vm700, %v717, 0.0
        %721 = vadd.xlane.f32.xlu0 %v720
        %v722 = vpop.xlane.xlu0 %721
        %v723 = vsel %vm700, %v718, 0.0
        %724 = vadd.xlane.f32.xlu0 %v723
        %v725 = vpop.xlane.xlu0 %724
        %v726 = vsel %vm700, %v719, 0.0
        %727 = vadd.xlane.f32.xlu0 %v726
        %v728 = vpop.xlane.xlu0 %727
        %v729 = vmul.f32 %v722, %v710
        %v730 = vmul.f32 %v725, %v710
        %v731 = vmul.f32 %v728, %v710
        %v732 = vadd.f32 %v729, 1e-06
        %v733 = vadd.f32 %v730, 1e-06
        %v734 = vadd.f32 %v731, 1e-06
        %v735 = vrsqrt.pop %v732
        %v736 = vrsqrt.pop %v733
        %v737 = vrsqrt.pop %v734
        %v738 = vmul.f32 %v714, %v735
        %v739 = vmul.f32 %v715, %v736
        %v740 = vmul.f32 %v716, %v737
        %v742 = vlaneseq
        %v743 = vshrl.u32 %v742, 7
        %v744 = vsub.s32 0, %v743
        %v745 = vrot.slane %v698, %v744
        %v747 = vmul.f32 %v738, %v745
        %v748 = vmul.f32 %v739, %v745
        %v749 = vmul.f32 %v740, %v745
        %v751 = vlaneseq
        %v752 = vshrl.u32 %v751, 7
        %v753 = vsub.s32 0, %v752
        %v754 = vrot.slane %v699, %v753
        %v756 = vadd.f32 %v747, %v754
        %v757 = vadd.f32 %v748, %v754
        %v758 = vadd.f32 %v749, %v754
        %v759 = vpack.c.bf16 %v757, %v756
        %v760 = vpack.c.bf16 %v758, %v758
        %v761 = vld [vmem:[%s5] sm:$0xf]
        %v762 = vld [vmem:[%s5 + $0x4] sm:$0xf]
        %v763 = vld [vmem:[%s5 + $0x8] sm:$0xf]
        %v764 = vld [vmem:[%s5 + $0xc] sm:$0xf]
        %v765 = vld [vmem:[%s6] sm:$0x1]
        %v767 = vlaneseq
        %v768 = vshrl.u32 %v767, 7
        %v769 = vsub.s32 0, %v768
        %v770 = vrot.slane %v765, %v769
        %v776 = vunpack.c.l.b16 %v761
        %v777 = vunpack.c.l.b16 %v762
        %v778 = vunpack.c.l.b16 %v763
        %v779 = vunpack.c.l.b16 %v764
        %v780 = vpack.c.b16 %v777, %v776
        %v781 = vpack.c.b16 %v779, %v778
        %v785 = vsel %vm700, %v759, 0
        %v788 = vsel %vm700, %v760, 0
        %790 = vmatprep.subr.bf16.mxu0 0
        %791 = vmatpush1.bf16.msra.mxu0 %v780
        %792 = vmatprep.subr.bf16.mxu0 0
        %793 = vmatpush1.bf16.msra.mxu0 %v781
        %794 = vmatprep.subr.bf16.mxu0 0
        %795 = vmatpush1.bf16.msra.mxu0 0
        %796 = vmatprep.subr.bf16.mxu0 0
        %797 = vmatpush1.bf16.msra.mxu0 0
        %798 = vmatprep.subr.bf16.mxu0 0
        %799 = vmatpush1.bf16.msra.mxu0 0
        %800 = vmatprep.subr.bf16.mxu0 0
        %801 = vmatpush1.bf16.msra.mxu0 0
        %802 = vmatprep.subr.bf16.mxu0 0
        %803 = vmatpush1.bf16.msra.mxu0 0
        %804 = vmatprep.subr.bf16.mxu0 0
        %805 = vmatpush1.bf16.msra.mxu0 0
        %806 = vmatprep.subr.bf16.mxu0 0
        %807 = vmatpush1.bf16.msra.mxu0 0
        %808 = vmatprep.subr.bf16.mxu0 0
        %809 = vmatpush1.bf16.msra.mxu0 0
        %810 = vmatprep.subr.bf16.mxu0 0
        %811 = vmatpush1.bf16.msra.mxu0 0
        %812 = vmatprep.subr.bf16.mxu0 0
        %813 = vmatpush1.bf16.msra.mxu0 0
        %814 = vmatprep.subr.bf16.mxu0 0
        %815 = vmatpush1.bf16.msra.mxu0 0
        %816 = vmatprep.subr.bf16.mxu0 0
        %817 = vmatpush1.bf16.msra.mxu0 0
        %818 = vmatprep.subr.bf16.mxu0 0
        %819 = vmatpush1.bf16.msra.mxu0 0
        %820 = vmatprep.subr.bf16.mxu0 0
        %821 = vmatpush1.bf16.msra.mxu0 0
        %822 = vmatprep.mubr.bf16.mxu0 0
        %823 = vmatmul.mubr.bf16.gmra.mrb[0].mxu0 %v785
        %v824 = vpop.f32.mrb[0].mxu0
        %v825 = vadd.f32 %v770, %v824
        %v826 = vpop.f32.mrb[0].mxu0
        %v827 = vpop.f32.mrb[0].mxu0
        %v828 = vadd.f32 %v770, %v827
        %v829 = vpop.f32.mrb[0].mxu0
        %830 = vmatprep.mubr.bf16.mxu0 0
        %831 = vmatmul.mubr.bf16.gmra.mrb[0].mxu0 %v788
        %v832 = vpop.f32.mrb[0].mxu0
        %v833 = vadd.f32 %v770, %v832
        %v834 = vpop.f32.mrb[0].mxu0
        %v835 = vpop.f32.mrb[0].mxu0
        %v836 = vpop.f32.mrb[0].mxu0
        %837 = vdwg.mxu0
        %841 = vrot.lane.b32.xlu0 %v825, 120
        %v842 = vpop.permute.xlu0 %841
        %843 = vrot.lane.b32.xlu0 %v828, 120
        %v844 = vpop.permute.xlu0 %843
        %845 = vrot.lane.b32.xlu0 %v833, 120
        %v846 = vpop.permute.xlu0 %845
        %850 = vrot.lane.b32.xlu0 %v825, 112
        %v851 = vpop.permute.xlu0 %850
        %852 = vrot.lane.b32.xlu0 %v828, 112
        %v853 = vpop.permute.xlu0 %852
        %854 = vrot.lane.b32.xlu0 %v833, 112
        %v855 = vpop.permute.xlu0 %854
        %859 = vrot.lane.b32.xlu0 %v825, 104
        %v860 = vpop.permute.xlu0 %859
        %861 = vrot.lane.b32.xlu0 %v828, 104
        %v862 = vpop.permute.xlu0 %861
        %863 = vrot.lane.b32.xlu0 %v833, 104
        %v864 = vpop.permute.xlu0 %863
        %v868 = vpack.c.bf16 %v828, %v825
        %v869 = vpack.c.bf16 %v833, %v833
        %v870 = vpack.c.bf16 %v844, %v842
        %v871 = vpack.c.bf16 %v846, %v846
        %v872 = vpack.c.bf16 %v853, %v851
        %v873 = vpack.c.bf16 %v855, %v855
        %v874 = vpack.c.bf16 %v862, %v860
        %v875 = vpack.c.bf16 %v864, %v864
        %878 = vrot.lane.b32.xlu0 %v868, 96
        %v879 = vpop.permute.xlu0 %878
        %880 = vrot.lane.b32.xlu0 %v869, 96
        %v881 = vpop.permute.xlu0 %880
        %vm882 = vcmask 64512
        %v884 = vsel %vm882, %v868, 0
        %v887 = vsel %vm882, %v869, 0
        %v890 = vsel %vm882, %v879, 0
        %v893 = vsel %vm882, %v881, 0
        %895 = vmatprep.subr.bf16.mxu0 0
        %896 = vmatpush1.bf16.xpose.msra.mxu0 %v890
        %897 = vmatprep.subr.bf16.mxu0 0
        %898 = vmatpush1.bf16.xpose.msra.mxu0 %v893
        %899 = vmatprep.subr.bf16.mxu0 0
        %900 = vmatpush1.bf16.xpose.msra.mxu0 0
        %901 = vmatprep.subr.bf16.mxu0 0
        %902 = vmatpush1.bf16.xpose.msra.mxu0 0
        %903 = vmatprep.subr.bf16.mxu0 0
        %904 = vmatpush1.bf16.xpose.msra.mxu0 0
        %905 = vmatprep.subr.bf16.mxu0 0
        %906 = vmatpush1.bf16.xpose.msra.mxu0 0
        %907 = vmatprep.subr.bf16.mxu0 0
        %908 = vmatpush1.bf16.xpose.msra.mxu0 0
        %909 = vmatprep.subr.bf16.mxu0 0
        %910 = vmatpush1.bf16.xpose.msra.mxu0 0
        %911 = vmatprep.subr.bf16.mxu0 0
        %912 = vmatpush1.bf16.xpose.msra.mxu0 0
        %913 = vmatprep.subr.bf16.mxu0 0
        %914 = vmatpush1.bf16.xpose.msra.mxu0 0
        %915 = vmatprep.subr.bf16.mxu0 0
        %916 = vmatpush1.bf16.xpose.msra.mxu0 0
        %917 = vmatprep.subr.bf16.mxu0 0
        %918 = vmatpush1.bf16.xpose.msra.mxu0 0
        %919 = vmatprep.subr.bf16.mxu0 0
        %920 = vmatpush1.bf16.xpose.msra.mxu0 0
        %921 = vmatprep.subr.bf16.mxu0 0
        %922 = vmatpush1.bf16.xpose.msra.mxu0 0
        %923 = vmatprep.subr.bf16.mxu0 0
        %924 = vmatpush1.bf16.xpose.msra.mxu0 0
        %925 = vmatprep.subr.bf16.mxu0 0
        %926 = vmatpush1.bf16.xpose.msra.mxu0 0
        %927 = vmatprep.mubr.bf16.mxu0 0
        %928 = vmatmul.mubr.bf16.gmra.mrb[0].mxu0 %v884
        %v929 = vpop.f32.mrb[0].mxu0
        %v930 = vadd.f32 0.0, %v929
        %v931 = vpop.f32.mrb[0].mxu0
        %v932 = vpop.f32.mrb[0].mxu0
        %v933 = vadd.f32 0.0, %v932
        %v934 = vpop.f32.mrb[0].mxu0
        %935 = vmatprep.mubr.bf16.mxu0 0
        %936 = vmatmul.mubr.bf16.gmra.mrb[0].mxu0 %v887
        %v937 = vpop.f32.mrb[0].mxu0
        %v938 = vadd.f32 0.0, %v937
        %v939 = vpop.f32.mrb[0].mxu0
        %v940 = vpop.f32.mrb[0].mxu0
        %v941 = vpop.f32.mrb[0].mxu0
        %942 = vdwg.mxu0
        %945 = vrot.lane.b32.xlu0 %v870, 96
        %v946 = vpop.permute.xlu0 %945
        %947 = vrot.lane.b32.xlu0 %v871, 96
        %v948 = vpop.permute.xlu0 %947
        %v950 = vsel %vm882, %v870, 0
        %v953 = vsel %vm882, %v871, 0
        %v956 = vsel %vm882, %v946, 0
        %v959 = vsel %vm882, %v948, 0
        %961 = vmatprep.subr.bf16.mxu0 0
        %962 = vmatpush1.bf16.xpose.msra.mxu0 %v956
        %963 = vmatprep.subr.bf16.mxu0 0
        %964 = vmatpush1.bf16.xpose.msra.mxu0 %v959
        %965 = vmatprep.subr.bf16.mxu0 0
        %966 = vmatpush1.bf16.xpose.msra.mxu0 0
        %967 = vmatprep.subr.bf16.mxu0 0
        %968 = vmatpush1.bf16.xpose.msra.mxu0 0
        %969 = vmatprep.subr.bf16.mxu0 0
        %970 = vmatpush1.bf16.xpose.msra.mxu0 0
        %971 = vmatprep.subr.bf16.mxu0 0
        %972 = vmatpush1.bf16.xpose.msra.mxu0 0
        %973 = vmatprep.subr.bf16.mxu0 0
        %974 = vmatpush1.bf16.xpose.msra.mxu0 0
        %975 = vmatprep.subr.bf16.mxu0 0
        %976 = vmatpush1.bf16.xpose.msra.mxu0 0
        %977 = vmatprep.subr.bf16.mxu0 0
        %978 = vmatpush1.bf16.xpose.msra.mxu0 0
        %979 = vmatprep.subr.bf16.mxu0 0
        %980 = vmatpush1.bf16.xpose.msra.mxu0 0
        %981 = vmatprep.subr.bf16.mxu0 0
        %982 = vmatpush1.bf16.xpose.msra.mxu0 0
        %983 = vmatprep.subr.bf16.mxu0 0
        %984 = vmatpush1.bf16.xpose.msra.mxu0 0
        %985 = vmatprep.subr.bf16.mxu0 0
        %986 = vmatpush1.bf16.xpose.msra.mxu0 0
        %987 = vmatprep.subr.bf16.mxu0 0
        %988 = vmatpush1.bf16.xpose.msra.mxu0 0
        %989 = vmatprep.subr.bf16.mxu0 0
        %990 = vmatpush1.bf16.xpose.msra.mxu0 0
        %991 = vmatprep.subr.bf16.mxu0 0
        %992 = vmatpush1.bf16.xpose.msra.mxu0 0
        %993 = vmatprep.mubr.bf16.mxu0 0
        %994 = vmatmul.mubr.bf16.gmra.mrb[0].mxu0 %v950
        %v995 = vpop.f32.mrb[0].mxu0
        %v996 = vadd.f32 0.0, %v995
        %v997 = vpop.f32.mrb[0].mxu0
        %v998 = vpop.f32.mrb[0].mxu0
        %v999 = vadd.f32 0.0, %v998
        %v1000 = vpop.f32.mrb[0].mxu0
        %1001 = vmatprep.mubr.bf16.mxu0 0
        %1002 = vmatmul.mubr.bf16.gmra.mrb[0].mxu0 %v953
        %v1003 = vpop.f32.mrb[0].mxu0
        %v1004 = vadd.f32 0.0, %v1003
        %v1005 = vpop.f32.mrb[0].mxu0
        %v1006 = vpop.f32.mrb[0].mxu0
        %v1007 = vpop.f32.mrb[0].mxu0
        %1008 = vdwg.mxu0
        %1011 = vrot.lane.b32.xlu0 %v872, 96
        %v1012 = vpop.permute.xlu0 %1011
        %1013 = vrot.lane.b32.xlu0 %v873, 96
        %v1014 = vpop.permute.xlu0 %1013
        %v1016 = vsel %vm882, %v872, 0
        %v1019 = vsel %vm882, %v873, 0
        %v1022 = vsel %vm882, %v1012, 0
        %v1025 = vsel %vm882, %v1014, 0
        %1027 = vmatprep.subr.bf16.mxu0 0
        %1028 = vmatpush1.bf16.xpose.msra.mxu0 %v1022
        %1029 = vmatprep.subr.bf16.mxu0 0
        %1030 = vmatpush1.bf16.xpose.msra.mxu0 %v1025
        %1031 = vmatprep.subr.bf16.mxu0 0
        %1032 = vmatpush1.bf16.xpose.msra.mxu0 0
        %1033 = vmatprep.subr.bf16.mxu0 0
        %1034 = vmatpush1.bf16.xpose.msra.mxu0 0
        %1035 = vmatprep.subr.bf16.mxu0 0
        %1036 = vmatpush1.bf16.xpose.msra.mxu0 0
        %1037 = vmatprep.subr.bf16.mxu0 0
        %1038 = vmatpush1.bf16.xpose.msra.mxu0 0
        %1039 = vmatprep.subr.bf16.mxu0 0
        %1040 = vmatpush1.bf16.xpose.msra.mxu0 0
        %1041 = vmatprep.subr.bf16.mxu0 0
        %1042 = vmatpush1.bf16.xpose.msra.mxu0 0
        %1043 = vmatprep.subr.bf16.mxu0 0
        %1044 = vmatpush1.bf16.xpose.msra.mxu0 0
        %1045 = vmatprep.subr.bf16.mxu0 0
        %1046 = vmatpush1.bf16.xpose.msra.mxu0 0
        %1047 = vmatprep.subr.bf16.mxu0 0
        %1048 = vmatpush1.bf16.xpose.msra.mxu0 0
        %1049 = vmatprep.subr.bf16.mxu0 0
        %1050 = vmatpush1.bf16.xpose.msra.mxu0 0
        %1051 = vmatprep.subr.bf16.mxu0 0
        %1052 = vmatpush1.bf16.xpose.msra.mxu0 0
        %1053 = vmatprep.subr.bf16.mxu0 0
        %1054 = vmatpush1.bf16.xpose.msra.mxu0 0
        %1055 = vmatprep.subr.bf16.mxu0 0
        %1056 = vmatpush1.bf16.xpose.msra.mxu0 0
        %1057 = vmatprep.subr.bf16.mxu0 0
        %1058 = vmatpush1.bf16.xpose.msra.mxu0 0
        %1059 = vmatprep.mubr.bf16.mxu0 0
        %1060 = vmatmul.mubr.bf16.gmra.mrb[0].mxu0 %v1016
        %v1061 = vpop.f32.mrb[0].mxu0
        %v1062 = vadd.f32 0.0, %v1061
        %v1063 = vpop.f32.mrb[0].mxu0
        %v1064 = vpop.f32.mrb[0].mxu0
        %v1065 = vadd.f32 0.0, %v1064
        %v1066 = vpop.f32.mrb[0].mxu0
        %1067 = vmatprep.mubr.bf16.mxu0 0
        %1068 = vmatmul.mubr.bf16.gmra.mrb[0].mxu0 %v1019
        %v1069 = vpop.f32.mrb[0].mxu0
        %v1070 = vadd.f32 0.0, %v1069
        %v1071 = vpop.f32.mrb[0].mxu0
        %v1072 = vpop.f32.mrb[0].mxu0
        %v1073 = vpop.f32.mrb[0].mxu0
        %1074 = vdwg.mxu0
        %1077 = vrot.lane.b32.xlu0 %v874, 96
        %v1078 = vpop.permute.xlu0 %1077
        %1079 = vrot.lane.b32.xlu0 %v875, 96
        %v1080 = vpop.permute.xlu0 %1079
        %v1082 = vsel %vm882, %v874, 0
        %v1085 = vsel %vm882, %v875, 0
        %v1088 = vsel %vm882, %v1078, 0
        %v1091 = vsel %vm882, %v1080, 0
        %1093 = vmatprep.subr.bf16.mxu0 0
        %1094 = vmatpush1.bf16.xpose.msra.mxu0 %v1088
        %1095 = vmatprep.subr.bf16.mxu0 0
        %1096 = vmatpush1.bf16.xpose.msra.mxu0 %v1091
        %1097 = vmatprep.subr.bf16.mxu0 0
        %1098 = vmatpush1.bf16.xpose.msra.mxu0 0
        %1099 = vmatprep.subr.bf16.mxu0 0
        %1100 = vmatpush1.bf16.xpose.msra.mxu0 0
        %1101 = vmatprep.subr.bf16.mxu0 0
        %1102 = vmatpush1.bf16.xpose.msra.mxu0 0
        %1103 = vmatprep.subr.bf16.mxu0 0
        %1104 = vmatpush1.bf16.xpose.msra.mxu0 0
        %1105 = vmatprep.subr.bf16.mxu0 0
        %1106 = vmatpush1.bf16.xpose.msra.mxu0 0
        %1107 = vmatprep.subr.bf16.mxu0 0
        %1108 = vmatpush1.bf16.xpose.msra.mxu0 0
        %1109 = vmatprep.subr.bf16.mxu0 0
        %1110 = vmatpush1.bf16.xpose.msra.mxu0 0
        %1111 = vmatprep.subr.bf16.mxu0 0
        %1112 = vmatpush1.bf16.xpose.msra.mxu0 0
        %1113 = vmatprep.subr.bf16.mxu0 0
        %1114 = vmatpush1.bf16.xpose.msra.mxu0 0
        %1115 = vmatprep.subr.bf16.mxu0 0
        %1116 = vmatpush1.bf16.xpose.msra.mxu0 0
        %1117 = vmatprep.subr.bf16.mxu0 0
        %1118 = vmatpush1.bf16.xpose.msra.mxu0 0
        %1119 = vmatprep.subr.bf16.mxu0 0
        %1120 = vmatpush1.bf16.xpose.msra.mxu0 0
        %1121 = vmatprep.subr.bf16.mxu0 0
        %1122 = vmatpush1.bf16.xpose.msra.mxu0 0
        %1123 = vmatprep.subr.bf16.mxu0 0
        %1124 = vmatpush1.bf16.xpose.msra.mxu0 0
        %1125 = vmatprep.mubr.bf16.mxu0 0
        %1126 = vmatmul.mubr.bf16.gmra.mrb[0].mxu0 %v1082
        %v1127 = vpop.f32.mrb[0].mxu0
        %v1128 = vadd.f32 0.0, %v1127
        %v1129 = vpop.f32.mrb[0].mxu0
        %v1130 = vpop.f32.mrb[0].mxu0
        %v1131 = vadd.f32 0.0, %v1130
        %v1132 = vpop.f32.mrb[0].mxu0
        %1133 = vmatprep.mubr.bf16.mxu0 0
        %1134 = vmatmul.mubr.bf16.gmra.mrb[0].mxu0 %v1085
        %v1135 = vpop.f32.mrb[0].mxu0
        %v1136 = vadd.f32 0.0, %v1135
        %v1137 = vpop.f32.mrb[0].mxu0
        %v1138 = vpop.f32.mrb[0].mxu0
        %v1139 = vpop.f32.mrb[0].mxu0
        %1140 = vdwg.mxu0
        %v1141 = vmul.f32 %v930, 0.35355338
        %v1142 = vmul.f32 %v933, 0.35355338
        %v1143 = vmul.f32 %v938, 0.35355338
        %v1144 = vmul.f32 %v996, 0.35355338
        %v1145 = vmul.f32 %v999, 0.35355338
        %v1146 = vmul.f32 %v1004, 0.35355338
        %v1147 = vmul.f32 %v1062, 0.35355338
        %v1148 = vmul.f32 %v1065, 0.35355338
        %v1149 = vmul.f32 %v1070, 0.35355338
        %v1150 = vmul.f32 %v1128, 0.35355338
        %v1151 = vmul.f32 %v1131, 0.35355338
        %v1152 = vmul.f32 %v1136, 0.35355338
        %v1153 = vadd.f32 %v1141, %v697
        %v1154 = vadd.f32 %v1142, %v697
        %v1155 = vadd.f32 %v1143, %v697
        %v1156 = vadd.f32 %v1144, %v697
        %v1157 = vadd.f32 %v1145, %v697
        %v1158 = vadd.f32 %v1146, %v697
        %v1159 = vadd.f32 %v1147, %v697
        %v1160 = vadd.f32 %v1148, %v697
        %v1161 = vadd.f32 %v1149, %v697
        %v1162 = vadd.f32 %v1150, %v697
        %v1163 = vadd.f32 %v1151, %v697
        %v1164 = vadd.f32 %v1152, %v697
        %vm1165 = vcmask 195584
        %v1166 = vsel %vm1165, %v1153, -inf
        %1167 = vmax.xlane.f32.xlu0 %v1166
        %v1168 = vpop.xlane.xlu0 %1167
        %v1169 = vsel %vm1165, %v1154, -inf
        %1170 = vmax.xlane.f32.xlu0 %v1169
        %v1171 = vpop.xlane.xlu0 %1170
        %v1172 = vsel %vm1165, %v1155, -inf
        %1173 = vmax.xlane.f32.xlu0 %v1172
        %v1174 = vpop.xlane.xlu0 %1173
        %v1175 = vsel %vm1165, %v1156, -inf
        %1176 = vmax.xlane.f32.xlu0 %v1175
        %v1177 = vpop.xlane.xlu0 %1176
        %v1178 = vsel %vm1165, %v1157, -inf
        %1179 = vmax.xlane.f32.xlu0 %v1178
        %v1180 = vpop.xlane.xlu0 %1179
        %v1181 = vsel %vm1165, %v1158, -inf
        %1182 = vmax.xlane.f32.xlu0 %v1181
        %v1183 = vpop.xlane.xlu0 %1182
        %v1184 = vsel %vm1165, %v1159, -inf
        %1185 = vmax.xlane.f32.xlu0 %v1184
        %v1186 = vpop.xlane.xlu0 %1185
        %v1187 = vsel %vm1165, %v1160, -inf
        %1188 = vmax.xlane.f32.xlu0 %v1187
        %v1189 = vpop.xlane.xlu0 %1188
        %v1190 = vsel %vm1165, %v1161, -inf
        %1191 = vmax.xlane.f32.xlu0 %v1190
        %v1192 = vpop.xlane.xlu0 %1191
        %v1193 = vsel %vm1165, %v1162, -inf
        %1194 = vmax.xlane.f32.xlu0 %v1193
        %v1195 = vpop.xlane.xlu0 %1194
        %v1196 = vsel %vm1165, %v1163, -inf
        %1197 = vmax.xlane.f32.xlu0 %v1196
        %v1198 = vpop.xlane.xlu0 %1197
        %v1199 = vsel %vm1165, %v1164, -inf
        %1200 = vmax.xlane.f32.xlu0 %v1199
        %v1201 = vpop.xlane.xlu0 %1200
        %v1202 = vsub.f32 %v1153, %v1168
        %v1203 = vsub.f32 %v1154, %v1171
        %v1204 = vsub.f32 %v1155, %v1174
        %v1205 = vsub.f32 %v1156, %v1177
        %v1206 = vsub.f32 %v1157, %v1180
        %v1207 = vsub.f32 %v1158, %v1183
        %v1208 = vsub.f32 %v1159, %v1186
        %v1209 = vsub.f32 %v1160, %v1189
        %v1210 = vsub.f32 %v1161, %v1192
        %v1211 = vsub.f32 %v1162, %v1195
        %v1212 = vsub.f32 %v1163, %v1198
        %v1213 = vsub.f32 %v1164, %v1201
        %v1214 = vmul.f32 %v1202, 1.442695
        %v1215 = vpow.pop %v1214
        %v1216 = vmul.f32 %v1203, 1.442695
        %v1217 = vpow.pop %v1216
        %v1218 = vmul.f32 %v1204, 1.442695
        %v1219 = vpow.pop %v1218
        %v1220 = vmul.f32 %v1205, 1.442695
        %v1221 = vpow.pop %v1220
        %v1222 = vmul.f32 %v1206, 1.442695
        %v1223 = vpow.pop %v1222
        %v1224 = vmul.f32 %v1207, 1.442695
        %v1225 = vpow.pop %v1224
        %v1226 = vmul.f32 %v1208, 1.442695
        %v1227 = vpow.pop %v1226
        %v1228 = vmul.f32 %v1209, 1.442695
        %v1229 = vpow.pop %v1228
        %v1230 = vmul.f32 %v1210, 1.442695
        %v1231 = vpow.pop %v1230
        %v1232 = vmul.f32 %v1211, 1.442695
        %v1233 = vpow.pop %v1232
        %v1234 = vmul.f32 %v1212, 1.442695
        %v1235 = vpow.pop %v1234
        %v1236 = vmul.f32 %v1213, 1.442695
        %v1237 = vpow.pop %v1236
        %v1238 = vsel %vm1165, %v1215, 0.0
        %1239 = vadd.xlane.f32.xlu0 %v1238
        %v1240 = vpop.xlane.xlu0 %1239
        %v1241 = vsel %vm1165, %v1217, 0.0
        %1242 = vadd.xlane.f32.xlu0 %v1241
        %v1243 = vpop.xlane.xlu0 %1242
        %v1244 = vsel %vm1165, %v1219, 0.0
        %1245 = vadd.xlane.f32.xlu0 %v1244
        %v1246 = vpop.xlane.xlu0 %1245
        %v1247 = vsel %vm1165, %v1221, 0.0
        %1248 = vadd.xlane.f32.xlu0 %v1247
        %v1249 = vpop.xlane.xlu0 %1248
        %v1250 = vsel %vm1165, %v1223, 0.0
        %1251 = vadd.xlane.f32.xlu0 %v1250
        %v1252 = vpop.xlane.xlu0 %1251
        %v1253 = vsel %vm1165, %v1225, 0.0
        %1254 = vadd.xlane.f32.xlu0 %v1253
        %v1255 = vpop.xlane.xlu0 %1254
        %v1256 = vsel %vm1165, %v1227, 0.0
        %1257 = vadd.xlane.f32.xlu0 %v1256
        %v1258 = vpop.xlane.xlu0 %1257
        %v1259 = vsel %vm1165, %v1229, 0.0
        %1260 = vadd.xlane.f32.xlu0 %v1259
        %v1261 = vpop.xlane.xlu0 %1260
        %v1262 = vsel %vm1165, %v1231, 0.0
        %1263 = vadd.xlane.f32.xlu0 %v1262
        %v1264 = vpop.xlane.xlu0 %1263
        %v1265 = vsel %vm1165, %v1233, 0.0
        %1266 = vadd.xlane.f32.xlu0 %v1265
        %v1267 = vpop.xlane.xlu0 %1266
        %v1268 = vsel %vm1165, %v1235, 0.0
        %1269 = vadd.xlane.f32.xlu0 %v1268
        %v1270 = vpop.xlane.xlu0 %1269
        %v1271 = vsel %vm1165, %v1237, 0.0
        %1272 = vadd.xlane.f32.xlu0 %v1271
        %v1273 = vpop.xlane.xlu0 %1272
        %v1274 = vrcp.pop %v1240
        %v1275 = vrcp.pop %v1243
        %v1276 = vrcp.pop %v1246
        %v1277 = vrcp.pop %v1249
        %v1278 = vrcp.pop %v1252
        %v1279 = vrcp.pop %v1255
        %v1280 = vrcp.pop %v1258
        %v1281 = vrcp.pop %v1261
        %v1282 = vrcp.pop %v1264
        %v1283 = vrcp.pop %v1267
        %v1284 = vrcp.pop %v1270
        %v1285 = vrcp.pop %v1273
        %v1286 = vmul.f32 %v1215, %v1274
        %v1287 = vmul.f32 %v1217, %v1275
        %v1288 = vmul.f32 %v1219, %v1276
        %v1289 = vmul.f32 %v1221, %v1277
        %v1290 = vmul.f32 %v1223, %v1278
        %v1291 = vmul.f32 %v1225, %v1279
        %v1292 = vmul.f32 %v1227, %v1280
        %v1293 = vmul.f32 %v1229, %v1281
        %v1294 = vmul.f32 %v1231, %v1282
        %v1295 = vmul.f32 %v1233, %v1283
        %v1296 = vmul.f32 %v1235, %v1284
        %v1297 = vmul.f32 %v1237, %v1285
        %v1298 = vpack.c.bf16 %v1287, %v1286
        %v1299 = vpack.c.bf16 %v1288, %v1288
        %v1300 = vpack.c.bf16 %v1290, %v1289
        %v1301 = vpack.c.bf16 %v1291, %v1291
        %v1302 = vpack.c.bf16 %v1293, %v1292
        %v1303 = vpack.c.bf16 %v1294, %v1294
        %v1304 = vpack.c.bf16 %v1296, %v1295
        %v1305 = vpack.c.bf16 %v1297, %v1297
        %1306 = vrot.lane.b32.xlu0 %v868, 64
        %v1307 = vpop.permute.xlu0 %1306
        %1308 = vrot.lane.b32.xlu0 %v869, 64
        %v1309 = vpop.permute.xlu0 %1308
        %v1312 = vsel %vm1165, %v1298, 0
        %v1315 = vsel %vm1165, %v1299, 0
        %vm1317 = vcmask 1043456
        %v1319 = vsel %vm1317, %v1309, 0
        %1321 = vmatprep.subr.bf16.mxu0 0
        %1322 = vmatpush1.bf16.msra.mxu0 %v1307
        %1323 = vmatprep.subr.bf16.mxu0 0
        %1324 = vmatpush1.bf16.msra.mxu0 %v1319
        %1325 = vmatprep.subr.bf16.mxu0 0
        %1326 = vmatpush1.bf16.msra.mxu0 0
        %1327 = vmatprep.subr.bf16.mxu0 0
        %1328 = vmatpush1.bf16.msra.mxu0 0
        %1329 = vmatprep.subr.bf16.mxu0 0
        %1330 = vmatpush1.bf16.msra.mxu0 0
        %1331 = vmatprep.subr.bf16.mxu0 0
        %1332 = vmatpush1.bf16.msra.mxu0 0
        %1333 = vmatprep.subr.bf16.mxu0 0
        %1334 = vmatpush1.bf16.msra.mxu0 0
        %1335 = vmatprep.subr.bf16.mxu0 0
        %1336 = vmatpush1.bf16.msra.mxu0 0
        %1337 = vmatprep.subr.bf16.mxu0 0
        %1338 = vmatpush1.bf16.msra.mxu0 0
        %1339 = vmatprep.subr.bf16.mxu0 0
        %1340 = vmatpush1.bf16.msra.mxu0 0
        %1341 = vmatprep.subr.bf16.mxu0 0
        %1342 = vmatpush1.bf16.msra.mxu0 0
        %1343 = vmatprep.subr.bf16.mxu0 0
        %1344 = vmatpush1.bf16.msra.mxu0 0
        %1345 = vmatprep.subr.bf16.mxu0 0
        %1346 = vmatpush1.bf16.msra.mxu0 0
        %1347 = vmatprep.subr.bf16.mxu0 0
        %1348 = vmatpush1.bf16.msra.mxu0 0
        %1349 = vmatprep.subr.bf16.mxu0 0
        %1350 = vmatpush1.bf16.msra.mxu0 0
        %1351 = vmatprep.subr.bf16.mxu0 0
        %1352 = vmatpush1.bf16.msra.mxu0 0
        %1353 = vmatprep.mubr.bf16.mxu0 0
        %1354 = vmatmul.mubr.bf16.gmra.mrb[0].mxu0 %v1312
        %v1355 = vpop.f32.mrb[0].mxu0
        %v1356 = vadd.f32 0.0, %v1355
        %v1357 = vpop.f32.mrb[0].mxu0
        %v1358 = vpop.f32.mrb[0].mxu0
        %v1359 = vadd.f32 0.0, %v1358
        %v1360 = vpop.f32.mrb[0].mxu0
        %1361 = vmatprep.mubr.bf16.mxu0 0
        %1362 = vmatmul.mubr.bf16.gmra.mrb[0].mxu0 %v1315
        %v1363 = vpop.f32.mrb[0].mxu0
        %v1364 = vadd.f32 0.0, %v1363
        %v1365 = vpop.f32.mrb[0].mxu0
        %v1366 = vpop.f32.mrb[0].mxu0
        %v1367 = vpop.f32.mrb[0].mxu0
        %1368 = vdwg.mxu0
        %1369 = vrot.lane.b32.xlu0 %v870, 64
        %v1370 = vpop.permute.xlu0 %1369
        %1371 = vrot.lane.b32.xlu0 %v871, 64
        %v1372 = vpop.permute.xlu0 %1371
        %v1375 = vsel %vm1165, %v1300, 0
        %v1378 = vsel %vm1165, %v1301, 0
        %v1381 = vsel %vm1317, %v1372, 0
        %1383 = vmatprep.subr.bf16.mxu0 0
        %1384 = vmatpush1.bf16.msra.mxu0 %v1370
        %1385 = vmatprep.subr.bf16.mxu0 0
        %1386 = vmatpush1.bf16.msra.mxu0 %v1381
        %1387 = vmatprep.subr.bf16.mxu0 0
        %1388 = vmatpush1.bf16.msra.mxu0 0
        %1389 = vmatprep.subr.bf16.mxu0 0
        %1390 = vmatpush1.bf16.msra.mxu0 0
        %1391 = vmatprep.subr.bf16.mxu0 0
        %1392 = vmatpush1.bf16.msra.mxu0 0
        %1393 = vmatprep.subr.bf16.mxu0 0
        %1394 = vmatpush1.bf16.msra.mxu0 0
        %1395 = vmatprep.subr.bf16.mxu0 0
        %1396 = vmatpush1.bf16.msra.mxu0 0
        %1397 = vmatprep.subr.bf16.mxu0 0
        %1398 = vmatpush1.bf16.msra.mxu0 0
        %1399 = vmatprep.subr.bf16.mxu0 0
        %1400 = vmatpush1.bf16.msra.mxu0 0
        %1401 = vmatprep.subr.bf16.mxu0 0
        %1402 = vmatpush1.bf16.msra.mxu0 0
        %1403 = vmatprep.subr.bf16.mxu0 0
        %1404 = vmatpush1.bf16.msra.mxu0 0
        %1405 = vmatprep.subr.bf16.mxu0 0
        %1406 = vmatpush1.bf16.msra.mxu0 0
        %1407 = vmatprep.subr.bf16.mxu0 0
        %1408 = vmatpush1.bf16.msra.mxu0 0
        %1409 = vmatprep.subr.bf16.mxu0 0
        %1410 = vmatpush1.bf16.msra.mxu0 0
        %1411 = vmatprep.subr.bf16.mxu0 0
        %1412 = vmatpush1.bf16.msra.mxu0 0
        %1413 = vmatprep.subr.bf16.mxu0 0
        %1414 = vmatpush1.bf16.msra.mxu0 0
        %1415 = vmatprep.mubr.bf16.mxu0 0
        %1416 = vmatmul.mubr.bf16.gmra.mrb[0].mxu0 %v1375
        %v1417 = vpop.f32.mrb[0].mxu0
        %v1418 = vadd.f32 0.0, %v1417
        %v1419 = vpop.f32.mrb[0].mxu0
        %v1420 = vpop.f32.mrb[0].mxu0
        %v1421 = vadd.f32 0.0, %v1420
        %v1422 = vpop.f32.mrb[0].mxu0
        %1423 = vmatprep.mubr.bf16.mxu0 0
        %1424 = vmatmul.mubr.bf16.gmra.mrb[0].mxu0 %v1378
        %v1425 = vpop.f32.mrb[0].mxu0
        %v1426 = vadd.f32 0.0, %v1425
        %v1427 = vpop.f32.mrb[0].mxu0
        %v1428 = vpop.f32.mrb[0].mxu0
        %v1429 = vpop.f32.mrb[0].mxu0
        %1430 = vdwg.mxu0
        %1431 = vrot.lane.b32.xlu0 %v872, 64
        %v1432 = vpop.permute.xlu0 %1431
        %1433 = vrot.lane.b32.xlu0 %v873, 64
        %v1434 = vpop.permute.xlu0 %1433
        %v1437 = vsel %vm1165, %v1302, 0
        %v1440 = vsel %vm1165, %v1303, 0
        %v1443 = vsel %vm1317, %v1434, 0
        %1445 = vmatprep.subr.bf16.mxu0 0
        %1446 = vmatpush1.bf16.msra.mxu0 %v1432
        %1447 = vmatprep.subr.bf16.mxu0 0
        %1448 = vmatpush1.bf16.msra.mxu0 %v1443
        %1449 = vmatprep.subr.bf16.mxu0 0
        %1450 = vmatpush1.bf16.msra.mxu0 0
        %1451 = vmatprep.subr.bf16.mxu0 0
        %1452 = vmatpush1.bf16.msra.mxu0 0
        %1453 = vmatprep.subr.bf16.mxu0 0
        %1454 = vmatpush1.bf16.msra.mxu0 0
        %1455 = vmatprep.subr.bf16.mxu0 0
        %1456 = vmatpush1.bf16.msra.mxu0 0
        %1457 = vmatprep.subr.bf16.mxu0 0
        %1458 = vmatpush1.bf16.msra.mxu0 0
        %1459 = vmatprep.subr.bf16.mxu0 0
        %1460 = vmatpush1.bf16.msra.mxu0 0
        %1461 = vmatprep.subr.bf16.mxu0 0
        %1462 = vmatpush1.bf16.msra.mxu0 0
        %1463 = vmatprep.subr.bf16.mxu0 0
        %1464 = vmatpush1.bf16.msra.mxu0 0
        %1465 = vmatprep.subr.bf16.mxu0 0
        %1466 = vmatpush1.bf16.msra.mxu0 0
        %1467 = vmatprep.subr.bf16.mxu0 0
        %1468 = vmatpush1.bf16.msra.mxu0 0
        %1469 = vmatprep.subr.bf16.mxu0 0
        %1470 = vmatpush1.bf16.msra.mxu0 0
        %1471 = vmatprep.subr.bf16.mxu0 0
        %1472 = vmatpush1.bf16.msra.mxu0 0
        %1473 = vmatprep.subr.bf16.mxu0 0
        %1474 = vmatpush1.bf16.msra.mxu0 0
        %1475 = vmatprep.subr.bf16.mxu0 0
        %1476 = vmatpush1.bf16.msra.mxu0 0
        %1477 = vmatprep.mubr.bf16.mxu0 0
        %1478 = vmatmul.mubr.bf16.gmra.mrb[0].mxu0 %v1437
        %v1479 = vpop.f32.mrb[0].mxu0
        %v1480 = vadd.f32 0.0, %v1479
        %v1481 = vpop.f32.mrb[0].mxu0
        %v1482 = vpop.f32.mrb[0].mxu0
        %v1483 = vadd.f32 0.0, %v1482
        %v1484 = vpop.f32.mrb[0].mxu0
        %1485 = vmatprep.mubr.bf16.mxu0 0
        %1486 = vmatmul.mubr.bf16.gmra.mrb[0].mxu0 %v1440
        %v1487 = vpop.f32.mrb[0].mxu0
        %v1488 = vadd.f32 0.0, %v1487
        %v1489 = vpop.f32.mrb[0].mxu0
        %v1490 = vpop.f32.mrb[0].mxu0
        %v1491 = vpop.f32.mrb[0].mxu0
        %1492 = vdwg.mxu0
        %1493 = vrot.lane.b32.xlu0 %v874, 64
        %v1494 = vpop.permute.xlu0 %1493
        %1495 = vrot.lane.b32.xlu0 %v875, 64
        %v1496 = vpop.permute.xlu0 %1495
        %v1499 = vsel %vm1165, %v1304, 0
        %v1502 = vsel %vm1165, %v1305, 0
        %v1505 = vsel %vm1317, %v1496, 0
        %1507 = vmatprep.subr.bf16.mxu0 0
        %1508 = vmatpush1.bf16.msra.mxu0 %v1494
        %1509 = vmatprep.subr.bf16.mxu0 0
        %1510 = vmatpush1.bf16.msra.mxu0 %v1505
        %1511 = vmatprep.subr.bf16.mxu0 0
        %1512 = vmatpush1.bf16.msra.mxu0 0
        %1513 = vmatprep.subr.bf16.mxu0 0
        %1514 = vmatpush1.bf16.msra.mxu0 0
        %1515 = vmatprep.subr.bf16.mxu0 0
        %1516 = vmatpush1.bf16.msra.mxu0 0
        %1517 = vmatprep.subr.bf16.mxu0 0
        %1518 = vmatpush1.bf16.msra.mxu0 0
        %1519 = vmatprep.subr.bf16.mxu0 0
        %1520 = vmatpush1.bf16.msra.mxu0 0
        %1521 = vmatprep.subr.bf16.mxu0 0
        %1522 = vmatpush1.bf16.msra.mxu0 0
        %1523 = vmatprep.subr.bf16.mxu0 0
        %1524 = vmatpush1.bf16.msra.mxu0 0
        %1525 = vmatprep.subr.bf16.mxu0 0
        %1526 = vmatpush1.bf16.msra.mxu0 0
        %1527 = vmatprep.subr.bf16.mxu0 0
        %1528 = vmatpush1.bf16.msra.mxu0 0
        %1529 = vmatprep.subr.bf16.mxu0 0
        %1530 = vmatpush1.bf16.msra.mxu0 0
        %1531 = vmatprep.subr.bf16.mxu0 0
        %1532 = vmatpush1.bf16.msra.mxu0 0
        %1533 = vmatprep.subr.bf16.mxu0 0
        %1534 = vmatpush1.bf16.msra.mxu0 0
        %1535 = vmatprep.subr.bf16.mxu0 0
        %1536 = vmatpush1.bf16.msra.mxu0 0
        %1537 = vmatprep.subr.bf16.mxu0 0
        %1538 = vmatpush1.bf16.msra.mxu0 0
        %1539 = vmatprep.mubr.bf16.mxu0 0
        %1540 = vmatmul.mubr.bf16.gmra.mrb[0].mxu0 %v1499
        %v1541 = vpop.f32.mrb[0].mxu0
        %v1542 = vadd.f32 0.0, %v1541
        %v1543 = vpop.f32.mrb[0].mxu0
        %v1544 = vpop.f32.mrb[0].mxu0
        %v1545 = vadd.f32 0.0, %v1544
        %v1546 = vpop.f32.mrb[0].mxu0
        %1547 = vmatprep.mubr.bf16.mxu0 0
        %1548 = vmatmul.mubr.bf16.gmra.mrb[0].mxu0 %v1502
        %v1549 = vpop.f32.mrb[0].mxu0
        %v1550 = vadd.f32 0.0, %v1549
        %v1551 = vpop.f32.mrb[0].mxu0
        %v1552 = vpop.f32.mrb[0].mxu0
        %v1553 = vpop.f32.mrb[0].mxu0
        %1554 = vdwg.mxu0
        %1558 = vrot.lane.b32.xlu0 %v1418, 8
        %v1559 = vpop.permute.xlu0 %1558
        %1560 = vrot.lane.b32.xlu0 %v1421, 8
        %v1561 = vpop.permute.xlu0 %1560
        %1562 = vrot.lane.b32.xlu0 %v1426, 8
        %v1563 = vpop.permute.xlu0 %1562
        %1570 = vrot.lane.b32.xlu0 %v1480, 16
        %v1571 = vpop.permute.xlu0 %1570
        %1572 = vrot.lane.b32.xlu0 %v1483, 16
        %v1573 = vpop.permute.xlu0 %1572
        %1574 = vrot.lane.b32.xlu0 %v1488, 16
        %v1575 = vpop.permute.xlu0 %1574
        %1582 = vrot.lane.b32.xlu0 %v1542, 24
        %v1583 = vpop.permute.xlu0 %1582
        %1584 = vrot.lane.b32.xlu0 %v1545, 24
        %v1585 = vpop.permute.xlu0 %1584
        %1586 = vrot.lane.b32.xlu0 %v1550, 24
        %v1587 = vpop.permute.xlu0 %1586
        %v1591 = vsel %vm882, %v1356, %v1559
        %v1592 = vsel %vm882, %v1359, %v1561
        %v1593 = vsel %vm882, %v1364, %v1563
        %vm1594 = vcmask 130048
        %v1595 = vsel %vm1594, %v1591, %v1571
        %v1596 = vsel %vm1594, %v1592, %v1573
        %v1597 = vsel %vm1594, %v1593, %v1575
        %v1598 = vsel %vm1165, %v1595, %v1583
        %v1599 = vsel %vm1165, %v1596, %v1585
        %v1600 = vsel %vm1165, %v1597, %v1587
        %v1601 = vpack.c.bf16 %v1599, %v1598
        %v1602 = vpack.c.bf16 %v1600, %v1600
        %v1603 = vld [vmem:[%s7] sm:$0xf]
        %v1604 = vld [vmem:[%s7 + $0x4] sm:$0xf]
        %v1605 = vld [vmem:[%s7 + $0x8] sm:$0xf]
        %v1606 = vld [vmem:[%s7 + $0xc] sm:$0xf]
        %v1607 = vld [vmem:[%s8] sm:$0x1]
        %v1609 = vlaneseq
        %v1610 = vshrl.u32 %v1609, 7
        %v1611 = vsub.s32 0, %v1610
        %v1612 = vrot.slane %v1607, %v1611
        %v1618 = vunpack.c.l.b16 %v1603
        %v1619 = vunpack.c.l.b16 %v1604
        %v1620 = vunpack.c.l.b16 %v1605
        %v1621 = vunpack.c.l.b16 %v1606
        %v1622 = vpack.c.b16 %v1619, %v1618
        %v1623 = vpack.c.b16 %v1621, %v1620
        %v1627 = vsel %vm700, %v1601, 0
        %v1630 = vsel %vm700, %v1602, 0
        %1632 = vmatprep.subr.bf16.mxu0 0
        %1633 = vmatpush1.bf16.msra.mxu0 %v1622
        %1634 = vmatprep.subr.bf16.mxu0 0
        %1635 = vmatpush1.bf16.msra.mxu0 %v1623
        %1636 = vmatprep.subr.bf16.mxu0 0
        %1637 = vmatpush1.bf16.msra.mxu0 0
        %1638 = vmatprep.subr.bf16.mxu0 0
        %1639 = vmatpush1.bf16.msra.mxu0 0
        %1640 = vmatprep.subr.bf16.mxu0 0
        %1641 = vmatpush1.bf16.msra.mxu0 0
        %1642 = vmatprep.subr.bf16.mxu0 0
        %1643 = vmatpush1.bf16.msra.mxu0 0
        %1644 = vmatprep.subr.bf16.mxu0 0
        %1645 = vmatpush1.bf16.msra.mxu0 0
        %1646 = vmatprep.subr.bf16.mxu0 0
        %1647 = vmatpush1.bf16.msra.mxu0 0
        %1648 = vmatprep.subr.bf16.mxu0 0
        %1649 = vmatpush1.bf16.msra.mxu0 0
        %1650 = vmatprep.subr.bf16.mxu0 0
        %1651 = vmatpush1.bf16.msra.mxu0 0
        %1652 = vmatprep.subr.bf16.mxu0 0
        %1653 = vmatpush1.bf16.msra.mxu0 0
        %1654 = vmatprep.subr.bf16.mxu0 0
        %1655 = vmatpush1.bf16.msra.mxu0 0
        %1656 = vmatprep.subr.bf16.mxu0 0
        %1657 = vmatpush1.bf16.msra.mxu0 0
        %1658 = vmatprep.subr.bf16.mxu0 0
        %1659 = vmatpush1.bf16.msra.mxu0 0
        %1660 = vmatprep.subr.bf16.mxu0 0
        %1661 = vmatpush1.bf16.msra.mxu0 0
        %1662 = vmatprep.subr.bf16.mxu0 0
        %1663 = vmatpush1.bf16.msra.mxu0 0
        %1664 = vmatprep.mubr.bf16.mxu0 0
        %1665 = vmatmul.mubr.bf16.gmra.mrb[0].mxu0 %v1627
        %v1666 = vpop.f32.mrb[0].mxu0
        %v1667 = vadd.f32 %v1612, %v1666
        %v1668 = vpop.f32.mrb[0].mxu0
        %v1669 = vpop.f32.mrb[0].mxu0
        %v1670 = vadd.f32 %v1612, %v1669
        %v1671 = vpop.f32.mrb[0].mxu0
        %1672 = vmatprep.mubr.bf16.mxu0 0
        %1673 = vmatmul.mubr.bf16.gmra.mrb[0].mxu0 %v1630
        %v1674 = vpop.f32.mrb[0].mxu0
        %v1675 = vadd.f32 %v1612, %v1674
        %v1676 = vpop.f32.mrb[0].mxu0
        %v1677 = vpop.f32.mrb[0].mxu0
        %v1678 = vpop.f32.mrb[0].mxu0
        %1679 = vdwg.mxu0
        %v1680 = vadd.f32 %v681, %v1667
        %v1681 = vadd.f32 %v684, %v1670
        %v1682 = vadd.f32 %v689, %v1675
        %v1683 = vld [vmem:[%s9] sm:$0x1]
        %v1684 = vld [vmem:[%s10] sm:$0x1]
        %v1685 = vsel %vm700, %v1680, 0.0
        %1686 = vadd.xlane.f32.xlu0 %v1685
        %v1687 = vpop.xlane.xlu0 %1686
        %v1688 = vsel %vm700, %v1681, 0.0
        %1689 = vadd.xlane.f32.xlu0 %v1688
        %v1690 = vpop.xlane.xlu0 %1689
        %v1691 = vsel %vm700, %v1682, 0.0
        %1692 = vadd.xlane.f32.xlu0 %v1691
        %v1693 = vpop.xlane.xlu0 %1692
        %v1694 = vmul.f32 %v1687, %v710
        %v1695 = vmul.f32 %v1690, %v710
        %v1696 = vmul.f32 %v1693, %v710
        %v1697 = vsub.f32 %v1680, %v1694
        %v1698 = vsub.f32 %v1681, %v1695
        %v1699 = vsub.f32 %v1682, %v1696
        %v1700 = vmul.f32 %v1697, %v1697
        %v1701 = vmul.f32 %v1698, %v1698
        %v1702 = vmul.f32 %v1699, %v1699
        %v1703 = vsel %vm700, %v1700, 0.0
        %1704 = vadd.xlane.f32.xlu0 %v1703
        %v1705 = vpop.xlane.xlu0 %1704
        %v1706 = vsel %vm700, %v1701, 0.0
        %1707 = vadd.xlane.f32.xlu0 %v1706
        %v1708 = vpop.xlane.xlu0 %1707
        %v1709 = vsel %vm700, %v1702, 0.0
        %1710 = vadd.xlane.f32.xlu0 %v1709
        %v1711 = vpop.xlane.xlu0 %1710
        %v1712 = vmul.f32 %v1705, %v710
        %v1713 = vmul.f32 %v1708, %v710
        %v1714 = vmul.f32 %v1711, %v710
        %v1715 = vadd.f32 %v1712, 1e-06
        %v1716 = vadd.f32 %v1713, 1e-06
        %v1717 = vadd.f32 %v1714, 1e-06
        %v1718 = vrsqrt.pop %v1715
        %v1719 = vrsqrt.pop %v1716
        %v1720 = vrsqrt.pop %v1717
        %v1721 = vmul.f32 %v1697, %v1718
        %v1722 = vmul.f32 %v1698, %v1719
        %v1723 = vmul.f32 %v1699, %v1720
        %v1725 = vlaneseq
        %v1726 = vshrl.u32 %v1725, 7
        %v1727 = vsub.s32 0, %v1726
        %v1728 = vrot.slane %v1683, %v1727
        %v1730 = vmul.f32 %v1721, %v1728
        %v1731 = vmul.f32 %v1722, %v1728
        %v1732 = vmul.f32 %v1723, %v1728
        %v1734 = vlaneseq
        %v1735 = vshrl.u32 %v1734, 7
        %v1736 = vsub.s32 0, %v1735
        %v1737 = vrot.slane %v1684, %v1736
        %v1739 = vadd.f32 %v1730, %v1737
        %v1740 = vadd.f32 %v1731, %v1737
        %v1741 = vadd.f32 %v1732, %v1737
        %v1742 = vpack.c.bf16 %v1740, %v1739
        %v1743 = vpack.c.bf16 %v1741, %v1741
        %v1744 = vld [vmem:[%s11] sm:$0xf]
        %v1745 = vld [vmem:[%s11 + $0x4] sm:$0xf]
        %v1746 = vld [vmem:[%s11 + $0x8] sm:$0xf]
        %v1747 = vld [vmem:[%s11 + $0xc] sm:$0xf]
        %v1748 = vld [vmem:[%s12] sm:$0x1]
        %v1750 = vlaneseq
        %v1751 = vshrl.u32 %v1750, 7
        %v1752 = vsub.s32 0, %v1751
        %v1753 = vrot.slane %v1748, %v1752
        %v1759 = vunpack.c.l.b16 %v1744
        %v1760 = vunpack.c.l.b16 %v1745
        %v1761 = vunpack.c.l.b16 %v1746
        %v1762 = vunpack.c.l.b16 %v1747
        %v1763 = vpack.c.b16 %v1760, %v1759
        %v1764 = vpack.c.b16 %v1762, %v1761
        %v1768 = vsel %vm700, %v1742, 0
        %v1771 = vsel %vm700, %v1743, 0
        %1773 = vmatprep.subr.bf16.mxu0 0
        %1774 = vmatpush1.bf16.msra.mxu0 %v1763
        %1775 = vmatprep.subr.bf16.mxu0 0
        %1776 = vmatpush1.bf16.msra.mxu0 %v1764
        %1777 = vmatprep.subr.bf16.mxu0 0
        %1778 = vmatpush1.bf16.msra.mxu0 0
        %1779 = vmatprep.subr.bf16.mxu0 0
        %1780 = vmatpush1.bf16.msra.mxu0 0
        %1781 = vmatprep.subr.bf16.mxu0 0
        %1782 = vmatpush1.bf16.msra.mxu0 0
        %1783 = vmatprep.subr.bf16.mxu0 0
        %1784 = vmatpush1.bf16.msra.mxu0 0
        %1785 = vmatprep.subr.bf16.mxu0 0
        %1786 = vmatpush1.bf16.msra.mxu0 0
        %1787 = vmatprep.subr.bf16.mxu0 0
        %1788 = vmatpush1.bf16.msra.mxu0 0
        %1789 = vmatprep.subr.bf16.mxu0 0
        %1790 = vmatpush1.bf16.msra.mxu0 0
        %1791 = vmatprep.subr.bf16.mxu0 0
        %1792 = vmatpush1.bf16.msra.mxu0 0
        %1793 = vmatprep.subr.bf16.mxu0 0
        %1794 = vmatpush1.bf16.msra.mxu0 0
        %1795 = vmatprep.subr.bf16.mxu0 0
        %1796 = vmatpush1.bf16.msra.mxu0 0
        %1797 = vmatprep.subr.bf16.mxu0 0
        %1798 = vmatpush1.bf16.msra.mxu0 0
        %1799 = vmatprep.subr.bf16.mxu0 0
        %1800 = vmatpush1.bf16.msra.mxu0 0
        %1801 = vmatprep.subr.bf16.mxu0 0
        %1802 = vmatpush1.bf16.msra.mxu0 0
        %1803 = vmatprep.subr.bf16.mxu0 0
        %1804 = vmatpush1.bf16.msra.mxu0 0
        %1805 = vmatprep.mubr.bf16.mxu0 0
        %1806 = vmatmul.mubr.bf16.gmra.mrb[0].mxu0 %v1768
        %v1807 = vpop.f32.mrb[0].mxu0
        %v1808 = vadd.f32 %v1753, %v1807
        %v1809 = vpop.f32.mrb[0].mxu0
        %v1810 = vpop.f32.mrb[0].mxu0
        %v1811 = vadd.f32 %v1753, %v1810
        %v1812 = vpop.f32.mrb[0].mxu0
        %1813 = vmatprep.mubr.bf16.mxu0 0
        %1814 = vmatmul.mubr.bf16.gmra.mrb[0].mxu0 %v1771
        %v1815 = vpop.f32.mrb[0].mxu0
        %v1816 = vadd.f32 %v1753, %v1815
        %v1817 = vpop.f32.mrb[0].mxu0
        %v1818 = vpop.f32.mrb[0].mxu0
        %v1819 = vpop.f32.mrb[0].mxu0
        %1820 = vdwg.mxu0
        %v1821 = vmul.f32 %v1808, 0.5
        %v1822 = vmul.f32 %v1811, 0.5
        %v1823 = vmul.f32 %v1816, 0.5
        %v1824 = vmul.f32 %v1808, 0.044715
        %v1825 = vmul.f32 %v1811, 0.044715
        %v1826 = vmul.f32 %v1816, 0.044715
        %v1827 = vmul.f32 %v1824, %v1808
        %v1828 = vmul.f32 %v1825, %v1811
        %v1829 = vmul.f32 %v1826, %v1816
        %v1830 = vmul.f32 %v1827, %v1808
        %v1831 = vmul.f32 %v1828, %v1811
        %v1832 = vmul.f32 %v1829, %v1816
        %v1833 = vadd.f32 %v1808, %v1830
        %v1834 = vadd.f32 %v1811, %v1831
        %v1835 = vadd.f32 %v1816, %v1832
        %v1836 = vmul.f32 %v1833, 0.7978846
        %v1837 = vmul.f32 %v1834, 0.7978846
        %v1838 = vmul.f32 %v1835, 0.7978846
        %v1839 = vtanh.pop %v1836
        %v1840 = vtanh.pop %v1837
        %v1841 = vtanh.pop %v1838
        %v1842 = vadd.f32 %v1839, 1.0
        %v1843 = vadd.f32 %v1840, 1.0
        %v1844 = vadd.f32 %v1841, 1.0
        %v1845 = vmul.f32 %v1821, %v1842
        %v1846 = vmul.f32 %v1822, %v1843
        %v1847 = vmul.f32 %v1823, %v1844
        %v1848 = vpack.c.bf16 %v1846, %v1845
        %v1849 = vpack.c.bf16 %v1847, %v1847
        %v1850 = vld [vmem:[%s13] sm:$0xf]
        %v1851 = vld [vmem:[%s13 + $0x4] sm:$0xf]
        %v1852 = vld [vmem:[%s13 + $0x8] sm:$0xf]
        %v1853 = vld [vmem:[%s13 + $0xc] sm:$0xf]
        %v1854 = vld [vmem:[%s13 + $0x10] sm:$0xf]
        %v1855 = vld [vmem:[%s13 + $0x14] sm:$0xf]
        %v1856 = vld [vmem:[%s13 + $0x18] sm:$0xf]
        %v1857 = vld [vmem:[%s13 + $0x1c] sm:$0xf]
        %v1858 = vld [vmem:[%s13 + $0x20] sm:$0xf]
        %v1859 = vld [vmem:[%s13 + $0x24] sm:$0xf]
        %v1860 = vld [vmem:[%s13 + $0x28] sm:$0xf]
        %v1861 = vld [vmem:[%s13 + $0x2c] sm:$0xf]
        %v1862 = vld [vmem:[%s13 + $0x30] sm:$0xf]
        %v1863 = vld [vmem:[%s13 + $0x34] sm:$0xf]
        %v1864 = vld [vmem:[%s13 + $0x38] sm:$0xf]
        %v1865 = vld [vmem:[%s13 + $0x3c] sm:$0xf]
        %v1866 = vld [vmem:[%s14] sm:$0x1]
        %v1868 = vlaneseq
        %v1869 = vshrl.u32 %v1868, 7
        %v1870 = vsub.s32 0, %v1869
        %v1871 = vrot.slane %v1866, %v1870
        %v1889 = vunpack.c.l.b16 %v1850
        %v1890 = vunpack.c.l.b16 %v1851
        %v1891 = vunpack.c.l.b16 %v1852
        %v1892 = vunpack.c.l.b16 %v1853
        %v1893 = vunpack.c.l.b16 %v1854
        %v1894 = vunpack.c.l.b16 %v1855
        %v1895 = vunpack.c.l.b16 %v1856
        %v1896 = vunpack.c.l.b16 %v1857
        %v1897 = vunpack.c.l.b16 %v1858
        %v1898 = vunpack.c.l.b16 %v1859
        %v1899 = vunpack.c.l.b16 %v1860
        %v1900 = vunpack.c.l.b16 %v1861
        %v1901 = vunpack.c.l.b16 %v1862
        %v1902 = vunpack.c.l.b16 %v1863
        %v1903 = vunpack.c.l.b16 %v1864
        %v1904 = vunpack.c.l.b16 %v1865
        %v1905 = vpack.c.b16 %v1890, %v1889
        %v1906 = vpack.c.b16 %v1892, %v1891
        %v1907 = vpack.c.b16 %v1894, %v1893
        %v1908 = vpack.c.b16 %v1896, %v1895
        %v1909 = vpack.c.b16 %v1898, %v1897
        %v1910 = vpack.c.b16 %v1900, %v1899
        %v1911 = vpack.c.b16 %v1902, %v1901
        %v1912 = vpack.c.b16 %v1904, %v1903
        %1921 = vmatprep.subr.bf16.mxu0 0
        %1922 = vmatpush1.bf16.msra.mxu0 %v1905
        %1923 = vmatprep.subr.bf16.mxu0 0
        %1924 = vmatpush1.bf16.msra.mxu0 %v1906
        %1925 = vmatprep.subr.bf16.mxu0 0
        %1926 = vmatpush1.bf16.msra.mxu0 %v1907
        %1927 = vmatprep.subr.bf16.mxu0 0
        %1928 = vmatpush1.bf16.msra.mxu0 %v1908
        %1929 = vmatprep.subr.bf16.mxu0 0
        %1930 = vmatpush1.bf16.msra.mxu0 %v1909
        %1931 = vmatprep.subr.bf16.mxu0 0
        %1932 = vmatpush1.bf16.msra.mxu0 %v1910
        %1933 = vmatprep.subr.bf16.mxu0 0
        %1934 = vmatpush1.bf16.msra.mxu0 %v1911
        %1935 = vmatprep.subr.bf16.mxu0 0
        %1936 = vmatpush1.bf16.msra.mxu0 %v1912
        %1937 = vmatprep.subr.bf16.mxu0 0
        %1938 = vmatpush1.bf16.msra.mxu0 0
        %1939 = vmatprep.subr.bf16.mxu0 0
        %1940 = vmatpush1.bf16.msra.mxu0 0
        %1941 = vmatprep.subr.bf16.mxu0 0
        %1942 = vmatpush1.bf16.msra.mxu0 0
        %1943 = vmatprep.subr.bf16.mxu0 0
        %1944 = vmatpush1.bf16.msra.mxu0 0
        %1945 = vmatprep.subr.bf16.mxu0 0
        %1946 = vmatpush1.bf16.msra.mxu0 0
        %1947 = vmatprep.subr.bf16.mxu0 0
        %1948 = vmatpush1.bf16.msra.mxu0 0
        %1949 = vmatprep.subr.bf16.mxu0 0
        %1950 = vmatpush1.bf16.msra.mxu0 0
        %1951 = vmatprep.subr.bf16.mxu0 0
        %1952 = vmatpush1.bf16.msra.mxu0 0
        %1953 = vmatprep.mubr.bf16.mxu0 0
        %1954 = vmatmul.mubr.bf16.gmra.mrb[0].mxu0 %v1848
        %v1955 = vpop.f32.mrb[0].mxu0
        %v1956 = vadd.f32 %v1871, %v1955
        %v1957 = vpop.f32.mrb[0].mxu0
        %v1958 = vpop.f32.mrb[0].mxu0
        %v1959 = vadd.f32 %v1871, %v1958
        %v1960 = vpop.f32.mrb[0].mxu0
        %1961 = vmatprep.mubr.bf16.mxu0 0
        %1962 = vmatmul.mubr.bf16.gmra.mrb[0].mxu0 %v1849
        %v1963 = vpop.f32.mrb[0].mxu0
        %v1964 = vadd.f32 %v1871, %v1963
        %v1965 = vpop.f32.mrb[0].mxu0
        %v1966 = vpop.f32.mrb[0].mxu0
        %v1967 = vpop.f32.mrb[0].mxu0
        %1968 = vdwg.mxu0
        %v1969 = vadd.f32 %v1680, %v1956
        %v1970 = vadd.f32 %v1681, %v1959
        %v1971 = vadd.f32 %v1682, %v1964
        %s1972 = scalar_lea.vmem %s3, 1
        %v1973 = vld [vmem:[%s1972] sm:$0x1]
        %s1974 = scalar_lea.vmem %s4, 1
        %v1975 = vld [vmem:[%s1974] sm:$0x1]
        %v1976 = vsel %vm700, %v1969, 0.0
        %1977 = vadd.xlane.f32.xlu0 %v1976
        %v1978 = vpop.xlane.xlu0 %1977
        %v1979 = vsel %vm700, %v1970, 0.0
        %1980 = vadd.xlane.f32.xlu0 %v1979
        %v1981 = vpop.xlane.xlu0 %1980
        %v1982 = vsel %vm700, %v1971, 0.0
        %1983 = vadd.xlane.f32.xlu0 %v1982
        %v1984 = vpop.xlane.xlu0 %1983
        %v1985 = vmul.f32 %v1978, %v710
        %v1986 = vmul.f32 %v1981, %v710
        %v1987 = vmul.f32 %v1984, %v710
        %v1988 = vsub.f32 %v1969, %v1985
        %v1989 = vsub.f32 %v1970, %v1986
        %v1990 = vsub.f32 %v1971, %v1987
        %v1991 = vmul.f32 %v1988, %v1988
        %v1992 = vmul.f32 %v1989, %v1989
        %v1993 = vmul.f32 %v1990, %v1990
        %v1994 = vsel %vm700, %v1991, 0.0
        %1995 = vadd.xlane.f32.xlu0 %v1994
        %v1996 = vpop.xlane.xlu0 %1995
        %v1997 = vsel %vm700, %v1992, 0.0
        %1998 = vadd.xlane.f32.xlu0 %v1997
        %v1999 = vpop.xlane.xlu0 %1998
        %v2000 = vsel %vm700, %v1993, 0.0
        %2001 = vadd.xlane.f32.xlu0 %v2000
        %v2002 = vpop.xlane.xlu0 %2001
        %v2003 = vmul.f32 %v1996, %v710
        %v2004 = vmul.f32 %v1999, %v710
        %v2005 = vmul.f32 %v2002, %v710
        %v2006 = vadd.f32 %v2003, 1e-06
        %v2007 = vadd.f32 %v2004, 1e-06
        %v2008 = vadd.f32 %v2005, 1e-06
        %v2009 = vrsqrt.pop %v2006
        %v2010 = vrsqrt.pop %v2007
        %v2011 = vrsqrt.pop %v2008
        %v2012 = vmul.f32 %v1988, %v2009
        %v2013 = vmul.f32 %v1989, %v2010
        %v2014 = vmul.f32 %v1990, %v2011
        %v2016 = vlaneseq
        %v2017 = vshrl.u32 %v2016, 7
        %v2018 = vsub.s32 0, %v2017
        %v2019 = vrot.slane %v1973, %v2018
        %v2021 = vmul.f32 %v2012, %v2019
        %v2022 = vmul.f32 %v2013, %v2019
        %v2023 = vmul.f32 %v2014, %v2019
        %v2025 = vlaneseq
        %v2026 = vshrl.u32 %v2025, 7
        %v2027 = vsub.s32 0, %v2026
        %v2028 = vrot.slane %v1975, %v2027
        %v2030 = vadd.f32 %v2021, %v2028
        %v2031 = vadd.f32 %v2022, %v2028
        %v2032 = vadd.f32 %v2023, %v2028
        %v2033 = vpack.c.bf16 %v2031, %v2030
        %v2034 = vpack.c.bf16 %v2032, %v2032
        %s2035 = scalar_lea.vmem %s5, 16
        %v2036 = vld [vmem:[%s2035] sm:$0xf]
        %v2037 = vld [vmem:[%s2035 + $0x4] sm:$0xf]
        %v2038 = vld [vmem:[%s2035 + $0x8] sm:$0xf]
        %v2039 = vld [vmem:[%s2035 + $0xc] sm:$0xf]
        %s2040 = scalar_lea.vmem %s6, 1
        %v2041 = vld [vmem:[%s2040] sm:$0x1]
        %v2043 = vlaneseq
        %v2044 = vshrl.u32 %v2043, 7
        %v2045 = vsub.s32 0, %v2044
        %v2046 = vrot.slane %v2041, %v2045
        %v2052 = vunpack.c.l.b16 %v2036
        %v2053 = vunpack.c.l.b16 %v2037
        %v2054 = vunpack.c.l.b16 %v2038
        %v2055 = vunpack.c.l.b16 %v2039
        %v2056 = vpack.c.b16 %v2053, %v2052
        %v2057 = vpack.c.b16 %v2055, %v2054
        %v2061 = vsel %vm700, %v2033, 0
        %v2064 = vsel %vm700, %v2034, 0
        %2066 = vmatprep.subr.bf16.mxu0 0
        %2067 = vmatpush1.bf16.msra.mxu0 %v2056
        %2068 = vmatprep.subr.bf16.mxu0 0
        %2069 = vmatpush1.bf16.msra.mxu0 %v2057
        %2070 = vmatprep.subr.bf16.mxu0 0
        %2071 = vmatpush1.bf16.msra.mxu0 0
        %2072 = vmatprep.subr.bf16.mxu0 0
        %2073 = vmatpush1.bf16.msra.mxu0 0
        %2074 = vmatprep.subr.bf16.mxu0 0
        %2075 = vmatpush1.bf16.msra.mxu0 0
        %2076 = vmatprep.subr.bf16.mxu0 0
        %2077 = vmatpush1.bf16.msra.mxu0 0
        %2078 = vmatprep.subr.bf16.mxu0 0
        %2079 = vmatpush1.bf16.msra.mxu0 0
        %2080 = vmatprep.subr.bf16.mxu0 0
        %2081 = vmatpush1.bf16.msra.mxu0 0
        %2082 = vmatprep.subr.bf16.mxu0 0
        %2083 = vmatpush1.bf16.msra.mxu0 0
        %2084 = vmatprep.subr.bf16.mxu0 0
        %2085 = vmatpush1.bf16.msra.mxu0 0
        %2086 = vmatprep.subr.bf16.mxu0 0
        %2087 = vmatpush1.bf16.msra.mxu0 0
        %2088 = vmatprep.subr.bf16.mxu0 0
        %2089 = vmatpush1.bf16.msra.mxu0 0
        %2090 = vmatprep.subr.bf16.mxu0 0
        %2091 = vmatpush1.bf16.msra.mxu0 0
        %2092 = vmatprep.subr.bf16.mxu0 0
        %2093 = vmatpush1.bf16.msra.mxu0 0
        %2094 = vmatprep.subr.bf16.mxu0 0
        %2095 = vmatpush1.bf16.msra.mxu0 0
        %2096 = vmatprep.subr.bf16.mxu0 0
        %2097 = vmatpush1.bf16.msra.mxu0 0
        %2098 = vmatprep.mubr.bf16.mxu0 0
        %2099 = vmatmul.mubr.bf16.gmra.mrb[0].mxu0 %v2061
        %v2100 = vpop.f32.mrb[0].mxu0
        %v2101 = vadd.f32 %v2046, %v2100
        %v2102 = vpop.f32.mrb[0].mxu0
        %v2103 = vpop.f32.mrb[0].mxu0
        %v2104 = vadd.f32 %v2046, %v2103
        %v2105 = vpop.f32.mrb[0].mxu0
        %2106 = vmatprep.mubr.bf16.mxu0 0
        %2107 = vmatmul.mubr.bf16.gmra.mrb[0].mxu0 %v2064
        %v2108 = vpop.f32.mrb[0].mxu0
        %v2109 = vadd.f32 %v2046, %v2108
        %v2110 = vpop.f32.mrb[0].mxu0
        %v2111 = vpop.f32.mrb[0].mxu0
        %v2112 = vpop.f32.mrb[0].mxu0
        %2113 = vdwg.mxu0
        %2117 = vrot.lane.b32.xlu0 %v2101, 120
        %v2118 = vpop.permute.xlu0 %2117
        %2119 = vrot.lane.b32.xlu0 %v2104, 120
        %v2120 = vpop.permute.xlu0 %2119
        %2121 = vrot.lane.b32.xlu0 %v2109, 120
        %v2122 = vpop.permute.xlu0 %2121
        %2126 = vrot.lane.b32.xlu0 %v2101, 112
        %v2127 = vpop.permute.xlu0 %2126
        %2128 = vrot.lane.b32.xlu0 %v2104, 112
        %v2129 = vpop.permute.xlu0 %2128
        %2130 = vrot.lane.b32.xlu0 %v2109, 112
        %v2131 = vpop.permute.xlu0 %2130
        %2135 = vrot.lane.b32.xlu0 %v2101, 104
        %v2136 = vpop.permute.xlu0 %2135
        %2137 = vrot.lane.b32.xlu0 %v2104, 104
        %v2138 = vpop.permute.xlu0 %2137
        %2139 = vrot.lane.b32.xlu0 %v2109, 104
        %v2140 = vpop.permute.xlu0 %2139
        %v2144 = vpack.c.bf16 %v2104, %v2101
        %v2145 = vpack.c.bf16 %v2109, %v2109
        %v2146 = vpack.c.bf16 %v2120, %v2118
        %v2147 = vpack.c.bf16 %v2122, %v2122
        %v2148 = vpack.c.bf16 %v2129, %v2127
        %v2149 = vpack.c.bf16 %v2131, %v2131
        %v2150 = vpack.c.bf16 %v2138, %v2136
        %v2151 = vpack.c.bf16 %v2140, %v2140
        %2154 = vrot.lane.b32.xlu0 %v2144, 96
        %v2155 = vpop.permute.xlu0 %2154
        %2156 = vrot.lane.b32.xlu0 %v2145, 96
        %v2157 = vpop.permute.xlu0 %2156
        %v2159 = vsel %vm882, %v2144, 0
        %v2162 = vsel %vm882, %v2145, 0
        %v2165 = vsel %vm882, %v2155, 0
        %v2168 = vsel %vm882, %v2157, 0
        %2170 = vmatprep.subr.bf16.mxu0 0
        %2171 = vmatpush1.bf16.xpose.msra.mxu0 %v2165
        %2172 = vmatprep.subr.bf16.mxu0 0
        %2173 = vmatpush1.bf16.xpose.msra.mxu0 %v2168
        %2174 = vmatprep.subr.bf16.mxu0 0
        %2175 = vmatpush1.bf16.xpose.msra.mxu0 0
        %2176 = vmatprep.subr.bf16.mxu0 0
        %2177 = vmatpush1.bf16.xpose.msra.mxu0 0
        %2178 = vmatprep.subr.bf16.mxu0 0
        %2179 = vmatpush1.bf16.xpose.msra.mxu0 0
        %2180 = vmatprep.subr.bf16.mxu0 0
        %2181 = vmatpush1.bf16.xpose.msra.mxu0 0
        %2182 = vmatprep.subr.bf16.mxu0 0
        %2183 = vmatpush1.bf16.xpose.msra.mxu0 0
        %2184 = vmatprep.subr.bf16.mxu0 0
        %2185 = vmatpush1.bf16.xpose.msra.mxu0 0
        %2186 = vmatprep.subr.bf16.mxu0 0
        %2187 = vmatpush1.bf16.xpose.msra.mxu0 0
        %2188 = vmatprep.subr.bf16.mxu0 0
        %2189 = vmatpush1.bf16.xpose.msra.mxu0 0
        %2190 = vmatprep.subr.bf16.mxu0 0
        %2191 = vmatpush1.bf16.xpose.msra.mxu0 0
        %2192 = vmatprep.subr.bf16.mxu0 0
        %2193 = vmatpush1.bf16.xpose.msra.mxu0 0
        %2194 = vmatprep.subr.bf16.mxu0 0
        %2195 = vmatpush1.bf16.xpose.msra.mxu0 0
        %2196 = vmatprep.subr.bf16.mxu0 0
        %2197 = vmatpush1.bf16.xpose.msra.mxu0 0
        %2198 = vmatprep.subr.bf16.mxu0 0
        %2199 = vmatpush1.bf16.xpose.msra.mxu0 0
        %2200 = vmatprep.subr.bf16.mxu0 0
        %2201 = vmatpush1.bf16.xpose.msra.mxu0 0
        %2202 = vmatprep.mubr.bf16.mxu0 0
        %2203 = vmatmul.mubr.bf16.gmra.mrb[0].mxu0 %v2159
        %v2204 = vpop.f32.mrb[0].mxu0
        %v2205 = vadd.f32 0.0, %v2204
        %v2206 = vpop.f32.mrb[0].mxu0
        %v2207 = vpop.f32.mrb[0].mxu0
        %v2208 = vadd.f32 0.0, %v2207
        %v2209 = vpop.f32.mrb[0].mxu0
        %2210 = vmatprep.mubr.bf16.mxu0 0
        %2211 = vmatmul.mubr.bf16.gmra.mrb[0].mxu0 %v2162
        %v2212 = vpop.f32.mrb[0].mxu0
        %v2213 = vadd.f32 0.0, %v2212
        %v2214 = vpop.f32.mrb[0].mxu0
        %v2215 = vpop.f32.mrb[0].mxu0
        %v2216 = vpop.f32.mrb[0].mxu0
        %2217 = vdwg.mxu0
        %2220 = vrot.lane.b32.xlu0 %v2146, 96
        %v2221 = vpop.permute.xlu0 %2220
        %2222 = vrot.lane.b32.xlu0 %v2147, 96
        %v2223 = vpop.permute.xlu0 %2222
        %v2225 = vsel %vm882, %v2146, 0
        %v2228 = vsel %vm882, %v2147, 0
        %v2231 = vsel %vm882, %v2221, 0
        %v2234 = vsel %vm882, %v2223, 0
        %2236 = vmatprep.subr.bf16.mxu0 0
        %2237 = vmatpush1.bf16.xpose.msra.mxu0 %v2231
        %2238 = vmatprep.subr.bf16.mxu0 0
        %2239 = vmatpush1.bf16.xpose.msra.mxu0 %v2234
        %2240 = vmatprep.subr.bf16.mxu0 0
        %2241 = vmatpush1.bf16.xpose.msra.mxu0 0
        %2242 = vmatprep.subr.bf16.mxu0 0
        %2243 = vmatpush1.bf16.xpose.msra.mxu0 0
        %2244 = vmatprep.subr.bf16.mxu0 0
        %2245 = vmatpush1.bf16.xpose.msra.mxu0 0
        %2246 = vmatprep.subr.bf16.mxu0 0
        %2247 = vmatpush1.bf16.xpose.msra.mxu0 0
        %2248 = vmatprep.subr.bf16.mxu0 0
        %2249 = vmatpush1.bf16.xpose.msra.mxu0 0
        %2250 = vmatprep.subr.bf16.mxu0 0
        %2251 = vmatpush1.bf16.xpose.msra.mxu0 0
        %2252 = vmatprep.subr.bf16.mxu0 0
        %2253 = vmatpush1.bf16.xpose.msra.mxu0 0
        %2254 = vmatprep.subr.bf16.mxu0 0
        %2255 = vmatpush1.bf16.xpose.msra.mxu0 0
        %2256 = vmatprep.subr.bf16.mxu0 0
        %2257 = vmatpush1.bf16.xpose.msra.mxu0 0
        %2258 = vmatprep.subr.bf16.mxu0 0
        %2259 = vmatpush1.bf16.xpose.msra.mxu0 0
        %2260 = vmatprep.subr.bf16.mxu0 0
        %2261 = vmatpush1.bf16.xpose.msra.mxu0 0
        %2262 = vmatprep.subr.bf16.mxu0 0
        %2263 = vmatpush1.bf16.xpose.msra.mxu0 0
        %2264 = vmatprep.subr.bf16.mxu0 0
        %2265 = vmatpush1.bf16.xpose.msra.mxu0 0
        %2266 = vmatprep.subr.bf16.mxu0 0
        %2267 = vmatpush1.bf16.xpose.msra.mxu0 0
        %2268 = vmatprep.mubr.bf16.mxu0 0
        %2269 = vmatmul.mubr.bf16.gmra.mrb[0].mxu0 %v2225
        %v2270 = vpop.f32.mrb[0].mxu0
        %v2271 = vadd.f32 0.0, %v2270
        %v2272 = vpop.f32.mrb[0].mxu0
        %v2273 = vpop.f32.mrb[0].mxu0
        %v2274 = vadd.f32 0.0, %v2273
        %v2275 = vpop.f32.mrb[0].mxu0
        %2276 = vmatprep.mubr.bf16.mxu0 0
        %2277 = vmatmul.mubr.bf16.gmra.mrb[0].mxu0 %v2228
        %v2278 = vpop.f32.mrb[0].mxu0
        %v2279 = vadd.f32 0.0, %v2278
        %v2280 = vpop.f32.mrb[0].mxu0
        %v2281 = vpop.f32.mrb[0].mxu0
        %v2282 = vpop.f32.mrb[0].mxu0
        %2283 = vdwg.mxu0
        %2286 = vrot.lane.b32.xlu0 %v2148, 96
        %v2287 = vpop.permute.xlu0 %2286
        %2288 = vrot.lane.b32.xlu0 %v2149, 96
        %v2289 = vpop.permute.xlu0 %2288
        %v2291 = vsel %vm882, %v2148, 0
        %v2294 = vsel %vm882, %v2149, 0
        %v2297 = vsel %vm882, %v2287, 0
        %v2300 = vsel %vm882, %v2289, 0
        %2302 = vmatprep.subr.bf16.mxu0 0
        %2303 = vmatpush1.bf16.xpose.msra.mxu0 %v2297
        %2304 = vmatprep.subr.bf16.mxu0 0
        %2305 = vmatpush1.bf16.xpose.msra.mxu0 %v2300
        %2306 = vmatprep.subr.bf16.mxu0 0
        %2307 = vmatpush1.bf16.xpose.msra.mxu0 0
        %2308 = vmatprep.subr.bf16.mxu0 0
        %2309 = vmatpush1.bf16.xpose.msra.mxu0 0
        %2310 = vmatprep.subr.bf16.mxu0 0
        %2311 = vmatpush1.bf16.xpose.msra.mxu0 0
        %2312 = vmatprep.subr.bf16.mxu0 0
        %2313 = vmatpush1.bf16.xpose.msra.mxu0 0
        %2314 = vmatprep.subr.bf16.mxu0 0
        %2315 = vmatpush1.bf16.xpose.msra.mxu0 0
        %2316 = vmatprep.subr.bf16.mxu0 0
        %2317 = vmatpush1.bf16.xpose.msra.mxu0 0
        %2318 = vmatprep.subr.bf16.mxu0 0
        %2319 = vmatpush1.bf16.xpose.msra.mxu0 0
        %2320 = vmatprep.subr.bf16.mxu0 0
        %2321 = vmatpush1.bf16.xpose.msra.mxu0 0
        %2322 = vmatprep.subr.bf16.mxu0 0
        %2323 = vmatpush1.bf16.xpose.msra.mxu0 0
        %2324 = vmatprep.subr.bf16.mxu0 0
        %2325 = vmatpush1.bf16.xpose.msra.mxu0 0
        %2326 = vmatprep.subr.bf16.mxu0 0
        %2327 = vmatpush1.bf16.xpose.msra.mxu0 0
        %2328 = vmatprep.subr.bf16.mxu0 0
        %2329 = vmatpush1.bf16.xpose.msra.mxu0 0
        %2330 = vmatprep.subr.bf16.mxu0 0
        %2331 = vmatpush1.bf16.xpose.msra.mxu0 0
        %2332 = vmatprep.subr.bf16.mxu0 0
        %2333 = vmatpush1.bf16.xpose.msra.mxu0 0
        %2334 = vmatprep.mubr.bf16.mxu0 0
        %2335 = vmatmul.mubr.bf16.gmra.mrb[0].mxu0 %v2291
        %v2336 = vpop.f32.mrb[0].mxu0
        %v2337 = vadd.f32 0.0, %v2336
        %v2338 = vpop.f32.mrb[0].mxu0
        %v2339 = vpop.f32.mrb[0].mxu0
        %v2340 = vadd.f32 0.0, %v2339
        %v2341 = vpop.f32.mrb[0].mxu0
        %2342 = vmatprep.mubr.bf16.mxu0 0
        %2343 = vmatmul.mubr.bf16.gmra.mrb[0].mxu0 %v2294
        %v2344 = vpop.f32.mrb[0].mxu0
        %v2345 = vadd.f32 0.0, %v2344
        %v2346 = vpop.f32.mrb[0].mxu0
        %v2347 = vpop.f32.mrb[0].mxu0
        %v2348 = vpop.f32.mrb[0].mxu0
        %2349 = vdwg.mxu0
        %2352 = vrot.lane.b32.xlu0 %v2150, 96
        %v2353 = vpop.permute.xlu0 %2352
        %2354 = vrot.lane.b32.xlu0 %v2151, 96
        %v2355 = vpop.permute.xlu0 %2354
        %v2357 = vsel %vm882, %v2150, 0
        %v2360 = vsel %vm882, %v2151, 0
        %v2363 = vsel %vm882, %v2353, 0
        %v2366 = vsel %vm882, %v2355, 0
        %2368 = vmatprep.subr.bf16.mxu0 0
        %2369 = vmatpush1.bf16.xpose.msra.mxu0 %v2363
        %2370 = vmatprep.subr.bf16.mxu0 0
        %2371 = vmatpush1.bf16.xpose.msra.mxu0 %v2366
        %2372 = vmatprep.subr.bf16.mxu0 0
        %2373 = vmatpush1.bf16.xpose.msra.mxu0 0
        %2374 = vmatprep.subr.bf16.mxu0 0
        %2375 = vmatpush1.bf16.xpose.msra.mxu0 0
        %2376 = vmatprep.subr.bf16.mxu0 0
        %2377 = vmatpush1.bf16.xpose.msra.mxu0 0
        %2378 = vmatprep.subr.bf16.mxu0 0
        %2379 = vmatpush1.bf16.xpose.msra.mxu0 0
        %2380 = vmatprep.subr.bf16.mxu0 0
        %2381 = vmatpush1.bf16.xpose.msra.mxu0 0
        %2382 = vmatprep.subr.bf16.mxu0 0
        %2383 = vmatpush1.bf16.xpose.msra.mxu0 0
        %2384 = vmatprep.subr.bf16.mxu0 0
        %2385 = vmatpush1.bf16.xpose.msra.mxu0 0
        %2386 = vmatprep.subr.bf16.mxu0 0
        %2387 = vmatpush1.bf16.xpose.msra.mxu0 0
        %2388 = vmatprep.subr.bf16.mxu0 0
        %2389 = vmatpush1.bf16.xpose.msra.mxu0 0
        %2390 = vmatprep.subr.bf16.mxu0 0
        %2391 = vmatpush1.bf16.xpose.msra.mxu0 0
        %2392 = vmatprep.subr.bf16.mxu0 0
        %2393 = vmatpush1.bf16.xpose.msra.mxu0 0
        %2394 = vmatprep.subr.bf16.mxu0 0
        %2395 = vmatpush1.bf16.xpose.msra.mxu0 0
        %2396 = vmatprep.subr.bf16.mxu0 0
        %2397 = vmatpush1.bf16.xpose.msra.mxu0 0
        %2398 = vmatprep.subr.bf16.mxu0 0
        %2399 = vmatpush1.bf16.xpose.msra.mxu0 0
        %2400 = vmatprep.mubr.bf16.mxu0 0
        %2401 = vmatmul.mubr.bf16.gmra.mrb[0].mxu0 %v2357
        %v2402 = vpop.f32.mrb[0].mxu0
        %v2403 = vadd.f32 0.0, %v2402
        %v2404 = vpop.f32.mrb[0].mxu0
        %v2405 = vpop.f32.mrb[0].mxu0
        %v2406 = vadd.f32 0.0, %v2405
        %v2407 = vpop.f32.mrb[0].mxu0
        %2408 = vmatprep.mubr.bf16.mxu0 0
        %2409 = vmatmul.mubr.bf16.gmra.mrb[0].mxu0 %v2360
        %v2410 = vpop.f32.mrb[0].mxu0
        %v2411 = vadd.f32 0.0, %v2410
        %v2412 = vpop.f32.mrb[0].mxu0
        %v2413 = vpop.f32.mrb[0].mxu0
        %v2414 = vpop.f32.mrb[0].mxu0
        %2415 = vdwg.mxu0
        %v2416 = vmul.f32 %v2205, 0.35355338
        %v2417 = vmul.f32 %v2208, 0.35355338
        %v2418 = vmul.f32 %v2213, 0.35355338
        %v2419 = vmul.f32 %v2271, 0.35355338
        %v2420 = vmul.f32 %v2274, 0.35355338
        %v2421 = vmul.f32 %v2279, 0.35355338
        %v2422 = vmul.f32 %v2337, 0.35355338
        %v2423 = vmul.f32 %v2340, 0.35355338
        %v2424 = vmul.f32 %v2345, 0.35355338
        %v2425 = vmul.f32 %v2403, 0.35355338
        %v2426 = vmul.f32 %v2406, 0.35355338
        %v2427 = vmul.f32 %v2411, 0.35355338
        %v2428 = vadd.f32 %v2416, %v697
        %v2429 = vadd.f32 %v2417, %v697
        %v2430 = vadd.f32 %v2418, %v697
        %v2431 = vadd.f32 %v2419, %v697
        %v2432 = vadd.f32 %v2420, %v697
        %v2433 = vadd.f32 %v2421, %v697
        %v2434 = vadd.f32 %v2422, %v697
        %v2435 = vadd.f32 %v2423, %v697
        %v2436 = vadd.f32 %v2424, %v697
        %v2437 = vadd.f32 %v2425, %v697
        %v2438 = vadd.f32 %v2426, %v697
        %v2439 = vadd.f32 %v2427, %v697
        %v2440 = vsel %vm1165, %v2428, -inf
        %2441 = vmax.xlane.f32.xlu0 %v2440
        %v2442 = vpop.xlane.xlu0 %2441
        %v2443 = vsel %vm1165, %v2429, -inf
        %2444 = vmax.xlane.f32.xlu0 %v2443
        %v2445 = vpop.xlane.xlu0 %2444
        %v2446 = vsel %vm1165, %v2430, -inf
        %2447 = vmax.xlane.f32.xlu0 %v2446
        %v2448 = vpop.xlane.xlu0 %2447
        %v2449 = vsel %vm1165, %v2431, -inf
        %2450 = vmax.xlane.f32.xlu0 %v2449
        %v2451 = vpop.xlane.xlu0 %2450
        %v2452 = vsel %vm1165, %v2432, -inf
        %2453 = vmax.xlane.f32.xlu0 %v2452
        %v2454 = vpop.xlane.xlu0 %2453
        %v2455 = vsel %vm1165, %v2433, -inf
        %2456 = vmax.xlane.f32.xlu0 %v2455
        %v2457 = vpop.xlane.xlu0 %2456
        %v2458 = vsel %vm1165, %v2434, -inf
        %2459 = vmax.xlane.f32.xlu0 %v2458
        %v2460 = vpop.xlane.xlu0 %2459
        %v2461 = vsel %vm1165, %v2435, -inf
        %2462 = vmax.xlane.f32.xlu0 %v2461
        %v2463 = vpop.xlane.xlu0 %2462
        %v2464 = vsel %vm1165, %v2436, -inf
        %2465 = vmax.xlane.f32.xlu0 %v2464
        %v2466 = vpop.xlane.xlu0 %2465
        %v2467 = vsel %vm1165, %v2437, -inf
        %2468 = vmax.xlane.f32.xlu0 %v2467
        %v2469 = vpop.xlane.xlu0 %2468
        %v2470 = vsel %vm1165, %v2438, -inf
        %2471 = vmax.xlane.f32.xlu0 %v2470
        %v2472 = vpop.xlane.xlu0 %2471
        %v2473 = vsel %vm1165, %v2439, -inf
        %2474 = vmax.xlane.f32.xlu0 %v2473
        %v2475 = vpop.xlane.xlu0 %2474
        %v2476 = vsub.f32 %v2428, %v2442
        %v2477 = vsub.f32 %v2429, %v2445
        %v2478 = vsub.f32 %v2430, %v2448
        %v2479 = vsub.f32 %v2431, %v2451
        %v2480 = vsub.f32 %v2432, %v2454
        %v2481 = vsub.f32 %v2433, %v2457
        %v2482 = vsub.f32 %v2434, %v2460
        %v2483 = vsub.f32 %v2435, %v2463
        %v2484 = vsub.f32 %v2436, %v2466
        %v2485 = vsub.f32 %v2437, %v2469
        %v2486 = vsub.f32 %v2438, %v2472
        %v2487 = vsub.f32 %v2439, %v2475
        %v2488 = vmul.f32 %v2476, 1.442695
        %v2489 = vpow.pop %v2488
        %v2490 = vmul.f32 %v2477, 1.442695
        %v2491 = vpow.pop %v2490
        %v2492 = vmul.f32 %v2478, 1.442695
        %v2493 = vpow.pop %v2492
        %v2494 = vmul.f32 %v2479, 1.442695
        %v2495 = vpow.pop %v2494
        %v2496 = vmul.f32 %v2480, 1.442695
        %v2497 = vpow.pop %v2496
        %v2498 = vmul.f32 %v2481, 1.442695
        %v2499 = vpow.pop %v2498
        %v2500 = vmul.f32 %v2482, 1.442695
        %v2501 = vpow.pop %v2500
        %v2502 = vmul.f32 %v2483, 1.442695
        %v2503 = vpow.pop %v2502
        %v2504 = vmul.f32 %v2484, 1.442695
        %v2505 = vpow.pop %v2504
        %v2506 = vmul.f32 %v2485, 1.442695
        %v2507 = vpow.pop %v2506
        %v2508 = vmul.f32 %v2486, 1.442695
        %v2509 = vpow.pop %v2508
        %v2510 = vmul.f32 %v2487, 1.442695
        %v2511 = vpow.pop %v2510
        %v2512 = vsel %vm1165, %v2489, 0.0
        %2513 = vadd.xlane.f32.xlu0 %v2512
        %v2514 = vpop.xlane.xlu0 %2513
        %v2515 = vsel %vm1165, %v2491, 0.0
        %2516 = vadd.xlane.f32.xlu0 %v2515
        %v2517 = vpop.xlane.xlu0 %2516
        %v2518 = vsel %vm1165, %v2493, 0.0
        %2519 = vadd.xlane.f32.xlu0 %v2518
        %v2520 = vpop.xlane.xlu0 %2519
        %v2521 = vsel %vm1165, %v2495, 0.0
        %2522 = vadd.xlane.f32.xlu0 %v2521
        %v2523 = vpop.xlane.xlu0 %2522
        %v2524 = vsel %vm1165, %v2497, 0.0
        %2525 = vadd.xlane.f32.xlu0 %v2524
        %v2526 = vpop.xlane.xlu0 %2525
        %v2527 = vsel %vm1165, %v2499, 0.0
        %2528 = vadd.xlane.f32.xlu0 %v2527
        %v2529 = vpop.xlane.xlu0 %2528
        %v2530 = vsel %vm1165, %v2501, 0.0
        %2531 = vadd.xlane.f32.xlu0 %v2530
        %v2532 = vpop.xlane.xlu0 %2531
        %v2533 = vsel %vm1165, %v2503, 0.0
        %2534 = vadd.xlane.f32.xlu0 %v2533
        %v2535 = vpop.xlane.xlu0 %2534
        %v2536 = vsel %vm1165, %v2505, 0.0
        %2537 = vadd.xlane.f32.xlu0 %v2536
        %v2538 = vpop.xlane.xlu0 %2537
        %v2539 = vsel %vm1165, %v2507, 0.0
        %2540 = vadd.xlane.f32.xlu0 %v2539
        %v2541 = vpop.xlane.xlu0 %2540
        %v2542 = vsel %vm1165, %v2509, 0.0
        %2543 = vadd.xlane.f32.xlu0 %v2542
        %v2544 = vpop.xlane.xlu0 %2543
        %v2545 = vsel %vm1165, %v2511, 0.0
        %2546 = vadd.xlane.f32.xlu0 %v2545
        %v2547 = vpop.xlane.xlu0 %2546
        %v2548 = vrcp.pop %v2514
        %v2549 = vrcp.pop %v2517
        %v2550 = vrcp.pop %v2520
        %v2551 = vrcp.pop %v2523
        %v2552 = vrcp.pop %v2526
        %v2553 = vrcp.pop %v2529
        %v2554 = vrcp.pop %v2532
        %v2555 = vrcp.pop %v2535
        %v2556 = vrcp.pop %v2538
        %v2557 = vrcp.pop %v2541
        %v2558 = vrcp.pop %v2544
        %v2559 = vrcp.pop %v2547
        %v2560 = vmul.f32 %v2489, %v2548
        %v2561 = vmul.f32 %v2491, %v2549
        %v2562 = vmul.f32 %v2493, %v2550
        %v2563 = vmul.f32 %v2495, %v2551
        %v2564 = vmul.f32 %v2497, %v2552
        %v2565 = vmul.f32 %v2499, %v2553
        %v2566 = vmul.f32 %v2501, %v2554
        %v2567 = vmul.f32 %v2503, %v2555
        %v2568 = vmul.f32 %v2505, %v2556
        %v2569 = vmul.f32 %v2507, %v2557
        %v2570 = vmul.f32 %v2509, %v2558
        %v2571 = vmul.f32 %v2511, %v2559
        %v2572 = vpack.c.bf16 %v2561, %v2560
        %v2573 = vpack.c.bf16 %v2562, %v2562
        %v2574 = vpack.c.bf16 %v2564, %v2563
        %v2575 = vpack.c.bf16 %v2565, %v2565
        %v2576 = vpack.c.bf16 %v2567, %v2566
        %v2577 = vpack.c.bf16 %v2568, %v2568
        %v2578 = vpack.c.bf16 %v2570, %v2569
        %v2579 = vpack.c.bf16 %v2571, %v2571
        %2580 = vrot.lane.b32.xlu0 %v2144, 64
        %v2581 = vpop.permute.xlu0 %2580
        %2582 = vrot.lane.b32.xlu0 %v2145, 64
        %v2583 = vpop.permute.xlu0 %2582
        %v2586 = vsel %vm1165, %v2572, 0
        %v2589 = vsel %vm1165, %v2573, 0
        %v2592 = vsel %vm1317, %v2583, 0
        %2594 = vmatprep.subr.bf16.mxu0 0
        %2595 = vmatpush1.bf16.msra.mxu0 %v2581
        %2596 = vmatprep.subr.bf16.mxu0 0
        %2597 = vmatpush1.bf16.msra.mxu0 %v2592
        %2598 = vmatprep.subr.bf16.mxu0 0
        %2599 = vmatpush1.bf16.msra.mxu0 0
        %2600 = vmatprep.subr.bf16.mxu0 0
        %2601 = vmatpush1.bf16.msra.mxu0 0
        %2602 = vmatprep.subr.bf16.mxu0 0
        %2603 = vmatpush1.bf16.msra.mxu0 0
        %2604 = vmatprep.subr.bf16.mxu0 0
        %2605 = vmatpush1.bf16.msra.mxu0 0
        %2606 = vmatprep.subr.bf16.mxu0 0
        %2607 = vmatpush1.bf16.msra.mxu0 0
        %2608 = vmatprep.subr.bf16.mxu0 0
        %2609 = vmatpush1.bf16.msra.mxu0 0
        %2610 = vmatprep.subr.bf16.mxu0 0
        %2611 = vmatpush1.bf16.msra.mxu0 0
        %2612 = vmatprep.subr.bf16.mxu0 0
        %2613 = vmatpush1.bf16.msra.mxu0 0
        %2614 = vmatprep.subr.bf16.mxu0 0
        %2615 = vmatpush1.bf16.msra.mxu0 0
        %2616 = vmatprep.subr.bf16.mxu0 0
        %2617 = vmatpush1.bf16.msra.mxu0 0
        %2618 = vmatprep.subr.bf16.mxu0 0
        %2619 = vmatpush1.bf16.msra.mxu0 0
        %2620 = vmatprep.subr.bf16.mxu0 0
        %2621 = vmatpush1.bf16.msra.mxu0 0
        %2622 = vmatprep.subr.bf16.mxu0 0
        %2623 = vmatpush1.bf16.msra.mxu0 0
        %2624 = vmatprep.subr.bf16.mxu0 0
        %2625 = vmatpush1.bf16.msra.mxu0 0
        %2626 = vmatprep.mubr.bf16.mxu0 0
        %2627 = vmatmul.mubr.bf16.gmra.mrb[0].mxu0 %v2586
        %v2628 = vpop.f32.mrb[0].mxu0
        %v2629 = vadd.f32 0.0, %v2628
        %v2630 = vpop.f32.mrb[0].mxu0
        %v2631 = vpop.f32.mrb[0].mxu0
        %v2632 = vadd.f32 0.0, %v2631
        %v2633 = vpop.f32.mrb[0].mxu0
        %2634 = vmatprep.mubr.bf16.mxu0 0
        %2635 = vmatmul.mubr.bf16.gmra.mrb[0].mxu0 %v2589
        %v2636 = vpop.f32.mrb[0].mxu0
        %v2637 = vadd.f32 0.0, %v2636
        %v2638 = vpop.f32.mrb[0].mxu0
        %v2639 = vpop.f32.mrb[0].mxu0
        %v2640 = vpop.f32.mrb[0].mxu0
        %2641 = vdwg.mxu0
        %2642 = vrot.lane.b32.xlu0 %v2146, 64
        %v2643 = vpop.permute.xlu0 %2642
        %2644 = vrot.lane.b32.xlu0 %v2147, 64
        %v2645 = vpop.permute.xlu0 %2644
        %v2648 = vsel %vm1165, %v2574, 0
        %v2651 = vsel %vm1165, %v2575, 0
        %v2654 = vsel %vm1317, %v2645, 0
        %2656 = vmatprep.subr.bf16.mxu0 0
        %2657 = vmatpush1.bf16.msra.mxu0 %v2643
        %2658 = vmatprep.subr.bf16.mxu0 0
        %2659 = vmatpush1.bf16.msra.mxu0 %v2654
        %2660 = vmatprep.subr.bf16.mxu0 0
        %2661 = vmatpush1.bf16.msra.mxu0 0
        %2662 = vmatprep.subr.bf16.mxu0 0
        %2663 = vmatpush1.bf16.msra.mxu0 0
        %2664 = vmatprep.subr.bf16.mxu0 0
        %2665 = vmatpush1.bf16.msra.mxu0 0
        %2666 = vmatprep.subr.bf16.mxu0 0
        %2667 = vmatpush1.bf16.msra.mxu0 0
        %2668 = vmatprep.subr.bf16.mxu0 0
        %2669 = vmatpush1.bf16.msra.mxu0 0
        %2670 = vmatprep.subr.bf16.mxu0 0
        %2671 = vmatpush1.bf16.msra.mxu0 0
        %2672 = vmatprep.subr.bf16.mxu0 0
        %2673 = vmatpush1.bf16.msra.mxu0 0
        %2674 = vmatprep.subr.bf16.mxu0 0
        %2675 = vmatpush1.bf16.msra.mxu0 0
        %2676 = vmatprep.subr.bf16.mxu0 0
        %2677 = vmatpush1.bf16.msra.mxu0 0
        %2678 = vmatprep.subr.bf16.mxu0 0
        %2679 = vmatpush1.bf16.msra.mxu0 0
        %2680 = vmatprep.subr.bf16.mxu0 0
        %2681 = vmatpush1.bf16.msra.mxu0 0
        %2682 = vmatprep.subr.bf16.mxu0 0
        %2683 = vmatpush1.bf16.msra.mxu0 0
        %2684 = vmatprep.subr.bf16.mxu0 0
        %2685 = vmatpush1.bf16.msra.mxu0 0
        %2686 = vmatprep.subr.bf16.mxu0 0
        %2687 = vmatpush1.bf16.msra.mxu0 0
        %2688 = vmatprep.mubr.bf16.mxu0 0
        %2689 = vmatmul.mubr.bf16.gmra.mrb[0].mxu0 %v2648
        %v2690 = vpop.f32.mrb[0].mxu0
        %v2691 = vadd.f32 0.0, %v2690
        %v2692 = vpop.f32.mrb[0].mxu0
        %v2693 = vpop.f32.mrb[0].mxu0
        %v2694 = vadd.f32 0.0, %v2693
        %v2695 = vpop.f32.mrb[0].mxu0
        %2696 = vmatprep.mubr.bf16.mxu0 0
        %2697 = vmatmul.mubr.bf16.gmra.mrb[0].mxu0 %v2651
        %v2698 = vpop.f32.mrb[0].mxu0
        %v2699 = vadd.f32 0.0, %v2698
        %v2700 = vpop.f32.mrb[0].mxu0
        %v2701 = vpop.f32.mrb[0].mxu0
        %v2702 = vpop.f32.mrb[0].mxu0
        %2703 = vdwg.mxu0
        %2704 = vrot.lane.b32.xlu0 %v2148, 64
        %v2705 = vpop.permute.xlu0 %2704
        %2706 = vrot.lane.b32.xlu0 %v2149, 64
        %v2707 = vpop.permute.xlu0 %2706
        %v2710 = vsel %vm1165, %v2576, 0
        %v2713 = vsel %vm1165, %v2577, 0
        %v2716 = vsel %vm1317, %v2707, 0
        %2718 = vmatprep.subr.bf16.mxu0 0
        %2719 = vmatpush1.bf16.msra.mxu0 %v2705
        %2720 = vmatprep.subr.bf16.mxu0 0
        %2721 = vmatpush1.bf16.msra.mxu0 %v2716
        %2722 = vmatprep.subr.bf16.mxu0 0
        %2723 = vmatpush1.bf16.msra.mxu0 0
        %2724 = vmatprep.subr.bf16.mxu0 0
        %2725 = vmatpush1.bf16.msra.mxu0 0
        %2726 = vmatprep.subr.bf16.mxu0 0
        %2727 = vmatpush1.bf16.msra.mxu0 0
        %2728 = vmatprep.subr.bf16.mxu0 0
        %2729 = vmatpush1.bf16.msra.mxu0 0
        %2730 = vmatprep.subr.bf16.mxu0 0
        %2731 = vmatpush1.bf16.msra.mxu0 0
        %2732 = vmatprep.subr.bf16.mxu0 0
        %2733 = vmatpush1.bf16.msra.mxu0 0
        %2734 = vmatprep.subr.bf16.mxu0 0
        %2735 = vmatpush1.bf16.msra.mxu0 0
        %2736 = vmatprep.subr.bf16.mxu0 0
        %2737 = vmatpush1.bf16.msra.mxu0 0
        %2738 = vmatprep.subr.bf16.mxu0 0
        %2739 = vmatpush1.bf16.msra.mxu0 0
        %2740 = vmatprep.subr.bf16.mxu0 0
        %2741 = vmatpush1.bf16.msra.mxu0 0
        %2742 = vmatprep.subr.bf16.mxu0 0
        %2743 = vmatpush1.bf16.msra.mxu0 0
        %2744 = vmatprep.subr.bf16.mxu0 0
        %2745 = vmatpush1.bf16.msra.mxu0 0
        %2746 = vmatprep.subr.bf16.mxu0 0
        %2747 = vmatpush1.bf16.msra.mxu0 0
        %2748 = vmatprep.subr.bf16.mxu0 0
        %2749 = vmatpush1.bf16.msra.mxu0 0
        %2750 = vmatprep.mubr.bf16.mxu0 0
        %2751 = vmatmul.mubr.bf16.gmra.mrb[0].mxu0 %v2710
        %v2752 = vpop.f32.mrb[0].mxu0
        %v2753 = vadd.f32 0.0, %v2752
        %v2754 = vpop.f32.mrb[0].mxu0
        %v2755 = vpop.f32.mrb[0].mxu0
        %v2756 = vadd.f32 0.0, %v2755
        %v2757 = vpop.f32.mrb[0].mxu0
        %2758 = vmatprep.mubr.bf16.mxu0 0
        %2759 = vmatmul.mubr.bf16.gmra.mrb[0].mxu0 %v2713
        %v2760 = vpop.f32.mrb[0].mxu0
        %v2761 = vadd.f32 0.0, %v2760
        %v2762 = vpop.f32.mrb[0].mxu0
        %v2763 = vpop.f32.mrb[0].mxu0
        %v2764 = vpop.f32.mrb[0].mxu0
        %2765 = vdwg.mxu0
        %2766 = vrot.lane.b32.xlu0 %v2150, 64
        %v2767 = vpop.permute.xlu0 %2766
        %2768 = vrot.lane.b32.xlu0 %v2151, 64
        %v2769 = vpop.permute.xlu0 %2768
        %v2772 = vsel %vm1165, %v2578, 0
        %v2775 = vsel %vm1165, %v2579, 0
        %v2778 = vsel %vm1317, %v2769, 0
        %2780 = vmatprep.subr.bf16.mxu0 0
        %2781 = vmatpush1.bf16.msra.mxu0 %v2767
        %2782 = vmatprep.subr.bf16.mxu0 0
        %2783 = vmatpush1.bf16.msra.mxu0 %v2778
        %2784 = vmatprep.subr.bf16.mxu0 0
        %2785 = vmatpush1.bf16.msra.mxu0 0
        %2786 = vmatprep.subr.bf16.mxu0 0
        %2787 = vmatpush1.bf16.msra.mxu0 0
        %2788 = vmatprep.subr.bf16.mxu0 0
        %2789 = vmatpush1.bf16.msra.mxu0 0
        %2790 = vmatprep.subr.bf16.mxu0 0
        %2791 = vmatpush1.bf16.msra.mxu0 0
        %2792 = vmatprep.subr.bf16.mxu0 0
        %2793 = vmatpush1.bf16.msra.mxu0 0
        %2794 = vmatprep.subr.bf16.mxu0 0
        %2795 = vmatpush1.bf16.msra.mxu0 0
        %2796 = vmatprep.subr.bf16.mxu0 0
        %2797 = vmatpush1.bf16.msra.mxu0 0
        %2798 = vmatprep.subr.bf16.mxu0 0
        %2799 = vmatpush1.bf16.msra.mxu0 0
        %2800 = vmatprep.subr.bf16.mxu0 0
        %2801 = vmatpush1.bf16.msra.mxu0 0
        %2802 = vmatprep.subr.bf16.mxu0 0
        %2803 = vmatpush1.bf16.msra.mxu0 0
        %2804 = vmatprep.subr.bf16.mxu0 0
        %2805 = vmatpush1.bf16.msra.mxu0 0
        %2806 = vmatprep.subr.bf16.mxu0 0
        %2807 = vmatpush1.bf16.msra.mxu0 0
        %2808 = vmatprep.subr.bf16.mxu0 0
        %2809 = vmatpush1.bf16.msra.mxu0 0
        %2810 = vmatprep.subr.bf16.mxu0 0
        %2811 = vmatpush1.bf16.msra.mxu0 0
        %2812 = vmatprep.mubr.bf16.mxu0 0
        %2813 = vmatmul.mubr.bf16.gmra.mrb[0].mxu0 %v2772
        %v2814 = vpop.f32.mrb[0].mxu0
        %v2815 = vadd.f32 0.0, %v2814
        %v2816 = vpop.f32.mrb[0].mxu0
        %v2817 = vpop.f32.mrb[0].mxu0
        %v2818 = vadd.f32 0.0, %v2817
        %v2819 = vpop.f32.mrb[0].mxu0
        %2820 = vmatprep.mubr.bf16.mxu0 0
        %2821 = vmatmul.mubr.bf16.gmra.mrb[0].mxu0 %v2775
        %v2822 = vpop.f32.mrb[0].mxu0
        %v2823 = vadd.f32 0.0, %v2822
        %v2824 = vpop.f32.mrb[0].mxu0
        %v2825 = vpop.f32.mrb[0].mxu0
        %v2826 = vpop.f32.mrb[0].mxu0
        %2827 = vdwg.mxu0
        %2831 = vrot.lane.b32.xlu0 %v2691, 8
        %v2832 = vpop.permute.xlu0 %2831
        %2833 = vrot.lane.b32.xlu0 %v2694, 8
        %v2834 = vpop.permute.xlu0 %2833
        %2835 = vrot.lane.b32.xlu0 %v2699, 8
        %v2836 = vpop.permute.xlu0 %2835
        %2843 = vrot.lane.b32.xlu0 %v2753, 16
        %v2844 = vpop.permute.xlu0 %2843
        %2845 = vrot.lane.b32.xlu0 %v2756, 16
        %v2846 = vpop.permute.xlu0 %2845
        %2847 = vrot.lane.b32.xlu0 %v2761, 16
        %v2848 = vpop.permute.xlu0 %2847
        %2855 = vrot.lane.b32.xlu0 %v2815, 24
        %v2856 = vpop.permute.xlu0 %2855
        %2857 = vrot.lane.b32.xlu0 %v2818, 24
        %v2858 = vpop.permute.xlu0 %2857
        %2859 = vrot.lane.b32.xlu0 %v2823, 24
        %v2860 = vpop.permute.xlu0 %2859
        %v2864 = vsel %vm882, %v2629, %v2832
        %v2865 = vsel %vm882, %v2632, %v2834
        %v2866 = vsel %vm882, %v2637, %v2836
        %v2867 = vsel %vm1594, %v2864, %v2844
        %v2868 = vsel %vm1594, %v2865, %v2846
        %v2869 = vsel %vm1594, %v2866, %v2848
        %v2870 = vsel %vm1165, %v2867, %v2856
        %v2871 = vsel %vm1165, %v2868, %v2858
        %v2872 = vsel %vm1165, %v2869, %v2860
        %v2873 = vpack.c.bf16 %v2871, %v2870
        %v2874 = vpack.c.bf16 %v2872, %v2872
        %s2875 = scalar_lea.vmem %s7, 16
        %v2876 = vld [vmem:[%s2875] sm:$0xf]
        %v2877 = vld [vmem:[%s2875 + $0x4] sm:$0xf]
        %v2878 = vld [vmem:[%s2875 + $0x8] sm:$0xf]
        %v2879 = vld [vmem:[%s2875 + $0xc] sm:$0xf]
        %s2880 = scalar_lea.vmem %s8, 1
        %v2881 = vld [vmem:[%s2880] sm:$0x1]
        %v2883 = vlaneseq
        %v2884 = vshrl.u32 %v2883, 7
        %v2885 = vsub.s32 0, %v2884
        %v2886 = vrot.slane %v2881, %v2885
        %v2892 = vunpack.c.l.b16 %v2876
        %v2893 = vunpack.c.l.b16 %v2877
        %v2894 = vunpack.c.l.b16 %v2878
        %v2895 = vunpack.c.l.b16 %v2879
        %v2896 = vpack.c.b16 %v2893, %v2892
        %v2897 = vpack.c.b16 %v2895, %v2894
        %v2901 = vsel %vm700, %v2873, 0
        %v2904 = vsel %vm700, %v2874, 0
        %2906 = vmatprep.subr.bf16.mxu0 0
        %2907 = vmatpush1.bf16.msra.mxu0 %v2896
        %2908 = vmatprep.subr.bf16.mxu0 0
        %2909 = vmatpush1.bf16.msra.mxu0 %v2897
        %2910 = vmatprep.subr.bf16.mxu0 0
        %2911 = vmatpush1.bf16.msra.mxu0 0
        %2912 = vmatprep.subr.bf16.mxu0 0
        %2913 = vmatpush1.bf16.msra.mxu0 0
        %2914 = vmatprep.subr.bf16.mxu0 0
        %2915 = vmatpush1.bf16.msra.mxu0 0
        %2916 = vmatprep.subr.bf16.mxu0 0
        %2917 = vmatpush1.bf16.msra.mxu0 0
        %2918 = vmatprep.subr.bf16.mxu0 0
        %2919 = vmatpush1.bf16.msra.mxu0 0
        %2920 = vmatprep.subr.bf16.mxu0 0
        %2921 = vmatpush1.bf16.msra.mxu0 0
        %2922 = vmatprep.subr.bf16.mxu0 0
        %2923 = vmatpush1.bf16.msra.mxu0 0
        %2924 = vmatprep.subr.bf16.mxu0 0
        %2925 = vmatpush1.bf16.msra.mxu0 0
        %2926 = vmatprep.subr.bf16.mxu0 0
        %2927 = vmatpush1.bf16.msra.mxu0 0
        %2928 = vmatprep.subr.bf16.mxu0 0
        %2929 = vmatpush1.bf16.msra.mxu0 0
        %2930 = vmatprep.subr.bf16.mxu0 0
        %2931 = vmatpush1.bf16.msra.mxu0 0
        %2932 = vmatprep.subr.bf16.mxu0 0
        %2933 = vmatpush1.bf16.msra.mxu0 0
        %2934 = vmatprep.subr.bf16.mxu0 0
        %2935 = vmatpush1.bf16.msra.mxu0 0
        %2936 = vmatprep.subr.bf16.mxu0 0
        %2937 = vmatpush1.bf16.msra.mxu0 0
        %2938 = vmatprep.mubr.bf16.mxu0 0
        %2939 = vmatmul.mubr.bf16.gmra.mrb[0].mxu0 %v2901
        %v2940 = vpop.f32.mrb[0].mxu0
        %v2941 = vadd.f32 %v2886, %v2940
        %v2942 = vpop.f32.mrb[0].mxu0
        %v2943 = vpop.f32.mrb[0].mxu0
        %v2944 = vadd.f32 %v2886, %v2943
        %v2945 = vpop.f32.mrb[0].mxu0
        %2946 = vmatprep.mubr.bf16.mxu0 0
        %2947 = vmatmul.mubr.bf16.gmra.mrb[0].mxu0 %v2904
        %v2948 = vpop.f32.mrb[0].mxu0
        %v2949 = vadd.f32 %v2886, %v2948
        %v2950 = vpop.f32.mrb[0].mxu0
        %v2951 = vpop.f32.mrb[0].mxu0
        %v2952 = vpop.f32.mrb[0].mxu0
        %2953 = vdwg.mxu0
        %v2954 = vadd.f32 %v1969, %v2941
        %v2955 = vadd.f32 %v1970, %v2944
        %v2956 = vadd.f32 %v1971, %v2949
        %s2957 = scalar_lea.vmem %s9, 1
        %v2958 = vld [vmem:[%s2957] sm:$0x1]
        %s2959 = scalar_lea.vmem %s10, 1
        %v2960 = vld [vmem:[%s2959] sm:$0x1]
        %v2961 = vsel %vm700, %v2954, 0.0
        %2962 = vadd.xlane.f32.xlu0 %v2961
        %v2963 = vpop.xlane.xlu0 %2962
        %v2964 = vsel %vm700, %v2955, 0.0
        %2965 = vadd.xlane.f32.xlu0 %v2964
        %v2966 = vpop.xlane.xlu0 %2965
        %v2967 = vsel %vm700, %v2956, 0.0
        %2968 = vadd.xlane.f32.xlu0 %v2967
        %v2969 = vpop.xlane.xlu0 %2968
        %v2970 = vmul.f32 %v2963, %v710
        %v2971 = vmul.f32 %v2966, %v710
        %v2972 = vmul.f32 %v2969, %v710
        %v2973 = vsub.f32 %v2954, %v2970
        %v2974 = vsub.f32 %v2955, %v2971
        %v2975 = vsub.f32 %v2956, %v2972
        %v2976 = vmul.f32 %v2973, %v2973
        %v2977 = vmul.f32 %v2974, %v2974
        %v2978 = vmul.f32 %v2975, %v2975
        %v2979 = vsel %vm700, %v2976, 0.0
        %2980 = vadd.xlane.f32.xlu0 %v2979
        %v2981 = vpop.xlane.xlu0 %2980
        %v2982 = vsel %vm700, %v2977, 0.0
        %2983 = vadd.xlane.f32.xlu0 %v2982
        %v2984 = vpop.xlane.xlu0 %2983
        %v2985 = vsel %vm700, %v2978, 0.0
        %2986 = vadd.xlane.f32.xlu0 %v2985
        %v2987 = vpop.xlane.xlu0 %2986
        %v2988 = vmul.f32 %v2981, %v710
        %v2989 = vmul.f32 %v2984, %v710
        %v2990 = vmul.f32 %v2987, %v710
        %v2991 = vadd.f32 %v2988, 1e-06
        %v2992 = vadd.f32 %v2989, 1e-06
        %v2993 = vadd.f32 %v2990, 1e-06
        %v2994 = vrsqrt.pop %v2991
        %v2995 = vrsqrt.pop %v2992
        %v2996 = vrsqrt.pop %v2993
        %v2997 = vmul.f32 %v2973, %v2994
        %v2998 = vmul.f32 %v2974, %v2995
        %v2999 = vmul.f32 %v2975, %v2996
        %v3001 = vlaneseq
        %v3002 = vshrl.u32 %v3001, 7
        %v3003 = vsub.s32 0, %v3002
        %v3004 = vrot.slane %v2958, %v3003
        %v3006 = vmul.f32 %v2997, %v3004
        %v3007 = vmul.f32 %v2998, %v3004
        %v3008 = vmul.f32 %v2999, %v3004
        %v3010 = vlaneseq
        %v3011 = vshrl.u32 %v3010, 7
        %v3012 = vsub.s32 0, %v3011
        %v3013 = vrot.slane %v2960, %v3012
        %v3015 = vadd.f32 %v3006, %v3013
        %v3016 = vadd.f32 %v3007, %v3013
        %v3017 = vadd.f32 %v3008, %v3013
        %v3018 = vpack.c.bf16 %v3016, %v3015
        %v3019 = vpack.c.bf16 %v3017, %v3017
        %s3020 = scalar_lea.vmem %s11, 16
        %v3021 = vld [vmem:[%s3020] sm:$0xf]
        %v3022 = vld [vmem:[%s3020 + $0x4] sm:$0xf]
        %v3023 = vld [vmem:[%s3020 + $0x8] sm:$0xf]
        %v3024 = vld [vmem:[%s3020 + $0xc] sm:$0xf]
        %s3025 = scalar_lea.vmem %s12, 1
        %v3026 = vld [vmem:[%s3025] sm:$0x1]
        %v3028 = vlaneseq
        %v3029 = vshrl.u32 %v3028, 7
        %v3030 = vsub.s32 0, %v3029
        %v3031 = vrot.slane %v3026, %v3030
        %v3037 = vunpack.c.l.b16 %v3021
        %v3038 = vunpack.c.l.b16 %v3022
        %v3039 = vunpack.c.l.b16 %v3023
        %v3040 = vunpack.c.l.b16 %v3024
        %v3041 = vpack.c.b16 %v3038, %v3037
        %v3042 = vpack.c.b16 %v3040, %v3039
        %v3046 = vsel %vm700, %v3018, 0
        %v3049 = vsel %vm700, %v3019, 0
        %3051 = vmatprep.subr.bf16.mxu0 0
        %3052 = vmatpush1.bf16.msra.mxu0 %v3041
        %3053 = vmatprep.subr.bf16.mxu0 0
        %3054 = vmatpush1.bf16.msra.mxu0 %v3042
        %3055 = vmatprep.subr.bf16.mxu0 0
        %3056 = vmatpush1.bf16.msra.mxu0 0
        %3057 = vmatprep.subr.bf16.mxu0 0
        %3058 = vmatpush1.bf16.msra.mxu0 0
        %3059 = vmatprep.subr.bf16.mxu0 0
        %3060 = vmatpush1.bf16.msra.mxu0 0
        %3061 = vmatprep.subr.bf16.mxu0 0
        %3062 = vmatpush1.bf16.msra.mxu0 0
        %3063 = vmatprep.subr.bf16.mxu0 0
        %3064 = vmatpush1.bf16.msra.mxu0 0
        %3065 = vmatprep.subr.bf16.mxu0 0
        %3066 = vmatpush1.bf16.msra.mxu0 0
        %3067 = vmatprep.subr.bf16.mxu0 0
        %3068 = vmatpush1.bf16.msra.mxu0 0
        %3069 = vmatprep.subr.bf16.mxu0 0
        %3070 = vmatpush1.bf16.msra.mxu0 0
        %3071 = vmatprep.subr.bf16.mxu0 0
        %3072 = vmatpush1.bf16.msra.mxu0 0
        %3073 = vmatprep.subr.bf16.mxu0 0
        %3074 = vmatpush1.bf16.msra.mxu0 0
        %3075 = vmatprep.subr.bf16.mxu0 0
        %3076 = vmatpush1.bf16.msra.mxu0 0
        %3077 = vmatprep.subr.bf16.mxu0 0
        %3078 = vmatpush1.bf16.msra.mxu0 0
        %3079 = vmatprep.subr.bf16.mxu0 0
        %3080 = vmatpush1.bf16.msra.mxu0 0
        %3081 = vmatprep.subr.bf16.mxu0 0
        %3082 = vmatpush1.bf16.msra.mxu0 0
        %3083 = vmatprep.mubr.bf16.mxu0 0
        %3084 = vmatmul.mubr.bf16.gmra.mrb[0].mxu0 %v3046
        %v3085 = vpop.f32.mrb[0].mxu0
        %v3086 = vadd.f32 %v3031, %v3085
        %v3087 = vpop.f32.mrb[0].mxu0
        %v3088 = vpop.f32.mrb[0].mxu0
        %v3089 = vadd.f32 %v3031, %v3088
        %v3090 = vpop.f32.mrb[0].mxu0
        %3091 = vmatprep.mubr.bf16.mxu0 0
        %3092 = vmatmul.mubr.bf16.gmra.mrb[0].mxu0 %v3049
        %v3093 = vpop.f32.mrb[0].mxu0
        %v3094 = vadd.f32 %v3031, %v3093
        %v3095 = vpop.f32.mrb[0].mxu0
        %v3096 = vpop.f32.mrb[0].mxu0
        %v3097 = vpop.f32.mrb[0].mxu0
        %3098 = vdwg.mxu0
        %v3099 = vmul.f32 %v3086, 0.5
        %v3100 = vmul.f32 %v3089, 0.5
        %v3101 = vmul.f32 %v3094, 0.5
        %v3102 = vmul.f32 %v3086, 0.044715
        %v3103 = vmul.f32 %v3089, 0.044715
        %v3104 = vmul.f32 %v3094, 0.044715
        %v3105 = vmul.f32 %v3102, %v3086
        %v3106 = vmul.f32 %v3103, %v3089
        %v3107 = vmul.f32 %v3104, %v3094
        %v3108 = vmul.f32 %v3105, %v3086
        %v3109 = vmul.f32 %v3106, %v3089
        %v3110 = vmul.f32 %v3107, %v3094
        %v3111 = vadd.f32 %v3086, %v3108
        %v3112 = vadd.f32 %v3089, %v3109
        %v3113 = vadd.f32 %v3094, %v3110
        %v3114 = vmul.f32 %v3111, 0.7978846
        %v3115 = vmul.f32 %v3112, 0.7978846
        %v3116 = vmul.f32 %v3113, 0.7978846
        %v3117 = vtanh.pop %v3114
        %v3118 = vtanh.pop %v3115
        %v3119 = vtanh.pop %v3116
        %v3120 = vadd.f32 %v3117, 1.0
        %v3121 = vadd.f32 %v3118, 1.0
        %v3122 = vadd.f32 %v3119, 1.0
        %v3123 = vmul.f32 %v3099, %v3120
        %v3124 = vmul.f32 %v3100, %v3121
        %v3125 = vmul.f32 %v3101, %v3122
        %v3126 = vpack.c.bf16 %v3124, %v3123
        %v3127 = vpack.c.bf16 %v3125, %v3125
        %s3128 = scalar_lea.vmem %s13, 64
        %v3129 = vld [vmem:[%s3128] sm:$0xf]
        %v3130 = vld [vmem:[%s3128 + $0x4] sm:$0xf]
        %v3131 = vld [vmem:[%s3128 + $0x8] sm:$0xf]
        %v3132 = vld [vmem:[%s3128 + $0xc] sm:$0xf]
        %v3133 = vld [vmem:[%s3128 + $0x10] sm:$0xf]
        %v3134 = vld [vmem:[%s3128 + $0x14] sm:$0xf]
        %v3135 = vld [vmem:[%s3128 + $0x18] sm:$0xf]
        %v3136 = vld [vmem:[%s3128 + $0x1c] sm:$0xf]
        %v3137 = vld [vmem:[%s3128 + $0x20] sm:$0xf]
        %v3138 = vld [vmem:[%s3128 + $0x24] sm:$0xf]
        %v3139 = vld [vmem:[%s3128 + $0x28] sm:$0xf]
        %v3140 = vld [vmem:[%s3128 + $0x2c] sm:$0xf]
        %v3141 = vld [vmem:[%s3128 + $0x30] sm:$0xf]
        %v3142 = vld [vmem:[%s3128 + $0x34] sm:$0xf]
        %v3143 = vld [vmem:[%s3128 + $0x38] sm:$0xf]
        %v3144 = vld [vmem:[%s3128 + $0x3c] sm:$0xf]
        %s3145 = scalar_lea.vmem %s14, 1
        %v3146 = vld [vmem:[%s3145] sm:$0x1]
        %v3148 = vlaneseq
        %v3149 = vshrl.u32 %v3148, 7
        %v3150 = vsub.s32 0, %v3149
        %v3151 = vrot.slane %v3146, %v3150
        %v3169 = vunpack.c.l.b16 %v3129
        %v3170 = vunpack.c.l.b16 %v3130
        %v3171 = vunpack.c.l.b16 %v3131
        %v3172 = vunpack.c.l.b16 %v3132
        %v3173 = vunpack.c.l.b16 %v3133
        %v3174 = vunpack.c.l.b16 %v3134
        %v3175 = vunpack.c.l.b16 %v3135
        %v3176 = vunpack.c.l.b16 %v3136
        %v3177 = vunpack.c.l.b16 %v3137
        %v3178 = vunpack.c.l.b16 %v3138
        %v3179 = vunpack.c.l.b16 %v3139
        %v3180 = vunpack.c.l.b16 %v3140
        %v3181 = vunpack.c.l.b16 %v3141
        %v3182 = vunpack.c.l.b16 %v3142
        %v3183 = vunpack.c.l.b16 %v3143
        %v3184 = vunpack.c.l.b16 %v3144
        %v3185 = vpack.c.b16 %v3170, %v3169
        %v3186 = vpack.c.b16 %v3172, %v3171
        %v3187 = vpack.c.b16 %v3174, %v3173
        %v3188 = vpack.c.b16 %v3176, %v3175
        %v3189 = vpack.c.b16 %v3178, %v3177
        %v3190 = vpack.c.b16 %v3180, %v3179
        %v3191 = vpack.c.b16 %v3182, %v3181
        %v3192 = vpack.c.b16 %v3184, %v3183
        %3201 = vmatprep.subr.bf16.mxu0 0
        %3202 = vmatpush1.bf16.msra.mxu0 %v3185
        %3203 = vmatprep.subr.bf16.mxu0 0
        %3204 = vmatpush1.bf16.msra.mxu0 %v3186
        %3205 = vmatprep.subr.bf16.mxu0 0
        %3206 = vmatpush1.bf16.msra.mxu0 %v3187
        %3207 = vmatprep.subr.bf16.mxu0 0
        %3208 = vmatpush1.bf16.msra.mxu0 %v3188
        %3209 = vmatprep.subr.bf16.mxu0 0
        %3210 = vmatpush1.bf16.msra.mxu0 %v3189
        %3211 = vmatprep.subr.bf16.mxu0 0
        %3212 = vmatpush1.bf16.msra.mxu0 %v3190
        %3213 = vmatprep.subr.bf16.mxu0 0
        %3214 = vmatpush1.bf16.msra.mxu0 %v3191
        %3215 = vmatprep.subr.bf16.mxu0 0
        %3216 = vmatpush1.bf16.msra.mxu0 %v3192
        %3217 = vmatprep.subr.bf16.mxu0 0
        %3218 = vmatpush1.bf16.msra.mxu0 0
        %3219 = vmatprep.subr.bf16.mxu0 0
        %3220 = vmatpush1.bf16.msra.mxu0 0
        %3221 = vmatprep.subr.bf16.mxu0 0
        %3222 = vmatpush1.bf16.msra.mxu0 0
        %3223 = vmatprep.subr.bf16.mxu0 0
        %3224 = vmatpush1.bf16.msra.mxu0 0
        %3225 = vmatprep.subr.bf16.mxu0 0
        %3226 = vmatpush1.bf16.msra.mxu0 0
        %3227 = vmatprep.subr.bf16.mxu0 0
        %3228 = vmatpush1.bf16.msra.mxu0 0
        %3229 = vmatprep.subr.bf16.mxu0 0
        %3230 = vmatpush1.bf16.msra.mxu0 0
        %3231 = vmatprep.subr.bf16.mxu0 0
        %3232 = vmatpush1.bf16.msra.mxu0 0
        %3233 = vmatprep.mubr.bf16.mxu0 0
        %3234 = vmatmul.mubr.bf16.gmra.mrb[0].mxu0 %v3126
        %v3235 = vpop.f32.mrb[0].mxu0
        %v3236 = vadd.f32 %v3151, %v3235
        %v3237 = vpop.f32.mrb[0].mxu0
        %v3238 = vpop.f32.mrb[0].mxu0
        %v3239 = vpop.f32.mrb[0].mxu0
        %3240 = vmatprep.mubr.bf16.mxu0 0
        %3241 = vmatmul.mubr.bf16.gmra.mrb[0].mxu0 %v3127
        %v3242 = vpop.f32.mrb[0].mxu0
        %v3243 = vpop.f32.mrb[0].mxu0
        %v3244 = vpop.f32.mrb[0].mxu0
        %v3245 = vpop.f32.mrb[0].mxu0
        %3246 = vdwg.mxu0
        %v3247 = vadd.f32 %v2954, %v3236
        %v3248 = vld [vmem:[%s15] sm:$0x1]
        %v3249 = vld [vmem:[%s16] sm:$0x1]
        %vm3250 = vcmask 253952
        %v3251 = vsel %vm3250, %v3247, 0.0
        %3252 = vadd.xlane.f32.xlu0 %v3251
        %v3253 = vpop.xlane.xlu0 %3252
        %v3254 = vmul.f32 %v3253, %v710
        %v3255 = vsub.f32 %v3247, %v3254
        %v3256 = vmul.f32 %v3255, %v3255
        %v3257 = vsel %vm3250, %v3256, 0.0
        %3258 = vadd.xlane.f32.xlu0 %v3257
        %v3259 = vpop.xlane.xlu0 %3258
        %v3260 = vmul.f32 %v3259, %v710
        %v3261 = vadd.f32 %v3260, 1e-06
        %v3262 = vrsqrt.pop %v3261
        %v3263 = vmul.f32 %v3255, %v3262
        %v3264 = vmul.f32 %v3263, %v3248
        %v3265 = vadd.f32 %v3264, %v3249
        %v3266 = vpack.c.bf16 %v3265, %v3265
        %v3267 = vld [vmem:[%s17] sm:$0xf]
        %v3268 = vld [vmem:[%s17 + $0x4] sm:$0xf]
        %v3269 = vld [vmem:[%s17 + $0x8] sm:$0xf]
        %v3270 = vld [vmem:[%s17 + $0xc] sm:$0xf]
        %v3271 = vld [vmem:[%s18] sm:$0x1]
        %v3276 = vunpack.c.l.b16 %v3267
        %v3277 = vunpack.c.l.b16 %v3268
        %v3278 = vunpack.c.l.b16 %v3269
        %v3279 = vunpack.c.l.b16 %v3270
        %v3280 = vpack.c.b16 %v3277, %v3276
        %v3281 = vpack.c.b16 %v3279, %v3278
        %v3285 = vsel %vm700, %v3266, 0
        %3287 = vmatprep.subr.bf16.mxu0 0
        %3288 = vmatpush1.bf16.msra.mxu0 %v3280
        %3289 = vmatprep.subr.bf16.mxu0 0
        %3290 = vmatpush1.bf16.msra.mxu0 %v3281
        %3291 = vmatprep.subr.bf16.mxu0 0
        %3292 = vmatpush1.bf16.msra.mxu0 0
        %3293 = vmatprep.subr.bf16.mxu0 0
        %3294 = vmatpush1.bf16.msra.mxu0 0
        %3295 = vmatprep.subr.bf16.mxu0 0
        %3296 = vmatpush1.bf16.msra.mxu0 0
        %3297 = vmatprep.subr.bf16.mxu0 0
        %3298 = vmatpush1.bf16.msra.mxu0 0
        %3299 = vmatprep.subr.bf16.mxu0 0
        %3300 = vmatpush1.bf16.msra.mxu0 0
        %3301 = vmatprep.subr.bf16.mxu0 0
        %3302 = vmatpush1.bf16.msra.mxu0 0
        %3303 = vmatprep.subr.bf16.mxu0 0
        %3304 = vmatpush1.bf16.msra.mxu0 0
        %3305 = vmatprep.subr.bf16.mxu0 0
        %3306 = vmatpush1.bf16.msra.mxu0 0
        %3307 = vmatprep.subr.bf16.mxu0 0
        %3308 = vmatpush1.bf16.msra.mxu0 0
        %3309 = vmatprep.subr.bf16.mxu0 0
        %3310 = vmatpush1.bf16.msra.mxu0 0
        %3311 = vmatprep.subr.bf16.mxu0 0
        %3312 = vmatpush1.bf16.msra.mxu0 0
        %3313 = vmatprep.subr.bf16.mxu0 0
        %3314 = vmatpush1.bf16.msra.mxu0 0
        %3315 = vmatprep.subr.bf16.mxu0 0
        %3316 = vmatpush1.bf16.msra.mxu0 0
        %3317 = vmatprep.subr.bf16.mxu0 0
        %3318 = vmatpush1.bf16.msra.mxu0 0
        %3319 = vmatprep.mubr.bf16.mxu0 0
        %3320 = vmatmul.mubr.bf16.gmra.mrb[0].mxu0 %v3285
        %v3321 = vpop.f32.mrb[0].mxu0
        %v3322 = vadd.f32 %v3271, %v3321
        %v3323 = vpop.f32.mrb[0].mxu0
        %v3324 = vpop.f32.mrb[0].mxu0
        %v3325 = vpop.f32.mrb[0].mxu0
        %3326 = vdwg.mxu0
        %vm3327 = vcmask 73728
        %3328 = vst.msk [vmem:[%s594] sm:$0x1] %vm3327, %v3322
        %s3329 = sand.u32 %s445, 1
        %s3330 = scalar_lea.sflag [#allocation3], %s3329
        %s3331 = sand.u32 %s445, 1
        %s3332 = scalar_lea.vmem [#allocation2], %s3331
        // Predicated region
        $region97: #{vit_forward.1} parent=95 // pred_check
          %p3333 = pneg %p455
        $region98: #{vit_forward.1} parent=95 // pred_check_branch
          %3335 = sbr.rel (%p3333) target = $region100
        $region99: #{vit_forward.1} parent=95 // pred_region
          %s3337 = ssub.s32 16, 16
          %3338 = vsyncadd %s3330, %s3337
          %s3339 = smul.addr %s33, 16
          %s3340 = scalar_lea.hbm %s19, %s3339
          %s3342 = sshll.u32 %s3332, 4
          %s3343 = int_to_ptr.vmem [resolvable:$true] %s3342
          %3345 = dma.vmem_to_hbm [thread:$0]  %s3343, 16, %s3340, %s3330
        $region100: #{vit_forward.1} parent=95 // pred_fallthru
          _
      $region96: #{vit_forward.1} parent=5 // pred_fallthru
        _
      %p3346 = scmp.le.s32.totalorder 2, %s28
      // Predicated region
      $region101: #{vit_forward.1} parent=5 // pred_check
        %p3347 = pneg %p3346
      $region102: #{vit_forward.1} parent=5 // pred_check_branch
        %3349 = sbr.rel (%p3347) target = $region104
      $region103: #{vit_forward.1} parent=5 // pred_region
        %s3350 = ssub.s32 %s28, 2
        // Predicated region
        $region105: #{vit_forward.1} parent=103 // pred_check
          %p3351 = pneg %p461
        $region106: #{vit_forward.1} parent=103 // pred_check_branch
          %3353 = sbr.rel (%p3351) target = $region108
        $region107: #{vit_forward.1} parent=103 // pred_region
          %s3354 = sand.u32 %s446, 1
          %s3355 = scalar_lea.sflag [#allocation3], %s3354
          %s3356 = sand.u32 %s446, 1
          %s3357 = scalar_lea.vmem [#allocation2], %s3356
          %3358 = dma.done %s3355, 16
        $region108: #{vit_forward.1} parent=103 // pred_fallthru
          _
      $region104: #{vit_forward.1} parent=5 // pred_fallthru
        _
    $region6: #{vit_forward.1} parent=1 // loop_footer
      %s32 = sadd.s32 1, %s28
    $region7: #{vit_forward.1} parent=1 // loop_footer_branch
      %27 = sbr.rel target = $region3
    $region8: #{vit_forward.1} parent=1 // loop_exit
      _
    %3359 = vsyncpa [#allocation3], 1
    %s3360 = scalar_lea.sflag [#allocation3], 1
    %3361 = vsyncpa %s3360, 1

</llo_original>
